<compile_context>
chip_gen: v6e
topology: v6e:2x2x1
jax: 0.10.0
libtpu: 0.0.40
codegen_flags: <defaults>
</compile_context>

<pallas_src>
import numpy as np
import jax
import jax.numpy as jnp
from jax import lax
from jax.experimental import pallas as pl
from jax.experimental.pallas import tpu as pltpu

NC = 5            # number of cascades
ND = 5            # conv layers per cascade block
NF = 16           # hidden feature channels
N_CH = 1          # complex input/output channels
EPS = 1e-5        # InstanceNorm2d eps
LRELU_SLOPE = 0.01

# conv tap order: offsets (oy, ox) = (dy-1, dx-1) for dy, dx in 0..2 (row-major)
_TAPS = [(oy, ox) for oy in (-1, 0, 1) for ox in (-1, 0, 1)]


def _round_up(v, m):
    return ((v + m - 1) // m) * m


# ---------------------------------------------------------------------------
# Fused cascade kernel: 5 complex convs + 4 ASPIN INs + 4 lrelus + residual
# ---------------------------------------------------------------------------
def make_cascade_kernel(H, W):
    HW = H * W
    inv_hw = 1.0 / HW

    def kernel(x_ref, mask_ref, w0_ref, wmid_ref, wlast_ref, blast_ref,
               gamma_ref, beta_ref, o_ref):
        # x_ref    : (1, c_in_pad, HW)    rows = [real chans, imag chans, 0-pad]
        # mask_ref : (9, 1, HW)           per-tap boundary masks (0/1 floats)
        # w0_ref   : (2*NF, 9*c_in_pad)   layer-0 packed complex weight
        # wmid_ref : (ND-2, 2*NF, 9*2*NF) layers 1..ND-2 packed complex weights
        # wlast_ref: (2*N_CH, 9*2*NF)     last-layer packed complex weight
        # blast_ref: (2*N_CH, 1)          last-layer packed complex bias
        # gamma_ref/beta_ref: (ND-1, 2*NF, 1)  ASPIN affine (real rows, imag rows)
        # o_ref    : (1, 2*N_CH, HW)      x + cnn(x)   (real rows, imag rows)

        # hoist the 9 tap masks (kernel body is fully unrolled; no auto-CSE)
        tap_masks = [mask_ref[t] for t in range(9)]          # each (1, HW)

        def build_patch(act):
            # act: (C, HW) -> im2col patch (9*C, HW) of the 9 shifted taps.
            parts = []
            for t, (oy, ox) in enumerate(_TAPS):
                s = oy * W + ox                               # flat-index shift
                if s == 0:
                    parts.append(act)                         # center tap: mask == 1
                else:
                    shifted = pltpu.roll(act, shift=(-s) % HW, axis=1)
                    parts.append(shifted * tap_masks[t])      # zero wrapped lanes
            return jnp.concatenate(parts, axis=0)

        def inorm_lrelu(h, li):
            # per-channel InstanceNorm over the HW lanes (single-pass) + lrelu.
            mu = jnp.sum(h, axis=1, keepdims=True) * inv_hw
            var = jnp.sum(h * h, axis=1, keepdims=True) * inv_hw - mu * mu
            h = (h - mu) * lax.rsqrt(var + EPS) * gamma_ref[li] + beta_ref[li]
            return jnp.where(h >= 0, h, LRELU_SLOPE * h)

        x0 = x_ref[0]                                         # (c_in_pad, HW)

        # layer 0: N_CH -> NF  (bias dropped: cancelled by the following IN)
        h = jnp.dot(w0_ref[...], build_patch(x0),
                    preferred_element_type=jnp.float32)       # (2*NF, HW)
        h = inorm_lrelu(h, 0)

        # layers 1 .. ND-2: NF -> NF
        for li in range(1, ND - 1):
            h = jnp.dot(wmid_ref[li - 1], build_patch(h),
                        preferred_element_type=jnp.float32)
            h = inorm_lrelu(h, li)

        # last layer: NF -> N_CH (bias kept, no norm / activation)
        out = jnp.dot(wlast_ref[...], build_patch(h),
                      preferred_element_type=jnp.float32) + blast_ref[...]

        # residual add: x + x_cnn
        x_res = x_ref[0, 0:2 * N_CH, :]                       # (2*N_CH, HW)
        o_ref[0] = x_res + out

    return kernel


# ---------------------------------------------------------------------------
# Host-side parameter packing (tiny; traced once under jit)
# ---------------------------------------------------------------------------
def _pack_complex_weight(wr, wi, in_width=None):
    # wr, wi: (3, 3, Cin, Cout) HWIO  ->  (2*Cout, 9*in_width) block weight.
    #   out_real = Wr*xr - Wi*xi ; out_imag = Wi*xr + Wr*xi
    kh, kw, cin, cout = wr.shape
    width = 2 * cin if in_width is None else in_width
    blocks = []
    for dy in range(kh):
        for dx in range(kw):
            wrt = wr[dy, dx].T                                # (Cout, Cin)
            wit = wi[dy, dx].T
            blk = jnp.concatenate(
                [jnp.concatenate([wrt, -wit], axis=1),
                 jnp.concatenate([wit, wrt], axis=1)], axis=0)  # (2Cout, 2Cin)
            if width > 2 * cin:
                blk = jnp.pad(blk, ((0, 0), (0, width - 2 * cin)))
            blocks.append(blk)
    return jnp.concatenate(blocks, axis=1)                    # (2Cout, 9*width)


def _pack_aspin(aspin_block):
    # -> gammas, betas of shape (ND-1, 2*NF, 1); rows = [real chans, imag chans]
    g = jnp.stack([jnp.concatenate([a["gr"].reshape(NF, 1),
                                    a["gi"].reshape(NF, 1)], axis=0)
                   for a in aspin_block])
    b = jnp.stack([jnp.concatenate([a["br"].reshape(NF, 1),
                                    a["bi"].reshape(NF, 1)], axis=0)
                   for a in aspin_block])
    return g, b


def _tap_masks(H, W):
    HW = H * W
    yy, xx = np.meshgrid(np.arange(H), np.arange(W), indexing="ij")
    yy = yy.reshape(-1)
    xx = xx.reshape(-1)
    masks = []
    for oy, ox in _TAPS:
        valid = ((yy + oy >= 0) & (yy + oy < H) &
                 (xx + ox >= 0) & (xx + ox < W))
        masks.append(valid.astype(np.float32).reshape(1, HW))
    return jnp.asarray(np.stack(masks, axis=0))               # (9, 1, HW)


def cascade_block(xs, block, aspin_block, masks, H, W):
    """xs: (N, c_in_pad, H*W) f32 (real rows, imag rows, zero pad rows).
    Returns (N, 2*N_CH, H*W) = x + cnn(x)."""
    N, c_in_pad, HW = xs.shape
    w0 = _pack_complex_weight(block[0]["wr"], block[0]["wi"], in_width=c_in_pad)
    wmid = jnp.stack([_pack_complex_weight(block[li]["wr"], block[li]["wi"])
                      for li in range(1, ND - 1)])            # (ND-2, 2NF, 9*2NF)
    wlast = _pack_complex_weight(block[ND - 1]["wr"], block[ND - 1]["wi"])
    blast = jnp.concatenate(
        [(block[ND - 1]["br"] - block[ND - 1]["bi"]).reshape(N_CH, 1),
         (block[ND - 1]["br"] + block[ND - 1]["bi"]).reshape(N_CH, 1)], axis=0)
    gammas, betas = _pack_aspin(aspin_block)

    kernel = make_cascade_kernel(H, W)
    return pl.pallas_call(
        kernel,
        out_shape=jax.ShapeDtypeStruct((N, 2 * N_CH, HW), jnp.float32),
        grid=(N,),
        in_specs=[
            pl.BlockSpec((1, c_in_pad, HW), lambda n: (n, 0, 0)),
            pl.BlockSpec((9, 1, HW), lambda n: (0, 0, 0)),
            pl.BlockSpec((2 * NF, 9 * c_in_pad), lambda n: (0, 0)),
            pl.BlockSpec((ND - 2, 2 * NF, 9 * 2 * NF), lambda n: (0, 0, 0)),
            pl.BlockSpec((2 * N_CH, 9 * 2 * NF), lambda n: (0, 0)),
            pl.BlockSpec((2 * N_CH, 1), lambda n: (0, 0)),
            pl.BlockSpec((ND - 1, 2 * NF, 1), lambda n: (0, 0, 0)),
            pl.BlockSpec((ND - 1, 2 * NF, 1), lambda n: (0, 0, 0)),
        ],
        out_specs=pl.BlockSpec((1, 2 * N_CH, HW), lambda n: (n, 0, 0)),
        compiler_params=pltpu.CompilerParams(
            dimension_semantics=("parallel",)),   # batch over TCs (v7x megacore)
    )(xs, masks, w0, wmid, wlast, blast, gammas, betas)


# ---------------------------------------------------------------------------
# Parameters (deterministic synthetic init; ASPIN affine = PyTorch defaults)
# ---------------------------------------------------------------------------
def init_params(key):
    chans = [(N_CH, NF)] + [(NF, NF)] * (ND - 2) + [(NF, N_CH)]
    conv_blocks, aspins = [], []
    for _ in range(NC):
        block = []
        for (cin, cout) in chans:
            key, k1, k2, k3, k4 = jax.random.split(key, 5)
            block.append({
                "wr": 0.05 * jax.random.normal(k1, (3, 3, cin, cout), jnp.float32),
                "wi": 0.05 * jax.random.normal(k2, (3, 3, cin, cout), jnp.float32),
                "br": 0.05 * jax.random.normal(k3, (1, cout), jnp.float32),
                "bi": 0.05 * jax.random.normal(k4, (1, cout), jnp.float32),
            })
        conv_blocks.append(block)
        aspins.append([{
            "gr": jnp.ones((1, NF), jnp.float32),
            "br": jnp.zeros((1, NF), jnp.float32),
            "gi": jnp.ones((1, NF), jnp.float32),
            "bi": jnp.zeros((1, NF), jnp.float32),
        } for _ in range(ND - 1)])
    return {"conv_blocks": conv_blocks, "aspins": aspins}


# ---------------------------------------------------------------------------
# UDnCn forward
# ---------------------------------------------------------------------------
def udncn_forward(params, x, k, m):
    # x, k: complex64 (N, C, H, W);  m: float32 (N, C, H, W)
    N, C, H, W = x.shape
    HW = H * W
    c_in_pad = _round_up(2 * C, 8)          # pad channel rows to a sublane tile
    masks = _tap_masks(H, W)

    for i in range(NC):
        xs = jnp.concatenate([jnp.real(x), jnp.imag(x)], axis=1)   # (N, 2C, H, W)
        xs = xs.reshape(N, 2 * C, HW).astype(jnp.float32)
        xs = jnp.pad(xs, ((0, 0), (0, c_in_pad - 2 * C), (0, 0)))
        out = cascade_block(xs, params["conv_blocks"][i], params["aspins"][i],
                            masks, H, W)                            # (N, 2C, HW)
        x = lax.complex(out[:, :C, :], out[:, C:, :]).reshape(N, C, H, W)
        # TODO(synk): FFT/IFFT have no Pallas TPU primitive; kept in plain JAX.
        new_k = jnp.fft.fft2(x, norm="ortho")
        # data consistency: trivial elementwise -> plain jnp, fused by XLA
        new_k = (1.0 - m) * new_k + m * k
        x = jnp.fft.ifft2(new_k, norm="ortho")
    return x


if __name__ == "__main__":
    key = jax.random.PRNGKey(0)
    kp, kx1, kx2, km = jax.random.split(key, 4)
    params = init_params(kp)

    N, C, H, W = 2, N_CH, 16, 16
    xr0 = jax.random.normal(kx1, (N, C, H, W), jnp.float32)
    xi0 = jax.random.normal(kx2, (N, C, H, W), jnp.float32)
    x_full = lax.complex(xr0, xi0)
    m = (jax.random.uniform(km, (N, C, H, W)) < 0.5).astype(jnp.float32)
    k = jnp.fft.fft2(x_full, norm="ortho") * m          # under-sampled k-space
    x_in = jnp.fft.ifft2(k, norm="ortho")               # zero-filled recon

    fwd = jax.jit(udncn_forward)
    out = fwd(params, x_in, k, m)
    jax.block_until_ready(out)
    assert out.shape == (N, C, H, W) and jnp.iscomplexobj(out)
    print("KERNEL_OK")
</pallas_src>

<mosaic_0001>
module attributes {stable_mosaic.version = 11 : i64} {
  func.func @kernel(%arg0: i32, %arg1: memref<1x8x256xf32, #tpu.memory_space<vmem>>, %arg2: memref<9x1x256xf32, #tpu.memory_space<vmem>>, %arg3: memref<32x72xf32, #tpu.memory_space<vmem>>, %arg4: memref<3x32x288xf32, #tpu.memory_space<vmem>>, %arg5: memref<2x288xf32, #tpu.memory_space<vmem>>, %arg6: memref<2x1xf32, #tpu.memory_space<vmem>>, %arg7: memref<4x32x1xf32, #tpu.memory_space<vmem>>, %arg8: memref<4x32x1xf32, #tpu.memory_space<vmem>>, %arg9: memref<1x2x256xf32, #tpu.memory_space<vmem>>) attributes {dimension_semantics = [#tpu.dimension_semantics<parallel>], iteration_bounds = array<i64: 2>, scalar_prefetch = 0 : i64, scratch_operands = 0 : i64, tpu.core_type = #tpu.core_type<tc>, window_params = [{transform_indices = @transform_0, window_bounds = array<i64: 1, 8, 256>}, {pipeline_mode = #tpu.pipeline_mode<synchronous>, transform_indices = @transform_1, window_bounds = array<i64: 9, 1, 256>}, {pipeline_mode = #tpu.pipeline_mode<synchronous>, transform_indices = @transform_2, window_bounds = array<i64: 32, 72>}, {pipeline_mode = #tpu.pipeline_mode<synchronous>, transform_indices = @transform_3, window_bounds = array<i64: 3, 32, 288>}, {pipeline_mode = #tpu.pipeline_mode<synchronous>, transform_indices = @transform_4, window_bounds = array<i64: 2, 288>}, {pipeline_mode = #tpu.pipeline_mode<synchronous>, transform_indices = @transform_5, window_bounds = array<i64: 2, 1>}, {pipeline_mode = #tpu.pipeline_mode<synchronous>, transform_indices = @transform_6, window_bounds = array<i64: 4, 32, 1>}, {pipeline_mode = #tpu.pipeline_mode<synchronous>, transform_indices = @transform_7, window_bounds = array<i64: 4, 32, 1>}, {transform_indices = @transform_8, window_bounds = array<i64: 1, 2, 256>}]} {
    %c0 = arith.constant 0 : index
    %c0_0 = arith.constant 0 : index
    %c0_1 = arith.constant 0 : index
    %0 = vector.load %arg2[%c0, %c0_0, %c0_1] : memref<9x1x256xf32, #tpu.memory_space<vmem>>, vector<1x1x256xf32>
    %1 = vector.shape_cast %0 : vector<1x1x256xf32> to vector<1x256xf32>
    %c1 = arith.constant 1 : index
    %c0_2 = arith.constant 0 : index
    %c0_3 = arith.constant 0 : index
    %2 = vector.load %arg2[%c1, %c0_2, %c0_3] : memref<9x1x256xf32, #tpu.memory_space<vmem>>, vector<1x1x256xf32>
    %3 = vector.shape_cast %2 : vector<1x1x256xf32> to vector<1x256xf32>
    %c2 = arith.constant 2 : index
    %c0_4 = arith.constant 0 : index
    %c0_5 = arith.constant 0 : index
    %4 = vector.load %arg2[%c2, %c0_4, %c0_5] : memref<9x1x256xf32, #tpu.memory_space<vmem>>, vector<1x1x256xf32>
    %5 = vector.shape_cast %4 : vector<1x1x256xf32> to vector<1x256xf32>
    %c3 = arith.constant 3 : index
    %c0_6 = arith.constant 0 : index
    %c0_7 = arith.constant 0 : index
    %6 = vector.load %arg2[%c3, %c0_6, %c0_7] : memref<9x1x256xf32, #tpu.memory_space<vmem>>, vector<1x1x256xf32>
    %7 = vector.shape_cast %6 : vector<1x1x256xf32> to vector<1x256xf32>
    %c5 = arith.constant 5 : index
    %c0_8 = arith.constant 0 : index
    %c0_9 = arith.constant 0 : index
    %8 = vector.load %arg2[%c5, %c0_8, %c0_9] : memref<9x1x256xf32, #tpu.memory_space<vmem>>, vector<1x1x256xf32>
    %9 = vector.shape_cast %8 : vector<1x1x256xf32> to vector<1x256xf32>
    %c6 = arith.constant 6 : index
    %c0_10 = arith.constant 0 : index
    %c0_11 = arith.constant 0 : index
    %10 = vector.load %arg2[%c6, %c0_10, %c0_11] : memref<9x1x256xf32, #tpu.memory_space<vmem>>, vector<1x1x256xf32>
    %11 = vector.shape_cast %10 : vector<1x1x256xf32> to vector<1x256xf32>
    %c7 = arith.constant 7 : index
    %c0_12 = arith.constant 0 : index
    %c0_13 = arith.constant 0 : index
    %12 = vector.load %arg2[%c7, %c0_12, %c0_13] : memref<9x1x256xf32, #tpu.memory_space<vmem>>, vector<1x1x256xf32>
    %13 = vector.shape_cast %12 : vector<1x1x256xf32> to vector<1x256xf32>
    %c8 = arith.constant 8 : index
    %c0_14 = arith.constant 0 : index
    %c0_15 = arith.constant 0 : index
    %14 = vector.load %arg2[%c8, %c0_14, %c0_15] : memref<9x1x256xf32, #tpu.memory_space<vmem>>, vector<1x1x256xf32>
    %15 = vector.shape_cast %14 : vector<1x1x256xf32> to vector<1x256xf32>
    %c0_16 = arith.constant 0 : index
    %c0_17 = arith.constant 0 : index
    %c0_18 = arith.constant 0 : index
    %16 = vector.load %arg1[%c0_16, %c0_17, %c0_18] : memref<1x8x256xf32, #tpu.memory_space<vmem>>, vector<1x8x256xf32>
    %17 = vector.shape_cast %16 : vector<1x8x256xf32> to vector<8x256xf32>
    %c0_19 = arith.constant 0 : index
    %c0_20 = arith.constant 0 : index
    %18 = vector.load %arg3[%c0_19, %c0_20] : memref<32x72xf32, #tpu.memory_space<vmem>>, vector<32x72xf32>
    %c17_i32 = arith.constant 17 : i32
    %19 = tpu.dynamic_rotate %17 by %c17_i32 dim 1 : vector<8x256xf32>, i32 -> vector<8x256xf32>
    %20 = vector.broadcast %1 : vector<1x256xf32> to vector<8x256xf32>
    %21 = arith.mulf %19, %20 : vector<8x256xf32>
    %c16_i32 = arith.constant 16 : i32
    %22 = tpu.dynamic_rotate %17 by %c16_i32 dim 1 : vector<8x256xf32>, i32 -> vector<8x256xf32>
    %23 = vector.broadcast %3 : vector<1x256xf32> to vector<8x256xf32>
    %24 = arith.mulf %22, %23 : vector<8x256xf32>
    %c15_i32 = arith.constant 15 : i32
    %25 = tpu.dynamic_rotate %17 by %c15_i32 dim 1 : vector<8x256xf32>, i32 -> vector<8x256xf32>
    %26 = vector.broadcast %5 : vector<1x256xf32> to vector<8x256xf32>
    %27 = arith.mulf %25, %26 : vector<8x256xf32>
    %c1_i32 = arith.constant 1 : i32
    %28 = tpu.dynamic_rotate %17 by %c1_i32 dim 1 : vector<8x256xf32>, i32 -> vector<8x256xf32>
    %29 = vector.broadcast %7 : vector<1x256xf32> to vector<8x256xf32>
    %30 = arith.mulf %28, %29 : vector<8x256xf32>
    %c255_i32 = arith.constant 255 : i32
    %31 = tpu.dynamic_rotate %17 by %c255_i32 dim 1 : vector<8x256xf32>, i32 -> vector<8x256xf32>
    %32 = vector.broadcast %9 : vector<1x256xf32> to vector<8x256xf32>
    %33 = arith.mulf %31, %32 : vector<8x256xf32>
    %c241_i32 = arith.constant 241 : i32
    %34 = tpu.dynamic_rotate %17 by %c241_i32 dim 1 : vector<8x256xf32>, i32 -> vector<8x256xf32>
    %35 = vector.broadcast %11 : vector<1x256xf32> to vector<8x256xf32>
    %36 = arith.mulf %34, %35 : vector<8x256xf32>
    %c240_i32 = arith.constant 240 : i32
    %37 = tpu.dynamic_rotate %17 by %c240_i32 dim 1 : vector<8x256xf32>, i32 -> vector<8x256xf32>
    %38 = vector.broadcast %13 : vector<1x256xf32> to vector<8x256xf32>
    %39 = arith.mulf %37, %38 : vector<8x256xf32>
    %c239_i32 = arith.constant 239 : i32
    %40 = tpu.dynamic_rotate %17 by %c239_i32 dim 1 : vector<8x256xf32>, i32 -> vector<8x256xf32>
    %41 = vector.broadcast %15 : vector<1x256xf32> to vector<8x256xf32>
    %42 = arith.mulf %40, %41 : vector<8x256xf32>
    %43 = tpu.concatenate %21, %24, %27, %30, %17, %33, %36, %39, %42 in 0 : vector<8x256xf32>, vector<8x256xf32>, vector<8x256xf32>, vector<8x256xf32>, vector<8x256xf32>, vector<8x256xf32>, vector<8x256xf32>, vector<8x256xf32>, vector<8x256xf32> -> vector<72x256xf32>
    %cst = arith.constant dense<0.000000e+00> : vector<32x256xf32>
    %44 = tpu.matmul %18, %43, %cst {dimension_numbers = #tpu.dot_dimension_numbers<[1], [0], [0], [1], [0, 0, 1, 1], [], []>} : vector<32x72xf32>, vector<72x256xf32>, vector<32x256xf32> -> vector<32x256xf32>
    %cst_21 = arith.constant dense<0.000000e+00> : vector<32xf32>
    %45 = vector.multi_reduction <add>, %44, %cst_21 [1] : vector<32x256xf32> to vector<32xf32>
    %46 = vector.shape_cast %45 : vector<32xf32> to vector<32x1xf32>
    %cst_22 = arith.constant 3.906250e-03 : f32
    %47 = vector.broadcast %cst_22 : f32 to vector<32x1xf32>
    %48 = arith.mulf %46, %47 : vector<32x1xf32>
    %49 = arith.mulf %44, %44 : vector<32x256xf32>
    %cst_23 = arith.constant dense<0.000000e+00> : vector<32xf32>
    %50 = vector.multi_reduction <add>, %49, %cst_23 [1] : vector<32x256xf32> to vector<32xf32>
    %51 = vector.shape_cast %50 : vector<32xf32> to vector<32x1xf32>
    %cst_24 = arith.constant 3.906250e-03 : f32
    %52 = vector.broadcast %cst_24 : f32 to vector<32x1xf32>
    %53 = arith.mulf %51, %52 : vector<32x1xf32>
    %54 = arith.mulf %48, %48 : vector<32x1xf32>
    %55 = arith.subf %53, %54 : vector<32x1xf32>
    %56 = vector.broadcast %48 : vector<32x1xf32> to vector<32x256xf32>
    %57 = arith.subf %44, %56 : vector<32x256xf32>
    %cst_25 = arith.constant 9.99999974E-6 : f32
    %58 = vector.broadcast %cst_25 : f32 to vector<32x1xf32>
    %59 = arith.addf %55, %58 : vector<32x1xf32>
    %60 = math.rsqrt %59 : vector<32x1xf32>
    %61 = vector.broadcast %60 : vector<32x1xf32> to vector<32x256xf32>
    %62 = arith.mulf %57, %61 : vector<32x256xf32>
    %c0_26 = arith.constant 0 : index
    %c0_27 = arith.constant 0 : index
    %c0_28 = arith.constant 0 : index
    %63 = vector.load %arg7[%c0_26, %c0_27, %c0_28] : memref<4x32x1xf32, #tpu.memory_space<vmem>>, vector<1x32x1xf32>
    %64 = vector.shape_cast %63 : vector<1x32x1xf32> to vector<32x1xf32>
    %65 = vector.broadcast %64 : vector<32x1xf32> to vector<32x256xf32>
    %66 = arith.mulf %62, %65 : vector<32x256xf32>
    %c0_29 = arith.constant 0 : index
    %c0_30 = arith.constant 0 : index
    %c0_31 = arith.constant 0 : index
    %67 = vector.load %arg8[%c0_29, %c0_30, %c0_31] : memref<4x32x1xf32, #tpu.memory_space<vmem>>, vector<1x32x1xf32>
    %68 = vector.shape_cast %67 : vector<1x32x1xf32> to vector<32x1xf32>
    %69 = vector.broadcast %68 : vector<32x1xf32> to vector<32x256xf32>
    %70 = arith.addf %66, %69 : vector<32x256xf32>
    %cst_32 = arith.constant 0.000000e+00 : f32
    %71 = vector.broadcast %cst_32 : f32 to vector<32x256xf32>
    %72 = arith.cmpf oge, %70, %71 : vector<32x256xf32>
    %cst_33 = arith.constant 0.00999999977 : f32
    %73 = vector.broadcast %cst_33 : f32 to vector<32x256xf32>
    %74 = arith.mulf %73, %70 : vector<32x256xf32>
    %75 = arith.select %72, %70, %74 : vector<32x256xi1>, vector<32x256xf32>
    %c0_34 = arith.constant 0 : index
    %c0_35 = arith.constant 0 : index
    %c0_36 = arith.constant 0 : index
    %76 = vector.load %arg4[%c0_34, %c0_35, %c0_36] : memref<3x32x288xf32, #tpu.memory_space<vmem>>, vector<1x32x288xf32>
    %77 = vector.shape_cast %76 : vector<1x32x288xf32> to vector<32x288xf32>
    %c17_i32_37 = arith.constant 17 : i32
    %78 = tpu.dynamic_rotate %75 by %c17_i32_37 dim 1 : vector<32x256xf32>, i32 -> vector<32x256xf32>
    %79 = vector.broadcast %1 : vector<1x256xf32> to vector<32x256xf32>
    %80 = arith.mulf %78, %79 : vector<32x256xf32>
    %c16_i32_38 = arith.constant 16 : i32
    %81 = tpu.dynamic_rotate %75 by %c16_i32_38 dim 1 : vector<32x256xf32>, i32 -> vector<32x256xf32>
    %82 = vector.broadcast %3 : vector<1x256xf32> to vector<32x256xf32>
    %83 = arith.mulf %81, %82 : vector<32x256xf32>
    %c15_i32_39 = arith.constant 15 : i32
    %84 = tpu.dynamic_rotate %75 by %c15_i32_39 dim 1 : vector<32x256xf32>, i32 -> vector<32x256xf32>
    %85 = vector.broadcast %5 : vector<1x256xf32> to vector<32x256xf32>
    %86 = arith.mulf %84, %85 : vector<32x256xf32>
    %c1_i32_40 = arith.constant 1 : i32
    %87 = tpu.dynamic_rotate %75 by %c1_i32_40 dim 1 : vector<32x256xf32>, i32 -> vector<32x256xf32>
    %88 = vector.broadcast %7 : vector<1x256xf32> to vector<32x256xf32>
    %89 = arith.mulf %87, %88 : vector<32x256xf32>
    %c255_i32_41 = arith.constant 255 : i32
    %90 = tpu.dynamic_rotate %75 by %c255_i32_41 dim 1 : vector<32x256xf32>, i32 -> vector<32x256xf32>
    %91 = vector.broadcast %9 : vector<1x256xf32> to vector<32x256xf32>
    %92 = arith.mulf %90, %91 : vector<32x256xf32>
    %c241_i32_42 = arith.constant 241 : i32
    %93 = tpu.dynamic_rotate %75 by %c241_i32_42 dim 1 : vector<32x256xf32>, i32 -> vector<32x256xf32>
    %94 = vector.broadcast %11 : vector<1x256xf32> to vector<32x256xf32>
    %95 = arith.mulf %93, %94 : vector<32x256xf32>
    %c240_i32_43 = arith.constant 240 : i32
    %96 = tpu.dynamic_rotate %75 by %c240_i32_43 dim 1 : vector<32x256xf32>, i32 -> vector<32x256xf32>
    %97 = vector.broadcast %13 : vector<1x256xf32> to vector<32x256xf32>
    %98 = arith.mulf %96, %97 : vector<32x256xf32>
    %c239_i32_44 = arith.constant 239 : i32
    %99 = tpu.dynamic_rotate %75 by %c239_i32_44 dim 1 : vector<32x256xf32>, i32 -> vector<32x256xf32>
    %100 = vector.broadcast %15 : vector<1x256xf32> to vector<32x256xf32>
    %101 = arith.mulf %99, %100 : vector<32x256xf32>
    %102 = tpu.concatenate %80, %83, %86, %89, %75, %92, %95, %98, %101 in 0 : vector<32x256xf32>, vector<32x256xf32>, vector<32x256xf32>, vector<32x256xf32>, vector<32x256xf32>, vector<32x256xf32>, vector<32x256xf32>, vector<32x256xf32>, vector<32x256xf32> -> vector<288x256xf32>
    %cst_45 = arith.constant dense<0.000000e+00> : vector<32x256xf32>
    %103 = tpu.matmul %77, %102, %cst_45 {dimension_numbers = #tpu.dot_dimension_numbers<[1], [0], [0], [1], [0, 0, 1, 1], [], []>} : vector<32x288xf32>, vector<288x256xf32>, vector<32x256xf32> -> vector<32x256xf32>
    %cst_46 = arith.constant dense<0.000000e+00> : vector<32xf32>
    %104 = vector.multi_reduction <add>, %103, %cst_46 [1] : vector<32x256xf32> to vector<32xf32>
    %105 = vector.shape_cast %104 : vector<32xf32> to vector<32x1xf32>
    %cst_47 = arith.constant 3.906250e-03 : f32
    %106 = vector.broadcast %cst_47 : f32 to vector<32x1xf32>
    %107 = arith.mulf %105, %106 : vector<32x1xf32>
    %108 = arith.mulf %103, %103 : vector<32x256xf32>
    %cst_48 = arith.constant dense<0.000000e+00> : vector<32xf32>
    %109 = vector.multi_reduction <add>, %108, %cst_48 [1] : vector<32x256xf32> to vector<32xf32>
    %110 = vector.shape_cast %109 : vector<32xf32> to vector<32x1xf32>
    %cst_49 = arith.constant 3.906250e-03 : f32
    %111 = vector.broadcast %cst_49 : f32 to vector<32x1xf32>
    %112 = arith.mulf %110, %111 : vector<32x1xf32>
    %113 = arith.mulf %107, %107 : vector<32x1xf32>
    %114 = arith.subf %112, %113 : vector<32x1xf32>
    %115 = vector.broadcast %107 : vector<32x1xf32> to vector<32x256xf32>
    %116 = arith.subf %103, %115 : vector<32x256xf32>
    %cst_50 = arith.constant 9.99999974E-6 : f32
    %117 = vector.broadcast %cst_50 : f32 to vector<32x1xf32>
    %118 = arith.addf %114, %117 : vector<32x1xf32>
    %119 = math.rsqrt %118 : vector<32x1xf32>
    %120 = vector.broadcast %119 : vector<32x1xf32> to vector<32x256xf32>
    %121 = arith.mulf %116, %120 : vector<32x256xf32>
    %c1_51 = arith.constant 1 : index
    %c0_52 = arith.constant 0 : index
    %c0_53 = arith.constant 0 : index
    %122 = vector.load %arg7[%c1_51, %c0_52, %c0_53] : memref<4x32x1xf32, #tpu.memory_space<vmem>>, vector<1x32x1xf32>
    %123 = vector.shape_cast %122 : vector<1x32x1xf32> to vector<32x1xf32>
    %124 = vector.broadcast %123 : vector<32x1xf32> to vector<32x256xf32>
    %125 = arith.mulf %121, %124 : vector<32x256xf32>
    %c1_54 = arith.constant 1 : index
    %c0_55 = arith.constant 0 : index
    %c0_56 = arith.constant 0 : index
    %126 = vector.load %arg8[%c1_54, %c0_55, %c0_56] : memref<4x32x1xf32, #tpu.memory_space<vmem>>, vector<1x32x1xf32>
    %127 = vector.shape_cast %126 : vector<1x32x1xf32> to vector<32x1xf32>
    %128 = vector.broadcast %127 : vector<32x1xf32> to vector<32x256xf32>
    %129 = arith.addf %125, %128 : vector<32x256xf32>
    %cst_57 = arith.constant 0.000000e+00 : f32
    %130 = vector.broadcast %cst_57 : f32 to vector<32x256xf32>
    %131 = arith.cmpf oge, %129, %130 : vector<32x256xf32>
    %cst_58 = arith.constant 0.00999999977 : f32
    %132 = vector.broadcast %cst_58 : f32 to vector<32x256xf32>
    %133 = arith.mulf %132, %129 : vector<32x256xf32>
    %134 = arith.select %131, %129, %133 : vector<32x256xi1>, vector<32x256xf32>
    %c1_59 = arith.constant 1 : index
    %c0_60 = arith.constant 0 : index
    %c0_61 = arith.constant 0 : index
    %135 = vector.load %arg4[%c1_59, %c0_60, %c0_61] : memref<3x32x288xf32, #tpu.memory_space<vmem>>, vector<1x32x288xf32>
    %136 = vector.shape_cast %135 : vector<1x32x288xf32> to vector<32x288xf32>
    %c17_i32_62 = arith.constant 17 : i32
    %137 = tpu.dynamic_rotate %134 by %c17_i32_62 dim 1 : vector<32x256xf32>, i32 -> vector<32x256xf32>
    %138 = vector.broadcast %1 : vector<1x256xf32> to vector<32x256xf32>
    %139 = arith.mulf %137, %138 : vector<32x256xf32>
    %c16_i32_63 = arith.constant 16 : i32
    %140 = tpu.dynamic_rotate %134 by %c16_i32_63 dim 1 : vector<32x256xf32>, i32 -> vector<32x256xf32>
    %141 = vector.broadcast %3 : vector<1x256xf32> to vector<32x256xf32>
    %142 = arith.mulf %140, %141 : vector<32x256xf32>
    %c15_i32_64 = arith.constant 15 : i32
    %143 = tpu.dynamic_rotate %134 by %c15_i32_64 dim 1 : vector<32x256xf32>, i32 -> vector<32x256xf32>
    %144 = vector.broadcast %5 : vector<1x256xf32> to vector<32x256xf32>
    %145 = arith.mulf %143, %144 : vector<32x256xf32>
    %c1_i32_65 = arith.constant 1 : i32
    %146 = tpu.dynamic_rotate %134 by %c1_i32_65 dim 1 : vector<32x256xf32>, i32 -> vector<32x256xf32>
    %147 = vector.broadcast %7 : vector<1x256xf32> to vector<32x256xf32>
    %148 = arith.mulf %146, %147 : vector<32x256xf32>
    %c255_i32_66 = arith.constant 255 : i32
    %149 = tpu.dynamic_rotate %134 by %c255_i32_66 dim 1 : vector<32x256xf32>, i32 -> vector<32x256xf32>
    %150 = vector.broadcast %9 : vector<1x256xf32> to vector<32x256xf32>
    %151 = arith.mulf %149, %150 : vector<32x256xf32>
    %c241_i32_67 = arith.constant 241 : i32
    %152 = tpu.dynamic_rotate %134 by %c241_i32_67 dim 1 : vector<32x256xf32>, i32 -> vector<32x256xf32>
    %153 = vector.broadcast %11 : vector<1x256xf32> to vector<32x256xf32>
    %154 = arith.mulf %152, %153 : vector<32x256xf32>
    %c240_i32_68 = arith.constant 240 : i32
    %155 = tpu.dynamic_rotate %134 by %c240_i32_68 dim 1 : vector<32x256xf32>, i32 -> vector<32x256xf32>
    %156 = vector.broadcast %13 : vector<1x256xf32> to vector<32x256xf32>
    %157 = arith.mulf %155, %156 : vector<32x256xf32>
    %c239_i32_69 = arith.constant 239 : i32
    %158 = tpu.dynamic_rotate %134 by %c239_i32_69 dim 1 : vector<32x256xf32>, i32 -> vector<32x256xf32>
    %159 = vector.broadcast %15 : vector<1x256xf32> to vector<32x256xf32>
    %160 = arith.mulf %158, %159 : vector<32x256xf32>
    %161 = tpu.concatenate %139, %142, %145, %148, %134, %151, %154, %157, %160 in 0 : vector<32x256xf32>, vector<32x256xf32>, vector<32x256xf32>, vector<32x256xf32>, vector<32x256xf32>, vector<32x256xf32>, vector<32x256xf32>, vector<32x256xf32>, vector<32x256xf32> -> vector<288x256xf32>
    %cst_70 = arith.constant dense<0.000000e+00> : vector<32x256xf32>
    %162 = tpu.matmul %136, %161, %cst_70 {dimension_numbers = #tpu.dot_dimension_numbers<[1], [0], [0], [1], [0, 0, 1, 1], [], []>} : vector<32x288xf32>, vector<288x256xf32>, vector<32x256xf32> -> vector<32x256xf32>
    %cst_71 = arith.constant dense<0.000000e+00> : vector<32xf32>
    %163 = vector.multi_reduction <add>, %162, %cst_71 [1] : vector<32x256xf32> to vector<32xf32>
    %164 = vector.shape_cast %163 : vector<32xf32> to vector<32x1xf32>
    %cst_72 = arith.constant 3.906250e-03 : f32
    %165 = vector.broadcast %cst_72 : f32 to vector<32x1xf32>
    %166 = arith.mulf %164, %165 : vector<32x1xf32>
    %167 = arith.mulf %162, %162 : vector<32x256xf32>
    %cst_73 = arith.constant dense<0.000000e+00> : vector<32xf32>
    %168 = vector.multi_reduction <add>, %167, %cst_73 [1] : vector<32x256xf32> to vector<32xf32>
    %169 = vector.shape_cast %168 : vector<32xf32> to vector<32x1xf32>
    %cst_74 = arith.constant 3.906250e-03 : f32
    %170 = vector.broadcast %cst_74 : f32 to vector<32x1xf32>
    %171 = arith.mulf %169, %170 : vector<32x1xf32>
    %172 = arith.mulf %166, %166 : vector<32x1xf32>
    %173 = arith.subf %171, %172 : vector<32x1xf32>
    %174 = vector.broadcast %166 : vector<32x1xf32> to vector<32x256xf32>
    %175 = arith.subf %162, %174 : vector<32x256xf32>
    %cst_75 = arith.constant 9.99999974E-6 : f32
    %176 = vector.broadcast %cst_75 : f32 to vector<32x1xf32>
    %177 = arith.addf %173, %176 : vector<32x1xf32>
    %178 = math.rsqrt %177 : vector<32x1xf32>
    %179 = vector.broadcast %178 : vector<32x1xf32> to vector<32x256xf32>
    %180 = arith.mulf %175, %179 : vector<32x256xf32>
    %c2_76 = arith.constant 2 : index
    %c0_77 = arith.constant 0 : index
    %c0_78 = arith.constant 0 : index
    %181 = vector.load %arg7[%c2_76, %c0_77, %c0_78] : memref<4x32x1xf32, #tpu.memory_space<vmem>>, vector<1x32x1xf32>
    %182 = vector.shape_cast %181 : vector<1x32x1xf32> to vector<32x1xf32>
    %183 = vector.broadcast %182 : vector<32x1xf32> to vector<32x256xf32>
    %184 = arith.mulf %180, %183 : vector<32x256xf32>
    %c2_79 = arith.constant 2 : index
    %c0_80 = arith.constant 0 : index
    %c0_81 = arith.constant 0 : index
    %185 = vector.load %arg8[%c2_79, %c0_80, %c0_81] : memref<4x32x1xf32, #tpu.memory_space<vmem>>, vector<1x32x1xf32>
    %186 = vector.shape_cast %185 : vector<1x32x1xf32> to vector<32x1xf32>
    %187 = vector.broadcast %186 : vector<32x1xf32> to vector<32x256xf32>
    %188 = arith.addf %184, %187 : vector<32x256xf32>
    %cst_82 = arith.constant 0.000000e+00 : f32
    %189 = vector.broadcast %cst_82 : f32 to vector<32x256xf32>
    %190 = arith.cmpf oge, %188, %189 : vector<32x256xf32>
    %cst_83 = arith.constant 0.00999999977 : f32
    %191 = vector.broadcast %cst_83 : f32 to vector<32x256xf32>
    %192 = arith.mulf %191, %188 : vector<32x256xf32>
    %193 = arith.select %190, %188, %192 : vector<32x256xi1>, vector<32x256xf32>
    %c2_84 = arith.constant 2 : index
    %c0_85 = arith.constant 0 : index
    %c0_86 = arith.constant 0 : index
    %194 = vector.load %arg4[%c2_84, %c0_85, %c0_86] : memref<3x32x288xf32, #tpu.memory_space<vmem>>, vector<1x32x288xf32>
    %195 = vector.shape_cast %194 : vector<1x32x288xf32> to vector<32x288xf32>
    %c17_i32_87 = arith.constant 17 : i32
    %196 = tpu.dynamic_rotate %193 by %c17_i32_87 dim 1 : vector<32x256xf32>, i32 -> vector<32x256xf32>
    %197 = vector.broadcast %1 : vector<1x256xf32> to vector<32x256xf32>
    %198 = arith.mulf %196, %197 : vector<32x256xf32>
    %c16_i32_88 = arith.constant 16 : i32
    %199 = tpu.dynamic_rotate %193 by %c16_i32_88 dim 1 : vector<32x256xf32>, i32 -> vector<32x256xf32>
    %200 = vector.broadcast %3 : vector<1x256xf32> to vector<32x256xf32>
    %201 = arith.mulf %199, %200 : vector<32x256xf32>
    %c15_i32_89 = arith.constant 15 : i32
    %202 = tpu.dynamic_rotate %193 by %c15_i32_89 dim 1 : vector<32x256xf32>, i32 -> vector<32x256xf32>
    %203 = vector.broadcast %5 : vector<1x256xf32> to vector<32x256xf32>
    %204 = arith.mulf %202, %203 : vector<32x256xf32>
    %c1_i32_90 = arith.constant 1 : i32
    %205 = tpu.dynamic_rotate %193 by %c1_i32_90 dim 1 : vector<32x256xf32>, i32 -> vector<32x256xf32>
    %206 = vector.broadcast %7 : vector<1x256xf32> to vector<32x256xf32>
    %207 = arith.mulf %205, %206 : vector<32x256xf32>
    %c255_i32_91 = arith.constant 255 : i32
    %208 = tpu.dynamic_rotate %193 by %c255_i32_91 dim 1 : vector<32x256xf32>, i32 -> vector<32x256xf32>
    %209 = vector.broadcast %9 : vector<1x256xf32> to vector<32x256xf32>
    %210 = arith.mulf %208, %209 : vector<32x256xf32>
    %c241_i32_92 = arith.constant 241 : i32
    %211 = tpu.dynamic_rotate %193 by %c241_i32_92 dim 1 : vector<32x256xf32>, i32 -> vector<32x256xf32>
    %212 = vector.broadcast %11 : vector<1x256xf32> to vector<32x256xf32>
    %213 = arith.mulf %211, %212 : vector<32x256xf32>
    %c240_i32_93 = arith.constant 240 : i32
    %214 = tpu.dynamic_rotate %193 by %c240_i32_93 dim 1 : vector<32x256xf32>, i32 -> vector<32x256xf32>
    %215 = vector.broadcast %13 : vector<1x256xf32> to vector<32x256xf32>
    %216 = arith.mulf %214, %215 : vector<32x256xf32>
    %c239_i32_94 = arith.constant 239 : i32
    %217 = tpu.dynamic_rotate %193 by %c239_i32_94 dim 1 : vector<32x256xf32>, i32 -> vector<32x256xf32>
    %218 = vector.broadcast %15 : vector<1x256xf32> to vector<32x256xf32>
    %219 = arith.mulf %217, %218 : vector<32x256xf32>
    %220 = tpu.concatenate %198, %201, %204, %207, %193, %210, %213, %216, %219 in 0 : vector<32x256xf32>, vector<32x256xf32>, vector<32x256xf32>, vector<32x256xf32>, vector<32x256xf32>, vector<32x256xf32>, vector<32x256xf32>, vector<32x256xf32>, vector<32x256xf32> -> vector<288x256xf32>
    %cst_95 = arith.constant dense<0.000000e+00> : vector<32x256xf32>
    %221 = tpu.matmul %195, %220, %cst_95 {dimension_numbers = #tpu.dot_dimension_numbers<[1], [0], [0], [1], [0, 0, 1, 1], [], []>} : vector<32x288xf32>, vector<288x256xf32>, vector<32x256xf32> -> vector<32x256xf32>
    %cst_96 = arith.constant dense<0.000000e+00> : vector<32xf32>
    %222 = vector.multi_reduction <add>, %221, %cst_96 [1] : vector<32x256xf32> to vector<32xf32>
    %223 = vector.shape_cast %222 : vector<32xf32> to vector<32x1xf32>
    %cst_97 = arith.constant 3.906250e-03 : f32
    %224 = vector.broadcast %cst_97 : f32 to vector<32x1xf32>
    %225 = arith.mulf %223, %224 : vector<32x1xf32>
    %226 = arith.mulf %221, %221 : vector<32x256xf32>
    %cst_98 = arith.constant dense<0.000000e+00> : vector<32xf32>
    %227 = vector.multi_reduction <add>, %226, %cst_98 [1] : vector<32x256xf32> to vector<32xf32>
    %228 = vector.shape_cast %227 : vector<32xf32> to vector<32x1xf32>
    %cst_99 = arith.constant 3.906250e-03 : f32
    %229 = vector.broadcast %cst_99 : f32 to vector<32x1xf32>
    %230 = arith.mulf %228, %229 : vector<32x1xf32>
    %231 = arith.mulf %225, %225 : vector<32x1xf32>
    %232 = arith.subf %230, %231 : vector<32x1xf32>
    %233 = vector.broadcast %225 : vector<32x1xf32> to vector<32x256xf32>
    %234 = arith.subf %221, %233 : vector<32x256xf32>
    %cst_100 = arith.constant 9.99999974E-6 : f32
    %235 = vector.broadcast %cst_100 : f32 to vector<32x1xf32>
    %236 = arith.addf %232, %235 : vector<32x1xf32>
    %237 = math.rsqrt %236 : vector<32x1xf32>
    %238 = vector.broadcast %237 : vector<32x1xf32> to vector<32x256xf32>
    %239 = arith.mulf %234, %238 : vector<32x256xf32>
    %c3_101 = arith.constant 3 : index
    %c0_102 = arith.constant 0 : index
    %c0_103 = arith.constant 0 : index
    %240 = vector.load %arg7[%c3_101, %c0_102, %c0_103] : memref<4x32x1xf32, #tpu.memory_space<vmem>>, vector<1x32x1xf32>
    %241 = vector.shape_cast %240 : vector<1x32x1xf32> to vector<32x1xf32>
    %242 = vector.broadcast %241 : vector<32x1xf32> to vector<32x256xf32>
    %243 = arith.mulf %239, %242 : vector<32x256xf32>
    %c3_104 = arith.constant 3 : index
    %c0_105 = arith.constant 0 : index
    %c0_106 = arith.constant 0 : index
    %244 = vector.load %arg8[%c3_104, %c0_105, %c0_106] : memref<4x32x1xf32, #tpu.memory_space<vmem>>, vector<1x32x1xf32>
    %245 = vector.shape_cast %244 : vector<1x32x1xf32> to vector<32x1xf32>
    %246 = vector.broadcast %245 : vector<32x1xf32> to vector<32x256xf32>
    %247 = arith.addf %243, %246 : vector<32x256xf32>
    %cst_107 = arith.constant 0.000000e+00 : f32
    %248 = vector.broadcast %cst_107 : f32 to vector<32x256xf32>
    %249 = arith.cmpf oge, %247, %248 : vector<32x256xf32>
    %cst_108 = arith.constant 0.00999999977 : f32
    %250 = vector.broadcast %cst_108 : f32 to vector<32x256xf32>
    %251 = arith.mulf %250, %247 : vector<32x256xf32>
    %252 = arith.select %249, %247, %251 : vector<32x256xi1>, vector<32x256xf32>
    %c0_109 = arith.constant 0 : index
    %c0_110 = arith.constant 0 : index
    %253 = vector.load %arg5[%c0_109, %c0_110] : memref<2x288xf32, #tpu.memory_space<vmem>>, vector<2x288xf32>
    %c17_i32_111 = arith.constant 17 : i32
    %254 = tpu.dynamic_rotate %252 by %c17_i32_111 dim 1 : vector<32x256xf32>, i32 -> vector<32x256xf32>
    %255 = vector.broadcast %1 : vector<1x256xf32> to vector<32x256xf32>
    %256 = arith.mulf %254, %255 : vector<32x256xf32>
    %c16_i32_112 = arith.constant 16 : i32
    %257 = tpu.dynamic_rotate %252 by %c16_i32_112 dim 1 : vector<32x256xf32>, i32 -> vector<32x256xf32>
    %258 = vector.broadcast %3 : vector<1x256xf32> to vector<32x256xf32>
    %259 = arith.mulf %257, %258 : vector<32x256xf32>
    %c15_i32_113 = arith.constant 15 : i32
    %260 = tpu.dynamic_rotate %252 by %c15_i32_113 dim 1 : vector<32x256xf32>, i32 -> vector<32x256xf32>
    %261 = vector.broadcast %5 : vector<1x256xf32> to vector<32x256xf32>
    %262 = arith.mulf %260, %261 : vector<32x256xf32>
    %c1_i32_114 = arith.constant 1 : i32
    %263 = tpu.dynamic_rotate %252 by %c1_i32_114 dim 1 : vector<32x256xf32>, i32 -> vector<32x256xf32>
    %264 = vector.broadcast %7 : vector<1x256xf32> to vector<32x256xf32>
    %265 = arith.mulf %263, %264 : vector<32x256xf32>
    %c255_i32_115 = arith.constant 255 : i32
    %266 = tpu.dynamic_rotate %252 by %c255_i32_115 dim 1 : vector<32x256xf32>, i32 -> vector<32x256xf32>
    %267 = vector.broadcast %9 : vector<1x256xf32> to vector<32x256xf32>
    %268 = arith.mulf %266, %267 : vector<32x256xf32>
    %c241_i32_116 = arith.constant 241 : i32
    %269 = tpu.dynamic_rotate %252 by %c241_i32_116 dim 1 : vector<32x256xf32>, i32 -> vector<32x256xf32>
    %270 = vector.broadcast %11 : vector<1x256xf32> to vector<32x256xf32>
    %271 = arith.mulf %269, %270 : vector<32x256xf32>
    %c240_i32_117 = arith.constant 240 : i32
    %272 = tpu.dynamic_rotate %252 by %c240_i32_117 dim 1 : vector<32x256xf32>, i32 -> vector<32x256xf32>
    %273 = vector.broadcast %13 : vector<1x256xf32> to vector<32x256xf32>
    %274 = arith.mulf %272, %273 : vector<32x256xf32>
    %c239_i32_118 = arith.constant 239 : i32
    %275 = tpu.dynamic_rotate %252 by %c239_i32_118 dim 1 : vector<32x256xf32>, i32 -> vector<32x256xf32>
    %276 = vector.broadcast %15 : vector<1x256xf32> to vector<32x256xf32>
    %277 = arith.mulf %275, %276 : vector<32x256xf32>
    %278 = tpu.concatenate %256, %259, %262, %265, %252, %268, %271, %274, %277 in 0 : vector<32x256xf32>, vector<32x256xf32>, vector<32x256xf32>, vector<32x256xf32>, vector<32x256xf32>, vector<32x256xf32>, vector<32x256xf32>, vector<32x256xf32>, vector<32x256xf32> -> vector<288x256xf32>
    %cst_119 = arith.constant dense<0.000000e+00> : vector<2x256xf32>
    %279 = tpu.matmul %253, %278, %cst_119 {dimension_numbers = #tpu.dot_dimension_numbers<[1], [0], [0], [1], [0, 0, 1, 1], [], []>} : vector<2x288xf32>, vector<288x256xf32>, vector<2x256xf32> -> vector<2x256xf32>
    %c0_120 = arith.constant 0 : index
    %c0_121 = arith.constant 0 : index
    %280 = vector.load %arg6[%c0_120, %c0_121] : memref<2x1xf32, #tpu.memory_space<vmem>>, vector<2x1xf32>
    %281 = vector.broadcast %280 : vector<2x1xf32> to vector<2x256xf32>
    %282 = arith.addf %279, %281 : vector<2x256xf32>
    %c0_122 = arith.constant 0 : index
    %c0_123 = arith.constant 0 : index
    %c0_124 = arith.constant 0 : index
    %283 = vector.load %arg1[%c0_122, %c0_123, %c0_124] : memref<1x8x256xf32, #tpu.memory_space<vmem>>, vector<1x2x256xf32>
    %284 = vector.shape_cast %283 : vector<1x2x256xf32> to vector<2x256xf32>
    %285 = arith.addf %284, %282 : vector<2x256xf32>
    %c0_125 = arith.constant 0 : index
    %c0_126 = arith.constant 0 : index
    %c0_127 = arith.constant 0 : index
    %286 = vector.load %arg9[%c0_125, %c0_126, %c0_127] : memref<1x2x256xf32, #tpu.memory_space<vmem>>, vector<1x2x256xf32>
    %287 = vector.shape_cast %286 : vector<1x2x256xf32> to vector<2x256xf32>
    %288 = vector.shape_cast %285 : vector<2x256xf32> to vector<1x2x256xf32>
    tpu.vector_store %arg9[%c0_125, %c0_126, %c0_127], %288 {strides = array<i32>} : memref<1x2x256xf32, #tpu.memory_space<vmem>>, vector<1x2x256xf32>,
    return
  }
  func.func @transform_0(%arg0: i32) -> (i32, i32, i32) {
    %c0_i32 = arith.constant 0 : i32
    %c0_i32_0 = arith.constant 0 : i32
    %c0_i32_1 = arith.constant 0 : i32
    return %arg0, %c0_i32, %c0_i32_0 : i32, i32, i32
  }
  func.func @transform_1(%arg0: i32) -> (i32, i32, i32) {
    %c0_i32 = arith.constant 0 : i32
    %c0_i32_0 = arith.constant 0 : i32
    %c0_i32_1 = arith.constant 0 : i32
    %c0_i32_2 = arith.constant 0 : i32
    return %c0_i32, %c0_i32_0, %c0_i32_1 : i32, i32, i32
  }
  func.func @transform_2(%arg0: i32) -> (i32, i32) {
    %c0_i32 = arith.constant 0 : i32
    %c0_i32_0 = arith.constant 0 : i32
    %c0_i32_1 = arith.constant 0 : i32
    return %c0_i32, %c0_i32_0 : i32, i32
  }
  func.func @transform_3(%arg0: i32) -> (i32, i32, i32) {
    %c0_i32 = arith.constant 0 : i32
    %c0_i32_0 = arith.constant 0 : i32
    %c0_i32_1 = arith.constant 0 : i32
    %c0_i32_2 = arith.constant 0 : i32
    return %c0_i32, %c0_i32_0, %c0_i32_1 : i32, i32, i32
  }
  func.func @transform_4(%arg0: i32) -> (i32, i32) {
    %c0_i32 = arith.constant 0 : i32
    %c0_i32_0 = arith.constant 0 : i32
    %c0_i32_1 = arith.constant 0 : i32
    return %c0_i32, %c0_i32_0 : i32, i32
  }
  func.func @transform_5(%arg0: i32) -> (i32, i32) {
    %c0_i32 = arith.constant 0 : i32
    %c0_i32_0 = arith.constant 0 : i32
    %c0_i32_1 = arith.constant 0 : i32
    return %c0_i32, %c0_i32_0 : i32, i32
  }
  func.func @transform_6(%arg0: i32) -> (i32, i32, i32) {
    %c0_i32 = arith.constant 0 : i32
    %c0_i32_0 = arith.constant 0 : i32
    %c0_i32_1 = arith.constant 0 : i32
    %c0_i32_2 = arith.constant 0 : i32
    return %c0_i32, %c0_i32_0, %c0_i32_1 : i32, i32, i32
  }
  func.func @transform_7(%arg0: i32) -> (i32, i32, i32) {
    %c0_i32 = arith.constant 0 : i32
    %c0_i32_0 = arith.constant 0 : i32
    %c0_i32_1 = arith.constant 0 : i32
    %c0_i32_2 = arith.constant 0 : i32
    return %c0_i32, %c0_i32_0, %c0_i32_1 : i32, i32, i32
  }
  func.func @transform_8(%arg0: i32) -> (i32, i32, i32) {
    %c0_i32 = arith.constant 0 : i32
    %c0_i32_0 = arith.constant 0 : i32
    %c0_i32_1 = arith.constant 0 : i32
    return %arg0, %c0_i32, %c0_i32_0 : i32, i32, i32
  }
}

</mosaic_0001>

<llo_original>
// kernel: custom-call
$region0: #{custom-call}
  %s0 = inlined_call_operand.hbm [shape: c64[2,1,16,16], index: 0, kind: input, shape index: {}]
  %s1 = inlined_call_operand.vmem [shape: f32[2,1,16,16], index: 1, kind: output, shape index: {}]
  $region1: #{custom-call} parent=0
    #allocation0 [shape = 's32[1]{0}', space=sflag, size = 0x4, scoped, tag = 'scoped memory for custom-call']
    %2 = vsyncpa [#allocation0], 0
    %s3 = sshll.u32 %s1, 4
    %s4 = int_to_ptr.vmem [resolvable:$true] %s3
    %6 = dma.hbm_to_vmem [thread:$0]  %s0, 512, %s4, [#allocation0]
    %7 = dma.done [#allocation0], 512
    %8 = vsyncpa [#allocation0], 1

// kernel: custom-call.1
$region0: #{custom-call.1}
  %s0 = inlined_call_operand.hbm [shape: c64[2,1,16,16], index: 0, kind: input, shape index: {}]
  %s1 = inlined_call_operand.vmem [shape: f32[2,1,16,16], index: 1, kind: output, shape index: {}]
  %s2 = scalar_lea.hbm %s0, 512
  $region1: #{custom-call.1} parent=0
    #allocation0 [shape = 's32[1]{0}', space=sflag, size = 0x4, scoped, tag = 'scoped memory for custom-call.1']
    %3 = vsyncpa [#allocation0], 0
    %s4 = sshll.u32 %s1, 4
    %s5 = int_to_ptr.vmem [resolvable:$true] %s4
    %7 = dma.hbm_to_vmem [thread:$0]  %s2, 512, %s5, [#allocation0]
    %8 = dma.done [#allocation0], 512
    %9 = vsyncpa [#allocation0], 1

// kernel: custom-call.2
$region0: #{custom-call.2}
  %s0 = inlined_call_operand.hbm [shape: c64[2,1,16,16], index: 0, kind: input, shape index: {}]
  %s1 = inlined_call_operand.vmem [shape: f32[2,1,16,16], index: 1, kind: output, shape index: {}]
  $region1: #{custom-call.2} parent=0
    #allocation0 [shape = 's32[1]{0}', space=sflag, size = 0x4, scoped, tag = 'scoped memory for custom-call.2']
    %2 = vsyncpa [#allocation0], 0
    %s3 = sshll.u32 %s1, 4
    %s4 = int_to_ptr.vmem [resolvable:$true] %s3
    %6 = dma.hbm_to_vmem [thread:$0]  %s0, 512, %s4, [#allocation0]
    %7 = dma.done [#allocation0], 512
    %8 = vsyncpa [#allocation0], 1

// kernel: custom-call.3
$region0: #{custom-call.3}
  %s0 = inlined_call_operand.hbm [shape: c64[2,1,16,16], index: 0, kind: input, shape index: {}]
  %s1 = inlined_call_operand.vmem [shape: f32[2,1,16,16], index: 1, kind: output, shape index: {}]
  %s2 = scalar_lea.hbm %s0, 512
  $region1: #{custom-call.3} parent=0
    #allocation0 [shape = 's32[1]{0}', space=sflag, size = 0x4, scoped, tag = 'scoped memory for custom-call.3']
    %3 = vsyncpa [#allocation0], 0
    %s4 = sshll.u32 %s1, 4
    %s5 = int_to_ptr.vmem [resolvable:$true] %s4
    %7 = dma.hbm_to_vmem [thread:$0]  %s2, 512, %s5, [#allocation0]
    %8 = dma.done [#allocation0], 512
    %9 = vsyncpa [#allocation0], 1

// kernel: custom-call.4
$region0: #{custom-call.4}
  %s0 = inlined_call_operand.vmem [shape: f32[2,1,16,16], index: 0, kind: input, shape index: {}]
  %s1 = inlined_call_operand.vmem [shape: f32[2,1,16,16], index: 1, kind: input, shape index: {}]
  %s2 = inlined_call_operand.hbm [shape: c64[2,1,16,16], index: 2, kind: output, shape index: {}]
  %s3 = scalar_lea.hbm %s2, 512
  $region1: #{custom-call.4} parent=0
    #allocation0 [shape = 's32[1]{0}', space=sflag, size = 0x4, scoped, tag = 'scoped memory for custom-call.4']
    %4 = vsyncpa [#allocation0], 0
    %s5 = sshll.u32 %s0, 4
    %s6 = int_to_ptr.vmem [resolvable:$true] %s5
    %8 = dma.vmem_to_hbm [thread:$0]  %s6, 512, %s2, [#allocation0]
    %9 = dma.done [#allocation0], 512
    %10 = vsyncpa [#allocation0], 1
  $region2: #{custom-call.4} parent=0
    #allocation1 [shape = 's32[1]{0}', space=sflag, size = 0x4, scoped, tag = 'scoped memory for custom-call.4']
    %11 = vsyncpa [#allocation1], 0
    %s12 = sshll.u32 %s1, 4
    %s13 = int_to_ptr.vmem [resolvable:$true] %s12
    %15 = dma.vmem_to_hbm [thread:$0]  %s13, 512, %s3, [#allocation1]
    %16 = dma.done [#allocation1], 512
    %17 = vsyncpa [#allocation1], 1

// kernel: udncn_forward.5
$region0: #{udncn_forward.5}
  #allocation0 [shape = 'u32[]', space=smem, size = 0x4, offset = 0x4, fixed_abs, tag = 'smem constant byte address 0x4 - core index']
  #allocation1 [shape = 'u32[144,128]{1,0:T(1,128)}', space=vmem, size = 0x12000, scoped, tag = 'internal scratch']
  %s0 = inlined_call_operand.vmem [shape: f32[2,8,256], index: 0, kind: input, shape index: {}]
  %s1 = inlined_call_operand.vmem [shape: f32[9,1,256], index: 1, kind: input, shape index: {}]
  %s2 = inlined_call_operand.vmem [shape: f32[32,72], index: 2, kind: input, shape index: {}]
  %s3 = inlined_call_operand.vmem [shape: f32[3,32,288], index: 3, kind: input, shape index: {}]
  %s4 = inlined_call_operand.vmem [shape: f32[2,288], index: 4, kind: input, shape index: {}]
  %s5 = inlined_call_operand.vmem [shape: f32[2,1], index: 5, kind: input, shape index: {}]
  %s6 = inlined_call_operand.vmem [shape: f32[4,32,1], index: 6, kind: input, shape index: {}]
  %s7 = inlined_call_operand.vmem [shape: f32[4,32,1], index: 7, kind: input, shape index: {}]
  %s8 = inlined_call_operand.vmem [shape: f32[2,2,256], index: 8, kind: output, shape index: {}]
  %s9 = sld [smem:[#allocation0]]
  $region65: #{udncn_forward.5} parent=0
    _
  %s11 = ssub.s32 1, %s9
  %s12 = scalar_select 0, %s11, %s9
  loop: start=0, step=1, limit=4
  $region2: #{udncn_forward.5} parent=0 // loop_pre_header
    _
  $region3: #{udncn_forward.5} parent=0 // loop_header
    %s14 = sphi 0, %s18
    %p15 = scmp.ge.s32.totalorder %s14, 4
    %s24 = sphi 0, %s26
    %s27 = sphi 0, %s24
    %s28 = sphi 0, %s27
    %s44 = sphi 0, %s28
    %s48 = sphi 0, %s48
    %s50 = sphi 0, %s48
    %s51 = sphi 0, %s50
    %s65 = sphi 0, %s51
    %s69 = sphi 0, %s69
    %s71 = sphi 0, %s69
    %s72 = sphi 0, %s71
    %s86 = sphi 0, %s72
    %s90 = sphi 0, %s90
    %s92 = sphi 0, %s90
    %s93 = sphi 0, %s92
    %s107 = sphi 0, %s93
    %s111 = sphi 0, %s111
    %s113 = sphi 0, %s111
    %s114 = sphi 0, %s113
    %s128 = sphi 0, %s114
    %s132 = sphi 0, %s132
    %s134 = sphi 0, %s132
    %s135 = sphi 0, %s134
    %s149 = sphi 0, %s135
    %s153 = sphi 0, %s153
    %s155 = sphi 0, %s153
    %s156 = sphi 0, %s155
    %s170 = sphi 0, %s156
    %s174 = sphi 0, %s174
    %s176 = sphi 0, %s174
    %s177 = sphi 0, %s176
    %s191 = sphi 0, %s177
    %s197 = sphi 0, %s199
    %s200 = sphi 0, %s197
    %s201 = sphi 0, %s200
    %s217 = sphi 0, %s201
  $region4: #{udncn_forward.5} parent=0 // loop_header_branch
    %17 = sbr.rel (%p15) target = $region8
  $region5: #{udncn_forward.5} parent=0 // loop_body
    %s19 = ssub.s32 %s14, 1
    %s20 = ssub.s32 %s14, 2
    %s21 = sadd.s32 %s14, 1
    %s22 = ssub.s32 %s14, %s21
    %p23 = scmp.eq.s32.totalorder %s22, 0
    %s25 = sadd.s32 %s24, 1
    %s26 = scalar_select %p23, %s24, %s25
    %p29 = pneg %p23
    %p30 = scmp.eq.s32.totalorder %s14, 1
    %p31 = por %p29, %p30
    %p32 = scmp.ne.s32.totalorder %s24, %s27
    %p33 = scmp.eq.s32.totalorder %s14, 0
    %p34 = por %p32, %p33
    %p35 = scmp.ne.s32.totalorder %s24, %s27
    %p36 = scmp.eq.s32.totalorder %s19, 1
    %p37 = por %p35, %p36
    %p38 = scmp.ne.s32.totalorder %s27, %s28
    %p39 = scmp.eq.s32.totalorder %s19, 0
    %p40 = por %p38, %p39
    %p41 = scmp.ne.s32.totalorder %s27, %s28
    %p42 = scmp.eq.s32.totalorder %s20, 1
    %p43 = por %p41, %p42
    %p45 = scmp.ne.s32.totalorder %s28, %s44
    %p46 = scmp.eq.s32.totalorder %s20, 0
    %p47 = por %p45, %p46
    %s49 = sadd.s32 %s48, 1
    %p52 = scmp.eq.s32.totalorder %s14, 1
    %p53 = scmp.ne.s32.totalorder %s48, %s50
    %p54 = scmp.eq.s32.totalorder %s14, 0
    %p55 = por %p53, %p54
    %p56 = scmp.ne.s32.totalorder %s48, %s50
    %p57 = scmp.eq.s32.totalorder %s19, 1
    %p58 = por %p56, %p57
    %p59 = scmp.ne.s32.totalorder %s50, %s51
    %p60 = scmp.eq.s32.totalorder %s19, 0
    %p61 = por %p59, %p60
    %p62 = scmp.ne.s32.totalorder %s50, %s51
    %p63 = scmp.eq.s32.totalorder %s20, 1
    %p64 = por %p62, %p63
    %p66 = scmp.ne.s32.totalorder %s51, %s65
    %p67 = scmp.eq.s32.totalorder %s20, 0
    %p68 = por %p66, %p67
    %s70 = sadd.s32 %s69, 1
    %p73 = scmp.eq.s32.totalorder %s14, 1
    %p74 = scmp.ne.s32.totalorder %s69, %s71
    %p75 = scmp.eq.s32.totalorder %s14, 0
    %p76 = por %p74, %p75
    %p77 = scmp.ne.s32.totalorder %s69, %s71
    %p78 = scmp.eq.s32.totalorder %s19, 1
    %p79 = por %p77, %p78
    %p80 = scmp.ne.s32.totalorder %s71, %s72
    %p81 = scmp.eq.s32.totalorder %s19, 0
    %p82 = por %p80, %p81
    %p83 = scmp.ne.s32.totalorder %s71, %s72
    %p84 = scmp.eq.s32.totalorder %s20, 1
    %p85 = por %p83, %p84
    %p87 = scmp.ne.s32.totalorder %s72, %s86
    %p88 = scmp.eq.s32.totalorder %s20, 0
    %p89 = por %p87, %p88
    %s91 = sadd.s32 %s90, 1
    %p94 = scmp.eq.s32.totalorder %s14, 1
    %p95 = scmp.ne.s32.totalorder %s90, %s92
    %p96 = scmp.eq.s32.totalorder %s14, 0
    %p97 = por %p95, %p96
    %p98 = scmp.ne.s32.totalorder %s90, %s92
    %p99 = scmp.eq.s32.totalorder %s19, 1
    %p100 = por %p98, %p99
    %p101 = scmp.ne.s32.totalorder %s92, %s93
    %p102 = scmp.eq.s32.totalorder %s19, 0
    %p103 = por %p101, %p102
    %p104 = scmp.ne.s32.totalorder %s92, %s93
    %p105 = scmp.eq.s32.totalorder %s20, 1
    %p106 = por %p104, %p105
    %p108 = scmp.ne.s32.totalorder %s93, %s107
    %p109 = scmp.eq.s32.totalorder %s20, 0
    %p110 = por %p108, %p109
    %s112 = sadd.s32 %s111, 1
    %p115 = scmp.eq.s32.totalorder %s14, 1
    %p116 = scmp.ne.s32.totalorder %s111, %s113
    %p117 = scmp.eq.s32.totalorder %s14, 0
    %p118 = por %p116, %p117
    %p119 = scmp.ne.s32.totalorder %s111, %s113
    %p120 = scmp.eq.s32.totalorder %s19, 1
    %p121 = por %p119, %p120
    %p122 = scmp.ne.s32.totalorder %s113, %s114
    %p123 = scmp.eq.s32.totalorder %s19, 0
    %p124 = por %p122, %p123
    %p125 = scmp.ne.s32.totalorder %s113, %s114
    %p126 = scmp.eq.s32.totalorder %s20, 1
    %p127 = por %p125, %p126
    %p129 = scmp.ne.s32.totalorder %s114, %s128
    %p130 = scmp.eq.s32.totalorder %s20, 0
    %p131 = por %p129, %p130
    %s133 = sadd.s32 %s132, 1
    %p136 = scmp.eq.s32.totalorder %s14, 1
    %p137 = scmp.ne.s32.totalorder %s132, %s134
    %p138 = scmp.eq.s32.totalorder %s14, 0
    %p139 = por %p137, %p138
    %p140 = scmp.ne.s32.totalorder %s132, %s134
    %p141 = scmp.eq.s32.totalorder %s19, 1
    %p142 = por %p140, %p141
    %p143 = scmp.ne.s32.totalorder %s134, %s135
    %p144 = scmp.eq.s32.totalorder %s19, 0
    %p145 = por %p143, %p144
    %p146 = scmp.ne.s32.totalorder %s134, %s135
    %p147 = scmp.eq.s32.totalorder %s20, 1
    %p148 = por %p146, %p147
    %p150 = scmp.ne.s32.totalorder %s135, %s149
    %p151 = scmp.eq.s32.totalorder %s20, 0
    %p152 = por %p150, %p151
    %s154 = sadd.s32 %s153, 1
    %p157 = scmp.eq.s32.totalorder %s14, 1
    %p158 = scmp.ne.s32.totalorder %s153, %s155
    %p159 = scmp.eq.s32.totalorder %s14, 0
    %p160 = por %p158, %p159
    %p161 = scmp.ne.s32.totalorder %s153, %s155
    %p162 = scmp.eq.s32.totalorder %s19, 1
    %p163 = por %p161, %p162
    %p164 = scmp.ne.s32.totalorder %s155, %s156
    %p165 = scmp.eq.s32.totalorder %s19, 0
    %p166 = por %p164, %p165
    %p167 = scmp.ne.s32.totalorder %s155, %s156
    %p168 = scmp.eq.s32.totalorder %s20, 1
    %p169 = por %p167, %p168
    %p171 = scmp.ne.s32.totalorder %s156, %s170
    %p172 = scmp.eq.s32.totalorder %s20, 0
    %p173 = por %p171, %p172
    %s175 = sadd.s32 %s174, 1
    %p178 = scmp.eq.s32.totalorder %s14, 1
    %p179 = scmp.ne.s32.totalorder %s174, %s176
    %p180 = scmp.eq.s32.totalorder %s14, 0
    %p181 = por %p179, %p180
    %p182 = scmp.ne.s32.totalorder %s174, %s176
    %p183 = scmp.eq.s32.totalorder %s19, 1
    %p184 = por %p182, %p183
    %p185 = scmp.ne.s32.totalorder %s176, %s177
    %p186 = scmp.eq.s32.totalorder %s19, 0
    %p187 = por %p185, %p186
    %p188 = scmp.ne.s32.totalorder %s176, %s177
    %p189 = scmp.eq.s32.totalorder %s20, 1
    %p190 = por %p188, %p189
    %p192 = scmp.ne.s32.totalorder %s177, %s191
    %p193 = scmp.eq.s32.totalorder %s20, 0
    %p194 = por %p192, %p193
    %s195 = ssub.s32 %s14, %s21
    %p196 = scmp.eq.s32.totalorder %s195, 0
    %s198 = sadd.s32 %s197, 1
    %s199 = scalar_select %p196, %s197, %s198
    %p202 = pneg %p196
    %p203 = scmp.eq.s32.totalorder %s14, 1
    %p204 = por %p202, %p203
    %p205 = scmp.ne.s32.totalorder %s197, %s200
    %p206 = scmp.eq.s32.totalorder %s14, 0
    %p207 = por %p205, %p206
    %p208 = scmp.ne.s32.totalorder %s197, %s200
    %p209 = scmp.eq.s32.totalorder %s19, 1
    %p210 = por %p208, %p209
    %p211 = scmp.ne.s32.totalorder %s200, %s201
    %p212 = scmp.eq.s32.totalorder %s19, 0
    %p213 = por %p211, %p212
    %p214 = scmp.ne.s32.totalorder %s200, %s201
    %p215 = scmp.eq.s32.totalorder %s20, 1
    %p216 = por %p214, %p215
    %p218 = scmp.ne.s32.totalorder %s201, %s217
    %p219 = scmp.eq.s32.totalorder %s20, 0
    %p220 = por %p218, %p219
    %p221 = scmp.le.s32.totalorder 1, %s14
    %p222 = scmp.lt.s32.totalorder %s14, 3
    %p223 = pnand %p221, %p222
    %p224 = pneg %p223
    // Predicated region
    $region9: #{udncn_forward.5} parent=5 // pred_check
      _
    $region10: #{udncn_forward.5} parent=5 // pred_check_branch
      %226 = sbr.rel (%p223) target = $region12
    $region11: #{udncn_forward.5} parent=5 // pred_region
      %s227 = ssub.s32 %s14, 1
      // Predicated region
      $region13: #{udncn_forward.5} parent=11 // pred_check
        %p228 = pneg %p61
      $region14: #{udncn_forward.5} parent=11 // pred_check_branch
        %230 = sbr.rel (%p228) target = $region16
      $region15: #{udncn_forward.5} parent=11 // pred_region
        _
      $region16: #{udncn_forward.5} parent=11 // pred_fallthru
        _
      // Predicated region
      $region17: #{udncn_forward.5} parent=11 // pred_check
        %p231 = pneg %p82
      $region18: #{udncn_forward.5} parent=11 // pred_check_branch
        %233 = sbr.rel (%p231) target = $region20
      $region19: #{udncn_forward.5} parent=11 // pred_region
        _
      $region20: #{udncn_forward.5} parent=11 // pred_fallthru
        _
      // Predicated region
      $region21: #{udncn_forward.5} parent=11 // pred_check
        %p234 = pneg %p103
      $region22: #{udncn_forward.5} parent=11 // pred_check_branch
        %236 = sbr.rel (%p234) target = $region24
      $region23: #{udncn_forward.5} parent=11 // pred_region
        _
      $region24: #{udncn_forward.5} parent=11 // pred_fallthru
        _
      // Predicated region
      $region25: #{udncn_forward.5} parent=11 // pred_check
        %p237 = pneg %p124
      $region26: #{udncn_forward.5} parent=11 // pred_check_branch
        %239 = sbr.rel (%p237) target = $region28
      $region27: #{udncn_forward.5} parent=11 // pred_region
        _
      $region28: #{udncn_forward.5} parent=11 // pred_fallthru
        _
      // Predicated region
      $region29: #{udncn_forward.5} parent=11 // pred_check
        %p240 = pneg %p145
      $region30: #{udncn_forward.5} parent=11 // pred_check_branch
        %242 = sbr.rel (%p240) target = $region32
      $region31: #{udncn_forward.5} parent=11 // pred_region
        _
      $region32: #{udncn_forward.5} parent=11 // pred_fallthru
        _
      // Predicated region
      $region33: #{udncn_forward.5} parent=11 // pred_check
        %p243 = pneg %p166
      $region34: #{udncn_forward.5} parent=11 // pred_check_branch
        %245 = sbr.rel (%p243) target = $region36
      $region35: #{udncn_forward.5} parent=11 // pred_region
        _
      $region36: #{udncn_forward.5} parent=11 // pred_fallthru
        _
      // Predicated region
      $region37: #{udncn_forward.5} parent=11 // pred_check
        %p246 = pneg %p187
      $region38: #{udncn_forward.5} parent=11 // pred_check_branch
        %248 = sbr.rel (%p246) target = $region40
      $region39: #{udncn_forward.5} parent=11 // pred_region
        _
      $region40: #{udncn_forward.5} parent=11 // pred_fallthru
        _
    $region12: #{udncn_forward.5} parent=5 // pred_fallthru
      _
    %p249 = scmp.lt.s32.totalorder %s14, 2
    // Predicated region
    $region41: #{udncn_forward.5} parent=5 // pred_check
      %p250 = pneg %p249
    $region42: #{udncn_forward.5} parent=5 // pred_check_branch
      %252 = sbr.rel (%p250) target = $region44
    $region43: #{udncn_forward.5} parent=5 // pred_region
      // Predicated region
      $region45: #{udncn_forward.5} parent=43 // pred_check
        %p253 = pneg %p34
      $region46: #{udncn_forward.5} parent=43 // pred_check_branch
        %255 = sbr.rel (%p253) target = $region48
      $region47: #{udncn_forward.5} parent=43 // pred_region
        %p256 = scmp.lt.s32.totalorder %s14, 1
        %s257 = scalar_select %p256, %s14, 1
        %s258 = smul.addr %s257, 2
        %s259 = smul.addr %s258, 8
        %s260 = scalar_lea.vmem %s0, %s259
      $region48: #{udncn_forward.5} parent=43 // pred_fallthru
        _
    $region44: #{udncn_forward.5} parent=5 // pred_fallthru
      _
    %p261 = scmp.le.s32.totalorder 1, %s14
    %p262 = scmp.lt.s32.totalorder %s14, 3
    %p263 = pnand %p261, %p262
    %p264 = pneg %p263
    // Predicated region
    $region49: #{udncn_forward.5} parent=5 // pred_check
      _
    $region50: #{udncn_forward.5} parent=5 // pred_check_branch
      %266 = sbr.rel (%p263) target = $region52
    $region51: #{udncn_forward.5} parent=5 // pred_region
      %s267 = ssub.s32 %s14, 1
      %p268 = scmp.lt.s32.totalorder %s19, 1
      %s269 = scalar_select %p268, %s19, 1
      %s270 = smul.addr %s269, 2
      %s271 = smul.addr %s270, 8
      %s272 = scalar_lea.vmem %s0, %s271
      %p273 = pneg %p40
      %p274 = pneg %p37
      %p275 = pneg %p61
      %p276 = pneg %p58
      %p277 = pneg %p82
      %p278 = pneg %p79
      %p279 = pneg %p103
      %p280 = pneg %p100
      %p281 = pneg %p124
      %p282 = pneg %p121
      %p283 = pneg %p145
      %p284 = pneg %p142
      %p285 = pneg %p166
      %p286 = pneg %p163
      %p287 = pneg %p187
      %p288 = pneg %p184
      %p289 = pneg %p213
      %p290 = pneg %p210
      %p291 = scmp.lt.s32.totalorder %s19, 1
      %s292 = scalar_select %p291, %s19, 1
      %s293 = smul.addr %s292, 2
      %s294 = smul.addr %s293, 2
      %s295 = scalar_lea.vmem %s8, %s294
      %p296 = scmp.lt.s32.totalorder %s19, 1
      %s297 = scalar_select %p296, %s19, 1
      %s298 = smul.addr %s297, 2
      %s299 = smul.addr %s298, 8
      %s300 = scalar_lea.vmem %s0, %s299
      %p301 = scmp.lt.s32.totalorder %s19, 1
      %s302 = scalar_select %p301, %s19, 1
      %s303 = smul.addr %s302, 2
      %s304 = smul.addr %s303, 2
      %s305 = scalar_lea.vmem %s8, %s304
      %v306 = vld [vmem:[%s1] sm:$0x3]
      %s307 = scalar_lea.vmem %s1, 2
      %v308 = vld [vmem:[%s307] sm:$0x3]
      %s309 = scalar_lea.vmem %s1, 4
      %v310 = vld [vmem:[%s309] sm:$0x3]
      %s311 = scalar_lea.vmem %s1, 6
      %v312 = vld [vmem:[%s311] sm:$0x3]
      %s313 = scalar_lea.vmem %s1, 10
      %v314 = vld [vmem:[%s313] sm:$0x3]
      %s315 = scalar_lea.vmem %s1, 12
      %v316 = vld [vmem:[%s315] sm:$0x3]
      %s317 = scalar_lea.vmem %s1, 14
      %v318 = vld [vmem:[%s317] sm:$0x3]
      %s319 = scalar_lea.vmem %s1, 16
      %v320 = vld [vmem:[%s319] sm:$0x3]
      %v321 = vld [vmem:[%s300] sm:$0xff]
      %v322 = vld [vmem:[%s300 + $0x8] sm:$0xff]
      %v323 = vld [vmem:[%s2] sm:$0xff]
      %v324 = vld [vmem:[%s2 + $0x8] sm:$0xff]
      %v325 = vld [vmem:[%s2 + $0x10] sm:$0xff]
      %v326 = vld [vmem:[%s2 + $0x18] sm:$0xff]
      %327 = vrot.lane.b32.xlu0 %v321, 17
      %v328 = vpop.permute.xlu0 %327
      %329 = vrot.lane.b32.xlu0 %v322, 17
      %v330 = vpop.permute.xlu0 %329
      %v331 = vlaneseq
      %v332 = vand.u32 %v331, 127
      %vm333 = vcmp.lt.s32.totalorder %v332, 17
      %v334 = vsel %vm333, %v328, %v330
      %v335 = vsel %vm333, %v330, %v328
      %v337 = vlaneseq
      %v338 = vshrl.u32 %v337, 7
      %v339 = vsub.s32 0, %v338
      %v340 = vrot.slane %v306, %v339
      %v341 = vlaneseq
      %v342 = vshrl.u32 %v341, 7
      %v343 = vsub.s32 1, %v342
      %v344 = vrot.slane %v306, %v343
      %v347 = vmul.f32 %v335, %v340
      %v348 = vmul.f32 %v334, %v344
      %349 = vrot.lane.b32.xlu0 %v321, 16
      %v350 = vpop.permute.xlu0 %349
      %351 = vrot.lane.b32.xlu0 %v322, 16
      %v352 = vpop.permute.xlu0 %351
      %vm353 = vcmp.lt.s32.totalorder %v332, 16
      %v354 = vsel %vm353, %v350, %v352
      %v355 = vsel %vm353, %v352, %v350
      %v357 = vlaneseq
      %v358 = vshrl.u32 %v357, 7
      %v359 = vsub.s32 0, %v358
      %v360 = vrot.slane %v308, %v359
      %v361 = vlaneseq
      %v362 = vshrl.u32 %v361, 7
      %v363 = vsub.s32 1, %v362
      %v364 = vrot.slane %v308, %v363
      %v367 = vmul.f32 %v355, %v360
      %v368 = vmul.f32 %v354, %v364
      %369 = vrot.lane.b32.xlu0 %v321, 15
      %v370 = vpop.permute.xlu0 %369
      %371 = vrot.lane.b32.xlu0 %v322, 15
      %v372 = vpop.permute.xlu0 %371
      %vm373 = vcmp.lt.s32.totalorder %v332, 15
      %v374 = vsel %vm373, %v370, %v372
      %v375 = vsel %vm373, %v372, %v370
      %v377 = vlaneseq
      %v378 = vshrl.u32 %v377, 7
      %v379 = vsub.s32 0, %v378
      %v380 = vrot.slane %v310, %v379
      %v381 = vlaneseq
      %v382 = vshrl.u32 %v381, 7
      %v383 = vsub.s32 1, %v382
      %v384 = vrot.slane %v310, %v383
      %v387 = vmul.f32 %v375, %v380
      %v388 = vmul.f32 %v374, %v384
      %389 = vrot.lane.b32.xlu0 %v321, 1
      %v390 = vpop.permute.xlu0 %389
      %391 = vrot.lane.b32.xlu0 %v322, 1
      %v392 = vpop.permute.xlu0 %391
      %vm393 = vcmp.lt.s32.totalorder %v332, 1
      %v394 = vsel %vm393, %v390, %v392
      %v395 = vsel %vm393, %v392, %v390
      %v397 = vlaneseq
      %v398 = vshrl.u32 %v397, 7
      %v399 = vsub.s32 0, %v398
      %v400 = vrot.slane %v312, %v399
      %v401 = vlaneseq
      %v402 = vshrl.u32 %v401, 7
      %v403 = vsub.s32 1, %v402
      %v404 = vrot.slane %v312, %v403
      %v407 = vmul.f32 %v395, %v400
      %v408 = vmul.f32 %v394, %v404
      %409 = vrot.lane.b32.xlu0 %v321, 127
      %v410 = vpop.permute.xlu0 %409
      %411 = vrot.lane.b32.xlu0 %v322, 127
      %v412 = vpop.permute.xlu0 %411
      %vm413 = vcmp.lt.s32.totalorder %v332, 127
      %v414 = vsel %vm413, %v410, %v412
      %v415 = vsel %vm413, %v412, %v410
      %v417 = vlaneseq
      %v418 = vshrl.u32 %v417, 7
      %v419 = vsub.s32 0, %v418
      %v420 = vrot.slane %v314, %v419
      %v421 = vlaneseq
      %v422 = vshrl.u32 %v421, 7
      %v423 = vsub.s32 1, %v422
      %v424 = vrot.slane %v314, %v423
      %v427 = vmul.f32 %v414, %v420
      %v428 = vmul.f32 %v415, %v424
      %429 = vrot.lane.b32.xlu0 %v321, 113
      %v430 = vpop.permute.xlu0 %429
      %431 = vrot.lane.b32.xlu0 %v322, 113
      %v432 = vpop.permute.xlu0 %431
      %vm433 = vcmp.lt.s32.totalorder %v332, 113
      %v434 = vsel %vm433, %v430, %v432
      %v435 = vsel %vm433, %v432, %v430
      %v437 = vlaneseq
      %v438 = vshrl.u32 %v437, 7
      %v439 = vsub.s32 0, %v438
      %v440 = vrot.slane %v316, %v439
      %v441 = vlaneseq
      %v442 = vshrl.u32 %v441, 7
      %v443 = vsub.s32 1, %v442
      %v444 = vrot.slane %v316, %v443
      %v447 = vmul.f32 %v434, %v440
      %v448 = vmul.f32 %v435, %v444
      %449 = vrot.lane.b32.xlu0 %v321, 112
      %v450 = vpop.permute.xlu0 %449
      %451 = vrot.lane.b32.xlu0 %v322, 112
      %v452 = vpop.permute.xlu0 %451
      %vm453 = vcmp.lt.s32.totalorder %v332, 112
      %v454 = vsel %vm453, %v450, %v452
      %v455 = vsel %vm453, %v452, %v450
      %v457 = vlaneseq
      %v458 = vshrl.u32 %v457, 7
      %v459 = vsub.s32 0, %v458
      %v460 = vrot.slane %v318, %v459
      %v461 = vlaneseq
      %v462 = vshrl.u32 %v461, 7
      %v463 = vsub.s32 1, %v462
      %v464 = vrot.slane %v318, %v463
      %v467 = vmul.f32 %v454, %v460
      %v468 = vmul.f32 %v455, %v464
      %469 = vrot.lane.b32.xlu0 %v321, 111
      %v470 = vpop.permute.xlu0 %469
      %471 = vrot.lane.b32.xlu0 %v322, 111
      %v472 = vpop.permute.xlu0 %471
      %vm473 = vcmp.lt.s32.totalorder %v332, 111
      %v474 = vsel %vm473, %v470, %v472
      %v475 = vsel %vm473, %v472, %v470
      %v477 = vlaneseq
      %v478 = vshrl.u32 %v477, 7
      %v479 = vsub.s32 0, %v478
      %v480 = vrot.slane %v320, %v479
      %v481 = vlaneseq
      %v482 = vshrl.u32 %v481, 7
      %v483 = vsub.s32 1, %v482
      %v484 = vrot.slane %v320, %v483
      %v487 = vmul.f32 %v474, %v480
      %v488 = vmul.f32 %v475, %v484
      %vm489 = vcmask 588800
      %v491 = vsel %vm489, %v323, 0
      %v494 = vsel %vm489, %v324, 0
      %v497 = vsel %vm489, %v325, 0
      %v500 = vsel %vm489, %v326, 0
      %502 = vmatprep.subr.mxu0 0.0
      %503 = vmatpush1.msra.mxu0 0.0
      %504 = vmatprep.subr.mxu0 0.0
      %505 = vmatpush1.msra.mxu0 0.0
      %506 = vmatprep.subr.mxu0 0.0
      %507 = vmatpush1.msra.mxu0 0.0
      %508 = vmatprep.subr.mxu0 0.0
      %509 = vmatpush1.msra.mxu0 0.0
      %510 = vmatprep.subr.mxu0 0.0
      %511 = vmatpush1.msra.mxu0 0.0
      %512 = vmatprep.subr.mxu0 0.0
      %513 = vmatpush1.msra.mxu0 0.0
      %514 = vmatprep.subr.mxu0 0.0
      %515 = vmatpush1.msra.mxu0 0.0
      %516 = vmatprep.subr.mxu0 %v488
      %517 = vmatpush1.msra.mxu0 %v487
      %518 = vmatprep.subr.mxu0 %v468
      %519 = vmatpush1.msra.mxu0 %v467
      %520 = vmatprep.subr.mxu0 %v448
      %521 = vmatpush1.msra.mxu0 %v447
      %522 = vmatprep.subr.mxu0 %v428
      %523 = vmatpush1.msra.mxu0 %v427
      %524 = vmatprep.subr.mxu0 %v322
      %525 = vmatpush1.msra.mxu0 %v321
      %526 = vmatprep.subr.mxu0 %v408
      %527 = vmatpush1.msra.mxu0 %v407
      %528 = vmatprep.subr.mxu0 %v388
      %529 = vmatpush1.msra.mxu0 %v387
      %530 = vmatprep.subr.mxu0 %v368
      %531 = vmatpush1.msra.mxu0 %v367
      %532 = vmatprep.subr.mxu0 %v348
      %533 = vmatpush1.msra.mxu0 %v347
      %534 = vmatprep.subr.mxu0 0.0
      %535 = vmatpush2.msra.mxu0 0.0
      %536 = vmatprep.subr.mxu0 0.0
      %537 = vmatpush2.msra.mxu0 0.0
      %538 = vmatprep.subr.mxu0 0.0
      %539 = vmatpush2.msra.mxu0 0.0
      %540 = vmatprep.subr.mxu0 0.0
      %541 = vmatpush2.msra.mxu0 0.0
      %542 = vmatprep.subr.mxu0 0.0
      %543 = vmatpush2.msra.mxu0 0.0
      %544 = vmatprep.subr.mxu0 0.0
      %545 = vmatpush2.msra.mxu0 0.0
      %546 = vmatprep.subr.mxu0 0.0
      %547 = vmatpush2.msra.mxu0 0.0
      %548 = vmatprep.subr.mxu0 0.0
      %549 = vmatpush2.msra.mxu0 0.0
      %550 = vmatprep.subr.mxu0 0.0
      %551 = vmatpush2.msra.mxu0 0.0
      %552 = vmatprep.subr.mxu0 0.0
      %553 = vmatpush2.msra.mxu0 0.0
      %554 = vmatprep.subr.mxu0 0.0
      %555 = vmatpush2.msra.mxu0 0.0
      %556 = vmatprep.subr.mxu0 0.0
      %557 = vmatpush2.msra.mxu0 0.0
      %558 = vmatprep.subr.mxu0 0.0
      %559 = vmatpush2.msra.mxu0 0.0
      %560 = vmatprep.subr.mxu0 0.0
      %561 = vmatpush2.msra.mxu0 0.0
      %562 = vmatprep.subr.mxu0 0.0
      %563 = vmatpush2.msra.mxu0 0.0
      %564 = vmatprep.subr.mxu0 0.0
      %565 = vmatpush2.msra.mxu0 0.0
      %566 = vmatprep.mubr.f32.mxu0 0.0
      %567 = vmatmul.mubr.f32.gmra.mxu0 %v491
      %v568 = vpop.f32.mrf.mxu0
      %v569 = vadd.f32 0.0, %v568
      %v570 = vpop.f32.mrf.mxu0
      %v571 = vadd.f32 0.0, %v570
      %572 = vmatprep.mubr.f32.mxu0 0.0
      %573 = vmatmul.mubr.f32.gmra.mxu0 %v494
      %v574 = vpop.f32.mrf.mxu0
      %v575 = vadd.f32 0.0, %v574
      %v576 = vpop.f32.mrf.mxu0
      %v577 = vadd.f32 0.0, %v576
      %578 = vmatprep.mubr.f32.mxu0 0.0
      %579 = vmatmul.mubr.f32.gmra.mxu0 %v497
      %v580 = vpop.f32.mrf.mxu0
      %v581 = vadd.f32 0.0, %v580
      %v582 = vpop.f32.mrf.mxu0
      %v583 = vadd.f32 0.0, %v582
      %584 = vmatprep.mubr.f32.mxu0 0.0
      %585 = vmatmul.mubr.f32.gmra.mxu0 %v500
      %v586 = vpop.f32.mrf.mxu0
      %v587 = vadd.f32 0.0, %v586
      %v588 = vpop.f32.mrf.mxu0
      %v589 = vadd.f32 0.0, %v588
      %590 = vdwg.mxu0
      %v591 = vadd.f32 %v569, %v571
      %592 = vadd.xlane.f32.xlu0 %v591
      %v593 = vpop.xlane.xlu0 %592
      %v594 = vadd.f32 %v575, %v577
      %595 = vadd.xlane.f32.xlu0 %v594
      %v596 = vpop.xlane.xlu0 %595
      %v597 = vadd.f32 %v581, %v583
      %598 = vadd.xlane.f32.xlu0 %v597
      %v599 = vpop.xlane.xlu0 %598
      %v600 = vadd.f32 %v587, %v589
      %601 = vadd.xlane.f32.xlu0 %v600
      %v602 = vpop.xlane.xlu0 %601
      %v603 = vmul.f32 %v593, 0.00390625
      %v604 = vmul.f32 %v596, 0.00390625
      %v605 = vmul.f32 %v599, 0.00390625
      %v606 = vmul.f32 %v602, 0.00390625
      %v607 = vmul.f32 %v569, %v569
      %v608 = vmul.f32 %v571, %v571
      %v609 = vmul.f32 %v575, %v575
      %v610 = vmul.f32 %v577, %v577
      %v611 = vmul.f32 %v581, %v581
      %v612 = vmul.f32 %v583, %v583
      %v613 = vmul.f32 %v587, %v587
      %v614 = vmul.f32 %v589, %v589
      %v615 = vadd.f32 %v607, %v608
      %616 = vadd.xlane.f32.xlu0 %v615
      %v617 = vpop.xlane.xlu0 %616
      %v618 = vadd.f32 %v609, %v610
      %619 = vadd.xlane.f32.xlu0 %v618
      %v620 = vpop.xlane.xlu0 %619
      %v621 = vadd.f32 %v611, %v612
      %622 = vadd.xlane.f32.xlu0 %v621
      %v623 = vpop.xlane.xlu0 %622
      %v624 = vadd.f32 %v613, %v614
      %625 = vadd.xlane.f32.xlu0 %v624
      %v626 = vpop.xlane.xlu0 %625
      %v627 = vmul.f32 %v617, 0.00390625
      %v628 = vmul.f32 %v620, 0.00390625
      %v629 = vmul.f32 %v623, 0.00390625
      %v630 = vmul.f32 %v626, 0.00390625
      %v631 = vmul.f32 %v603, %v603
      %v632 = vmul.f32 %v604, %v604
      %v633 = vmul.f32 %v605, %v605
      %v634 = vmul.f32 %v606, %v606
      %v635 = vsub.f32 %v627, %v631
      %v636 = vsub.f32 %v628, %v632
      %v637 = vsub.f32 %v629, %v633
      %v638 = vsub.f32 %v630, %v634
      %v639 = vsub.f32 %v569, %v603
      %v640 = vsub.f32 %v571, %v603
      %v641 = vsub.f32 %v575, %v604
      %v642 = vsub.f32 %v577, %v604
      %v643 = vsub.f32 %v581, %v605
      %v644 = vsub.f32 %v583, %v605
      %v645 = vsub.f32 %v587, %v606
      %v646 = vsub.f32 %v589, %v606
      %v647 = vadd.f32 %v635, 1e-05
      %v648 = vadd.f32 %v636, 1e-05
      %v649 = vadd.f32 %v637, 1e-05
      %v650 = vadd.f32 %v638, 1e-05
      %v651 = vrsqrt.pop %v647
      %v652 = vrsqrt.pop %v648
      %v653 = vrsqrt.pop %v649
      %v654 = vrsqrt.pop %v650
      %v655 = vmul.f32 %v639, %v651
      %v656 = vmul.f32 %v640, %v651
      %v657 = vmul.f32 %v641, %v652
      %v658 = vmul.f32 %v642, %v652
      %v659 = vmul.f32 %v643, %v653
      %v660 = vmul.f32 %v644, %v653
      %v661 = vmul.f32 %v645, %v654
      %v662 = vmul.f32 %v646, %v654
      %v663 = vld [vmem:[%s6] sm:$0xff]
      %v664 = vld [vmem:[%s6 + $0x8] sm:$0xff]
      %v665 = vld [vmem:[%s6 + $0x10] sm:$0xff]
      %v666 = vld [vmem:[%s6 + $0x18] sm:$0xff]
      %668 = vset.pattern.permute.xlu0 0
      %669 = vperm.xlu0 %668, %v663
      %v670 = vpop.permute.xlu0 %669
      %673 = vset.pattern.permute.xlu0 0
      %674 = vperm.xlu0 %673, %v664
      %v675 = vpop.permute.xlu0 %674
      %678 = vset.pattern.permute.xlu0 0
      %679 = vperm.xlu0 %678, %v665
      %v680 = vpop.permute.xlu0 %679
      %683 = vset.pattern.permute.xlu0 0
      %684 = vperm.xlu0 %683, %v666
      %v685 = vpop.permute.xlu0 %684
      %v687 = vmul.f32 %v655, %v670
      %v688 = vmul.f32 %v656, %v670
      %v689 = vmul.f32 %v657, %v675
      %v690 = vmul.f32 %v658, %v675
      %v691 = vmul.f32 %v659, %v680
      %v692 = vmul.f32 %v660, %v680
      %v693 = vmul.f32 %v661, %v685
      %v694 = vmul.f32 %v662, %v685
      %v695 = vld [vmem:[%s7] sm:$0xff]
      %v696 = vld [vmem:[%s7 + $0x8] sm:$0xff]
      %v697 = vld [vmem:[%s7 + $0x10] sm:$0xff]
      %v698 = vld [vmem:[%s7 + $0x18] sm:$0xff]
      %700 = vset.pattern.permute.xlu0 0
      %701 = vperm.xlu0 %700, %v695
      %v702 = vpop.permute.xlu0 %701
      %705 = vset.pattern.permute.xlu0 0
      %706 = vperm.xlu0 %705, %v696
      %v707 = vpop.permute.xlu0 %706
      %710 = vset.pattern.permute.xlu0 0
      %711 = vperm.xlu0 %710, %v697
      %v712 = vpop.permute.xlu0 %711
      %715 = vset.pattern.permute.xlu0 0
      %716 = vperm.xlu0 %715, %v698
      %v717 = vpop.permute.xlu0 %716
      %v719 = vadd.f32 %v687, %v702
      %v720 = vadd.f32 %v688, %v702
      %v721 = vadd.f32 %v689, %v707
      %v722 = vadd.f32 %v690, %v707
      %v723 = vadd.f32 %v691, %v712
      %v724 = vadd.f32 %v692, %v712
      %v725 = vadd.f32 %v693, %v717
      %v726 = vadd.f32 %v694, %v717
      %vm727 = vcmp.ge.f32.partialorder %v719, 0.0
      %vm728 = vcmp.ge.f32.partialorder %v720, 0.0
      %vm729 = vcmp.ge.f32.partialorder %v721, 0.0
      %vm730 = vcmp.ge.f32.partialorder %v722, 0.0
      %vm731 = vcmp.ge.f32.partialorder %v723, 0.0
      %vm732 = vcmp.ge.f32.partialorder %v724, 0.0
      %vm733 = vcmp.ge.f32.partialorder %v725, 0.0
      %vm734 = vcmp.ge.f32.partialorder %v726, 0.0
      %v735 = vmul.f32 %v719, 0.01
      %v736 = vmul.f32 %v720, 0.01
      %v737 = vmul.f32 %v721, 0.01
      %v738 = vmul.f32 %v722, 0.01
      %v739 = vmul.f32 %v723, 0.01
      %v740 = vmul.f32 %v724, 0.01
      %v741 = vmul.f32 %v725, 0.01
      %v742 = vmul.f32 %v726, 0.01
      %v743 = vsel %vm727, %v719, %v735
      %v744 = vsel %vm728, %v720, %v736
      %v745 = vsel %vm729, %v721, %v737
      %v746 = vsel %vm730, %v722, %v738
      %v747 = vsel %vm731, %v723, %v739
      %v748 = vsel %vm732, %v724, %v740
      %v749 = vsel %vm733, %v725, %v741
      %v750 = vsel %vm734, %v726, %v742
      %v751 = vld [vmem:[%s3] sm:$0xff]
      %v752 = vld [vmem:[%s3 + $0x8] sm:$0xff]
      %v753 = vld [vmem:[%s3 + $0x10] sm:$0xff]
      %v754 = vld [vmem:[%s3 + $0x18] sm:$0xff]
      %v755 = vld [vmem:[%s3 + $0x20] sm:$0xff]
      %v756 = vld [vmem:[%s3 + $0x28] sm:$0xff]
      %v757 = vld [vmem:[%s3 + $0x30] sm:$0xff]
      %v758 = vld [vmem:[%s3 + $0x38] sm:$0xff]
      %v759 = vld [vmem:[%s3 + $0x40] sm:$0xff]
      %v760 = vld [vmem:[%s3 + $0x48] sm:$0xff]
      %v761 = vld [vmem:[%s3 + $0x50] sm:$0xff]
      %v762 = vld [vmem:[%s3 + $0x58] sm:$0xff]
      %763 = vrot.lane.b32.xlu0 %v743, 17
      %v764 = vpop.permute.xlu0 %763
      %765 = vrot.lane.b32.xlu0 %v745, 17
      %v766 = vpop.permute.xlu0 %765
      %767 = vrot.lane.b32.xlu0 %v747, 17
      %v768 = vpop.permute.xlu0 %767
      %769 = vrot.lane.b32.xlu0 %v749, 17
      %v770 = vpop.permute.xlu0 %769
      %771 = vrot.lane.b32.xlu0 %v744, 17
      %v772 = vpop.permute.xlu0 %771
      %773 = vrot.lane.b32.xlu0 %v746, 17
      %v774 = vpop.permute.xlu0 %773
      %775 = vrot.lane.b32.xlu0 %v748, 17
      %v776 = vpop.permute.xlu0 %775
      %777 = vrot.lane.b32.xlu0 %v750, 17
      %v778 = vpop.permute.xlu0 %777
      %v779 = vsel %vm333, %v764, %v772
      %v780 = vsel %vm333, %v766, %v774
      %v781 = vsel %vm333, %v768, %v776
      %v782 = vsel %vm333, %v770, %v778
      %v783 = vsel %vm333, %v772, %v764
      %v784 = vsel %vm333, %v774, %v766
      %v785 = vsel %vm333, %v776, %v768
      %v786 = vsel %vm333, %v778, %v770
      %v787 = vmul.f32 %v783, %v340
      %v788 = vmul.f32 %v779, %v344
      %v789 = vmul.f32 %v784, %v340
      %v790 = vmul.f32 %v780, %v344
      %v791 = vmul.f32 %v785, %v340
      %v792 = vmul.f32 %v781, %v344
      %v793 = vmul.f32 %v786, %v340
      %v794 = vmul.f32 %v782, %v344
      %795 = vrot.lane.b32.xlu0 %v743, 16
      %v796 = vpop.permute.xlu0 %795
      %797 = vrot.lane.b32.xlu0 %v745, 16
      %v798 = vpop.permute.xlu0 %797
      %799 = vrot.lane.b32.xlu0 %v747, 16
      %v800 = vpop.permute.xlu0 %799
      %801 = vrot.lane.b32.xlu0 %v749, 16
      %v802 = vpop.permute.xlu0 %801
      %803 = vrot.lane.b32.xlu0 %v744, 16
      %v804 = vpop.permute.xlu0 %803
      %805 = vrot.lane.b32.xlu0 %v746, 16
      %v806 = vpop.permute.xlu0 %805
      %807 = vrot.lane.b32.xlu0 %v748, 16
      %v808 = vpop.permute.xlu0 %807
      %809 = vrot.lane.b32.xlu0 %v750, 16
      %v810 = vpop.permute.xlu0 %809
      %v811 = vsel %vm353, %v796, %v804
      %v812 = vsel %vm353, %v798, %v806
      %v813 = vsel %vm353, %v800, %v808
      %v814 = vsel %vm353, %v802, %v810
      %v815 = vsel %vm353, %v804, %v796
      %v816 = vsel %vm353, %v806, %v798
      %v817 = vsel %vm353, %v808, %v800
      %v818 = vsel %vm353, %v810, %v802
      %v819 = vmul.f32 %v815, %v360
      %v820 = vmul.f32 %v811, %v364
      %v821 = vmul.f32 %v816, %v360
      %v822 = vmul.f32 %v812, %v364
      %v823 = vmul.f32 %v817, %v360
      %v824 = vmul.f32 %v813, %v364
      %v825 = vmul.f32 %v818, %v360
      %v826 = vmul.f32 %v814, %v364
      %827 = vrot.lane.b32.xlu0 %v743, 15
      %v828 = vpop.permute.xlu0 %827
      %829 = vrot.lane.b32.xlu0 %v745, 15
      %v830 = vpop.permute.xlu0 %829
      %831 = vrot.lane.b32.xlu0 %v747, 15
      %v832 = vpop.permute.xlu0 %831
      %833 = vrot.lane.b32.xlu0 %v749, 15
      %v834 = vpop.permute.xlu0 %833
      %835 = vrot.lane.b32.xlu0 %v744, 15
      %v836 = vpop.permute.xlu0 %835
      %837 = vrot.lane.b32.xlu0 %v746, 15
      %v838 = vpop.permute.xlu0 %837
      %839 = vrot.lane.b32.xlu0 %v748, 15
      %v840 = vpop.permute.xlu0 %839
      %841 = vrot.lane.b32.xlu0 %v750, 15
      %v842 = vpop.permute.xlu0 %841
      %v843 = vsel %vm373, %v828, %v836
      %v844 = vsel %vm373, %v830, %v838
      %v845 = vsel %vm373, %v832, %v840
      %v846 = vsel %vm373, %v834, %v842
      %v847 = vsel %vm373, %v836, %v828
      %v848 = vsel %vm373, %v838, %v830
      %v849 = vsel %vm373, %v840, %v832
      %v850 = vsel %vm373, %v842, %v834
      %v851 = vmul.f32 %v847, %v380
      %v852 = vmul.f32 %v843, %v384
      %v853 = vmul.f32 %v848, %v380
      %v854 = vmul.f32 %v844, %v384
      %v855 = vmul.f32 %v849, %v380
      %v856 = vmul.f32 %v845, %v384
      %v857 = vmul.f32 %v850, %v380
      %v858 = vmul.f32 %v846, %v384
      %859 = vrot.lane.b32.xlu0 %v743, 1
      %v860 = vpop.permute.xlu0 %859
      %861 = vrot.lane.b32.xlu0 %v745, 1
      %v862 = vpop.permute.xlu0 %861
      %863 = vrot.lane.b32.xlu0 %v747, 1
      %v864 = vpop.permute.xlu0 %863
      %865 = vrot.lane.b32.xlu0 %v749, 1
      %v866 = vpop.permute.xlu0 %865
      %867 = vrot.lane.b32.xlu0 %v744, 1
      %v868 = vpop.permute.xlu0 %867
      %869 = vrot.lane.b32.xlu0 %v746, 1
      %v870 = vpop.permute.xlu0 %869
      %871 = vrot.lane.b32.xlu0 %v748, 1
      %v872 = vpop.permute.xlu0 %871
      %873 = vrot.lane.b32.xlu0 %v750, 1
      %v874 = vpop.permute.xlu0 %873
      %v875 = vsel %vm393, %v860, %v868
      %v876 = vsel %vm393, %v862, %v870
      %v877 = vsel %vm393, %v864, %v872
      %v878 = vsel %vm393, %v866, %v874
      %v879 = vsel %vm393, %v868, %v860
      %v880 = vsel %vm393, %v870, %v862
      %v881 = vsel %vm393, %v872, %v864
      %v882 = vsel %vm393, %v874, %v866
      %v883 = vmul.f32 %v879, %v400
      %v884 = vmul.f32 %v875, %v404
      %v885 = vmul.f32 %v880, %v400
      %v886 = vmul.f32 %v876, %v404
      %v887 = vmul.f32 %v881, %v400
      %v888 = vmul.f32 %v877, %v404
      %v889 = vmul.f32 %v882, %v400
      %v890 = vmul.f32 %v878, %v404
      %891 = vrot.lane.b32.xlu0 %v743, 127
      %v892 = vpop.permute.xlu0 %891
      %893 = vrot.lane.b32.xlu0 %v745, 127
      %v894 = vpop.permute.xlu0 %893
      %895 = vrot.lane.b32.xlu0 %v747, 127
      %v896 = vpop.permute.xlu0 %895
      %897 = vrot.lane.b32.xlu0 %v749, 127
      %v898 = vpop.permute.xlu0 %897
      %899 = vrot.lane.b32.xlu0 %v744, 127
      %v900 = vpop.permute.xlu0 %899
      %901 = vrot.lane.b32.xlu0 %v746, 127
      %v902 = vpop.permute.xlu0 %901
      %903 = vrot.lane.b32.xlu0 %v748, 127
      %v904 = vpop.permute.xlu0 %903
      %905 = vrot.lane.b32.xlu0 %v750, 127
      %v906 = vpop.permute.xlu0 %905
      %v907 = vsel %vm413, %v892, %v900
      %v908 = vsel %vm413, %v894, %v902
      %v909 = vsel %vm413, %v896, %v904
      %v910 = vsel %vm413, %v898, %v906
      %v911 = vsel %vm413, %v900, %v892
      %v912 = vsel %vm413, %v902, %v894
      %v913 = vsel %vm413, %v904, %v896
      %v914 = vsel %vm413, %v906, %v898
      %v915 = vmul.f32 %v907, %v420
      %v916 = vmul.f32 %v911, %v424
      %v917 = vmul.f32 %v908, %v420
      %v918 = vmul.f32 %v912, %v424
      %v919 = vmul.f32 %v909, %v420
      %v920 = vmul.f32 %v913, %v424
      %v921 = vmul.f32 %v910, %v420
      %v922 = vmul.f32 %v914, %v424
      %923 = vrot.lane.b32.xlu0 %v743, 113
      %v924 = vpop.permute.xlu0 %923
      %925 = vrot.lane.b32.xlu0 %v745, 113
      %v926 = vpop.permute.xlu0 %925
      %927 = vrot.lane.b32.xlu0 %v747, 113
      %v928 = vpop.permute.xlu0 %927
      %929 = vrot.lane.b32.xlu0 %v749, 113
      %v930 = vpop.permute.xlu0 %929
      %931 = vrot.lane.b32.xlu0 %v744, 113
      %v932 = vpop.permute.xlu0 %931
      %933 = vrot.lane.b32.xlu0 %v746, 113
      %v934 = vpop.permute.xlu0 %933
      %935 = vrot.lane.b32.xlu0 %v748, 113
      %v936 = vpop.permute.xlu0 %935
      %937 = vrot.lane.b32.xlu0 %v750, 113
      %v938 = vpop.permute.xlu0 %937
      %v939 = vsel %vm433, %v924, %v932
      %v940 = vsel %vm433, %v926, %v934
      %v941 = vsel %vm433, %v928, %v936
      %v942 = vsel %vm433, %v930, %v938
      %v943 = vsel %vm433, %v932, %v924
      %v944 = vsel %vm433, %v934, %v926
      %v945 = vsel %vm433, %v936, %v928
      %v946 = vsel %vm433, %v938, %v930
      %v947 = vmul.f32 %v939, %v440
      %v948 = vmul.f32 %v943, %v444
      %v949 = vmul.f32 %v940, %v440
      %v950 = vmul.f32 %v944, %v444
      %v951 = vmul.f32 %v941, %v440
      %v952 = vmul.f32 %v945, %v444
      %v953 = vmul.f32 %v942, %v440
      %v954 = vmul.f32 %v946, %v444
      %955 = vrot.lane.b32.xlu0 %v743, 112
      %v956 = vpop.permute.xlu0 %955
      %957 = vrot.lane.b32.xlu0 %v745, 112
      %v958 = vpop.permute.xlu0 %957
      %959 = vrot.lane.b32.xlu0 %v747, 112
      %v960 = vpop.permute.xlu0 %959
      %961 = vrot.lane.b32.xlu0 %v749, 112
      %v962 = vpop.permute.xlu0 %961
      %963 = vrot.lane.b32.xlu0 %v744, 112
      %v964 = vpop.permute.xlu0 %963
      %965 = vrot.lane.b32.xlu0 %v746, 112
      %v966 = vpop.permute.xlu0 %965
      %967 = vrot.lane.b32.xlu0 %v748, 112
      %v968 = vpop.permute.xlu0 %967
      %969 = vrot.lane.b32.xlu0 %v750, 112
      %v970 = vpop.permute.xlu0 %969
      %v971 = vsel %vm453, %v956, %v964
      %v972 = vsel %vm453, %v958, %v966
      %v973 = vsel %vm453, %v960, %v968
      %v974 = vsel %vm453, %v962, %v970
      %v975 = vsel %vm453, %v964, %v956
      %v976 = vsel %vm453, %v966, %v958
      %v977 = vsel %vm453, %v968, %v960
      %v978 = vsel %vm453, %v970, %v962
      %v979 = vmul.f32 %v971, %v460
      %v980 = vmul.f32 %v975, %v464
      %v981 = vmul.f32 %v972, %v460
      %v982 = vmul.f32 %v976, %v464
      %v983 = vmul.f32 %v973, %v460
      %v984 = vmul.f32 %v977, %v464
      %v985 = vmul.f32 %v974, %v460
      %v986 = vmul.f32 %v978, %v464
      %987 = vrot.lane.b32.xlu0 %v743, 111
      %v988 = vpop.permute.xlu0 %987
      %989 = vrot.lane.b32.xlu0 %v745, 111
      %v990 = vpop.permute.xlu0 %989
      %991 = vrot.lane.b32.xlu0 %v747, 111
      %v992 = vpop.permute.xlu0 %991
      %993 = vrot.lane.b32.xlu0 %v749, 111
      %v994 = vpop.permute.xlu0 %993
      %995 = vrot.lane.b32.xlu0 %v744, 111
      %v996 = vpop.permute.xlu0 %995
      %997 = vrot.lane.b32.xlu0 %v746, 111
      %v998 = vpop.permute.xlu0 %997
      %999 = vrot.lane.b32.xlu0 %v748, 111
      %v1000 = vpop.permute.xlu0 %999
      %1001 = vrot.lane.b32.xlu0 %v750, 111
      %v1002 = vpop.permute.xlu0 %1001
      %v1003 = vsel %vm473, %v988, %v996
      %v1004 = vsel %vm473, %v990, %v998
      %v1005 = vsel %vm473, %v992, %v1000
      %v1006 = vsel %vm473, %v994, %v1002
      %v1007 = vsel %vm473, %v996, %v988
      %v1008 = vsel %vm473, %v998, %v990
      %v1009 = vsel %vm473, %v1000, %v992
      %v1010 = vsel %vm473, %v1002, %v994
      %v1011 = vmul.f32 %v1003, %v480
      %v1012 = vmul.f32 %v1007, %v484
      %v1013 = vmul.f32 %v1004, %v480
      %v1014 = vmul.f32 %v1008, %v484
      %v1015 = vmul.f32 %v1005, %v480
      %v1016 = vmul.f32 %v1009, %v484
      %v1017 = vmul.f32 %v1006, %v480
      %v1018 = vmul.f32 %v1010, %v484
      %vm1019 = vcmask 261120
      %v1021 = vsel %vm1019, %v753, 0
      %v1024 = vsel %vm1019, %v756, 0
      %v1027 = vsel %vm1019, %v759, 0
      %v1030 = vsel %vm1019, %v762, 0
      %1032 = vmatprep.subr.mxu0 %v890
      %1033 = vmatpush1.msra.mxu0 %v889
      %1034 = vmatprep.subr.mxu0 %v888
      %1035 = vmatpush1.msra.mxu0 %v887
      %1036 = vmatprep.subr.mxu0 %v886
      %1037 = vmatpush1.msra.mxu0 %v885
      %1038 = vmatprep.subr.mxu0 %v884
      %1039 = vmatpush1.msra.mxu0 %v883
      %1040 = vmatprep.subr.mxu0 %v858
      %1041 = vmatpush1.msra.mxu0 %v857
      %1042 = vmatprep.subr.mxu0 %v856
      %1043 = vmatpush1.msra.mxu0 %v855
      %1044 = vmatprep.subr.mxu0 %v854
      %1045 = vmatpush1.msra.mxu0 %v853
      %1046 = vmatprep.subr.mxu0 %v852
      %1047 = vmatpush1.msra.mxu0 %v851
      %1048 = vmatprep.subr.mxu0 %v826
      %1049 = vmatpush1.msra.mxu0 %v825
      %1050 = vmatprep.subr.mxu0 %v824
      %1051 = vmatpush1.msra.mxu0 %v823
      %1052 = vmatprep.subr.mxu0 %v822
      %1053 = vmatpush1.msra.mxu0 %v821
      %1054 = vmatprep.subr.mxu0 %v820
      %1055 = vmatpush1.msra.mxu0 %v819
      %1056 = vmatprep.subr.mxu0 %v794
      %1057 = vmatpush1.msra.mxu0 %v793
      %1058 = vmatprep.subr.mxu0 %v792
      %1059 = vmatpush1.msra.mxu0 %v791
      %1060 = vmatprep.subr.mxu0 %v790
      %1061 = vmatpush1.msra.mxu0 %v789
      %1062 = vmatprep.subr.mxu0 %v788
      %1063 = vmatpush1.msra.mxu0 %v787
      %1064 = vmatprep.subr.mxu0 %v986
      %1065 = vmatpush2.msra.mxu0 %v985
      %1066 = vmatprep.subr.mxu0 %v984
      %1067 = vmatpush2.msra.mxu0 %v983
      %1068 = vmatprep.subr.mxu0 %v982
      %1069 = vmatpush2.msra.mxu0 %v981
      %1070 = vmatprep.subr.mxu0 %v980
      %1071 = vmatpush2.msra.mxu0 %v979
      %1072 = vmatprep.subr.mxu0 %v954
      %1073 = vmatpush2.msra.mxu0 %v953
      %1074 = vmatprep.subr.mxu0 %v952
      %1075 = vmatpush2.msra.mxu0 %v951
      %1076 = vmatprep.subr.mxu0 %v950
      %1077 = vmatpush2.msra.mxu0 %v949
      %1078 = vmatprep.subr.mxu0 %v948
      %1079 = vmatpush2.msra.mxu0 %v947
      %1080 = vmatprep.subr.mxu0 %v922
      %1081 = vmatpush2.msra.mxu0 %v921
      %1082 = vmatprep.subr.mxu0 %v920
      %1083 = vmatpush2.msra.mxu0 %v919
      %1084 = vmatprep.subr.mxu0 %v918
      %1085 = vmatpush2.msra.mxu0 %v917
      %1086 = vmatprep.subr.mxu0 %v916
      %1087 = vmatpush2.msra.mxu0 %v915
      %1088 = vmatprep.subr.mxu0 %v750
      %1089 = vmatpush2.msra.mxu0 %v749
      %1090 = vmatprep.subr.mxu0 %v748
      %1091 = vmatpush2.msra.mxu0 %v747
      %1092 = vmatprep.subr.mxu0 %v746
      %1093 = vmatpush2.msra.mxu0 %v745
      %1094 = vmatprep.subr.mxu0 %v744
      %1095 = vmatpush2.msra.mxu0 %v743
      %1096 = vmatprep.mubr.f32.mxu0 %v752
      %1097 = vmatmul.mubr.f32.gmra.mxu0 %v751
      %v1098 = vpop.f32.mrf.mxu0
      %v1099 = vadd.f32 0.0, %v1098
      %v1100 = vpop.f32.mrf.mxu0
      %v1101 = vadd.f32 0.0, %v1100
      %1102 = vmatprep.mubr.f32.mxu0 %v755
      %1103 = vmatmul.mubr.f32.gmra.mxu0 %v754
      %v1104 = vpop.f32.mrf.mxu0
      %v1105 = vadd.f32 0.0, %v1104
      %v1106 = vpop.f32.mrf.mxu0
      %v1107 = vadd.f32 0.0, %v1106
      %1108 = vmatprep.mubr.f32.mxu0 %v758
      %1109 = vmatmul.mubr.f32.gmra.mxu0 %v757
      %v1110 = vpop.f32.mrf.mxu0
      %v1111 = vadd.f32 0.0, %v1110
      %v1112 = vpop.f32.mrf.mxu0
      %v1113 = vadd.f32 0.0, %v1112
      %1114 = vmatprep.mubr.f32.mxu0 %v761
      %1115 = vmatmul.mubr.f32.gmra.mxu0 %v760
      %v1116 = vpop.f32.mrf.mxu0
      %v1117 = vadd.f32 0.0, %v1116
      %v1118 = vpop.f32.mrf.mxu0
      %v1119 = vadd.f32 0.0, %v1118
      %1120 = vdwg.mxu0
      %1121 = vmatprep.subr.mxu0 0.0
      %1122 = vmatpush1.msra.mxu0 0.0
      %1123 = vmatprep.subr.mxu0 0.0
      %1124 = vmatpush1.msra.mxu0 0.0
      %1125 = vmatprep.subr.mxu0 0.0
      %1126 = vmatpush1.msra.mxu0 0.0
      %1127 = vmatprep.subr.mxu0 0.0
      %1128 = vmatpush1.msra.mxu0 0.0
      %1129 = vmatprep.subr.mxu0 0.0
      %1130 = vmatpush1.msra.mxu0 0.0
      %1131 = vmatprep.subr.mxu0 0.0
      %1132 = vmatpush1.msra.mxu0 0.0
      %1133 = vmatprep.subr.mxu0 0.0
      %1134 = vmatpush1.msra.mxu0 0.0
      %1135 = vmatprep.subr.mxu0 0.0
      %1136 = vmatpush1.msra.mxu0 0.0
      %1137 = vmatprep.subr.mxu0 0.0
      %1138 = vmatpush1.msra.mxu0 0.0
      %1139 = vmatprep.subr.mxu0 0.0
      %1140 = vmatpush1.msra.mxu0 0.0
      %1141 = vmatprep.subr.mxu0 0.0
      %1142 = vmatpush1.msra.mxu0 0.0
      %1143 = vmatprep.subr.mxu0 0.0
      %1144 = vmatpush1.msra.mxu0 0.0
      %1145 = vmatprep.subr.mxu0 %v1018
      %1146 = vmatpush1.msra.mxu0 %v1017
      %1147 = vmatprep.subr.mxu0 %v1016
      %1148 = vmatpush1.msra.mxu0 %v1015
      %1149 = vmatprep.subr.mxu0 %v1014
      %1150 = vmatpush1.msra.mxu0 %v1013
      %1151 = vmatprep.subr.mxu0 %v1012
      %1152 = vmatpush1.msra.mxu0 %v1011
      %1153 = vmatprep.subr.mxu0 0.0
      %1154 = vmatpush2.msra.mxu0 0.0
      %1155 = vmatprep.subr.mxu0 0.0
      %1156 = vmatpush2.msra.mxu0 0.0
      %1157 = vmatprep.subr.mxu0 0.0
      %1158 = vmatpush2.msra.mxu0 0.0
      %1159 = vmatprep.subr.mxu0 0.0
      %1160 = vmatpush2.msra.mxu0 0.0
      %1161 = vmatprep.subr.mxu0 0.0
      %1162 = vmatpush2.msra.mxu0 0.0
      %1163 = vmatprep.subr.mxu0 0.0
      %1164 = vmatpush2.msra.mxu0 0.0
      %1165 = vmatprep.subr.mxu0 0.0
      %1166 = vmatpush2.msra.mxu0 0.0
      %1167 = vmatprep.subr.mxu0 0.0
      %1168 = vmatpush2.msra.mxu0 0.0
      %1169 = vmatprep.subr.mxu0 0.0
      %1170 = vmatpush2.msra.mxu0 0.0
      %1171 = vmatprep.subr.mxu0 0.0
      %1172 = vmatpush2.msra.mxu0 0.0
      %1173 = vmatprep.subr.mxu0 0.0
      %1174 = vmatpush2.msra.mxu0 0.0
      %1175 = vmatprep.subr.mxu0 0.0
      %1176 = vmatpush2.msra.mxu0 0.0
      %1177 = vmatprep.subr.mxu0 0.0
      %1178 = vmatpush2.msra.mxu0 0.0
      %1179 = vmatprep.subr.mxu0 0.0
      %1180 = vmatpush2.msra.mxu0 0.0
      %1181 = vmatprep.subr.mxu0 0.0
      %1182 = vmatpush2.msra.mxu0 0.0
      %1183 = vmatprep.subr.mxu0 0.0
      %1184 = vmatpush2.msra.mxu0 0.0
      %1185 = vmatprep.mubr.f32.mxu0 0.0
      %1186 = vmatmul.mubr.f32.gmra.mxu0 %v1021
      %v1187 = vpop.f32.mrf.mxu0
      %v1188 = vadd.f32 %v1099, %v1187
      %v1189 = vpop.f32.mrf.mxu0
      %v1190 = vadd.f32 %v1101, %v1189
      %1191 = vmatprep.mubr.f32.mxu0 0.0
      %1192 = vmatmul.mubr.f32.gmra.mxu0 %v1024
      %v1193 = vpop.f32.mrf.mxu0
      %v1194 = vadd.f32 %v1105, %v1193
      %v1195 = vpop.f32.mrf.mxu0
      %v1196 = vadd.f32 %v1107, %v1195
      %1197 = vmatprep.mubr.f32.mxu0 0.0
      %1198 = vmatmul.mubr.f32.gmra.mxu0 %v1027
      %v1199 = vpop.f32.mrf.mxu0
      %v1200 = vadd.f32 %v1111, %v1199
      %v1201 = vpop.f32.mrf.mxu0
      %v1202 = vadd.f32 %v1113, %v1201
      %1203 = vmatprep.mubr.f32.mxu0 0.0
      %1204 = vmatmul.mubr.f32.gmra.mxu0 %v1030
      %v1205 = vpop.f32.mrf.mxu0
      %v1206 = vadd.f32 %v1117, %v1205
      %v1207 = vpop.f32.mrf.mxu0
      %v1208 = vadd.f32 %v1119, %v1207
      %1209 = vdwg.mxu0
      %v1210 = vadd.f32 %v1188, %v1190
      %1211 = vadd.xlane.f32.xlu0 %v1210
      %v1212 = vpop.xlane.xlu0 %1211
      %v1213 = vadd.f32 %v1194, %v1196
      %1214 = vadd.xlane.f32.xlu0 %v1213
      %v1215 = vpop.xlane.xlu0 %1214
      %v1216 = vadd.f32 %v1200, %v1202
      %1217 = vadd.xlane.f32.xlu0 %v1216
      %v1218 = vpop.xlane.xlu0 %1217
      %v1219 = vadd.f32 %v1206, %v1208
      %1220 = vadd.xlane.f32.xlu0 %v1219
      %v1221 = vpop.xlane.xlu0 %1220
      %v1222 = vmul.f32 %v1212, 0.00390625
      %v1223 = vmul.f32 %v1215, 0.00390625
      %v1224 = vmul.f32 %v1218, 0.00390625
      %v1225 = vmul.f32 %v1221, 0.00390625
      %v1226 = vmul.f32 %v1188, %v1188
      %v1227 = vmul.f32 %v1190, %v1190
      %v1228 = vmul.f32 %v1194, %v1194
      %v1229 = vmul.f32 %v1196, %v1196
      %v1230 = vmul.f32 %v1200, %v1200
      %v1231 = vmul.f32 %v1202, %v1202
      %v1232 = vmul.f32 %v1206, %v1206
      %v1233 = vmul.f32 %v1208, %v1208
      %v1234 = vadd.f32 %v1226, %v1227
      %1235 = vadd.xlane.f32.xlu0 %v1234
      %v1236 = vpop.xlane.xlu0 %1235
      %v1237 = vadd.f32 %v1228, %v1229
      %1238 = vadd.xlane.f32.xlu0 %v1237
      %v1239 = vpop.xlane.xlu0 %1238
      %v1240 = vadd.f32 %v1230, %v1231
      %1241 = vadd.xlane.f32.xlu0 %v1240
      %v1242 = vpop.xlane.xlu0 %1241
      %v1243 = vadd.f32 %v1232, %v1233
      %1244 = vadd.xlane.f32.xlu0 %v1243
      %v1245 = vpop.xlane.xlu0 %1244
      %v1246 = vmul.f32 %v1236, 0.00390625
      %v1247 = vmul.f32 %v1239, 0.00390625
      %v1248 = vmul.f32 %v1242, 0.00390625
      %v1249 = vmul.f32 %v1245, 0.00390625
      %v1250 = vmul.f32 %v1222, %v1222
      %v1251 = vmul.f32 %v1223, %v1223
      %v1252 = vmul.f32 %v1224, %v1224
      %v1253 = vmul.f32 %v1225, %v1225
      %v1254 = vsub.f32 %v1246, %v1250
      %v1255 = vsub.f32 %v1247, %v1251
      %v1256 = vsub.f32 %v1248, %v1252
      %v1257 = vsub.f32 %v1249, %v1253
      %v1258 = vsub.f32 %v1188, %v1222
      %v1259 = vsub.f32 %v1190, %v1222
      %v1260 = vsub.f32 %v1194, %v1223
      %v1261 = vsub.f32 %v1196, %v1223
      %v1262 = vsub.f32 %v1200, %v1224
      %v1263 = vsub.f32 %v1202, %v1224
      %v1264 = vsub.f32 %v1206, %v1225
      %v1265 = vsub.f32 %v1208, %v1225
      %v1266 = vadd.f32 %v1254, 1e-05
      %v1267 = vadd.f32 %v1255, 1e-05
      %v1268 = vadd.f32 %v1256, 1e-05
      %v1269 = vadd.f32 %v1257, 1e-05
      %v1270 = vrsqrt.pop %v1266
      %v1271 = vrsqrt.pop %v1267
      %v1272 = vrsqrt.pop %v1268
      %v1273 = vrsqrt.pop %v1269
      %v1274 = vmul.f32 %v1258, %v1270
      %v1275 = vmul.f32 %v1259, %v1270
      %v1276 = vmul.f32 %v1260, %v1271
      %v1277 = vmul.f32 %v1261, %v1271
      %v1278 = vmul.f32 %v1262, %v1272
      %v1279 = vmul.f32 %v1263, %v1272
      %v1280 = vmul.f32 %v1264, %v1273
      %v1281 = vmul.f32 %v1265, %v1273
      %s1282 = scalar_lea.vmem %s6, 32
      %v1283 = vld [vmem:[%s1282] sm:$0xff]
      %v1284 = vld [vmem:[%s1282 + $0x8] sm:$0xff]
      %v1285 = vld [vmem:[%s1282 + $0x10] sm:$0xff]
      %v1286 = vld [vmem:[%s1282 + $0x18] sm:$0xff]
      %1288 = vset.pattern.permute.xlu0 0
      %1289 = vperm.xlu0 %1288, %v1283
      %v1290 = vpop.permute.xlu0 %1289
      %1293 = vset.pattern.permute.xlu0 0
      %1294 = vperm.xlu0 %1293, %v1284
      %v1295 = vpop.permute.xlu0 %1294
      %1298 = vset.pattern.permute.xlu0 0
      %1299 = vperm.xlu0 %1298, %v1285
      %v1300 = vpop.permute.xlu0 %1299
      %1303 = vset.pattern.permute.xlu0 0
      %1304 = vperm.xlu0 %1303, %v1286
      %v1305 = vpop.permute.xlu0 %1304
      %v1307 = vmul.f32 %v1274, %v1290
      %v1308 = vmul.f32 %v1275, %v1290
      %v1309 = vmul.f32 %v1276, %v1295
      %v1310 = vmul.f32 %v1277, %v1295
      %v1311 = vmul.f32 %v1278, %v1300
      %v1312 = vmul.f32 %v1279, %v1300
      %v1313 = vmul.f32 %v1280, %v1305
      %v1314 = vmul.f32 %v1281, %v1305
      %s1315 = scalar_lea.vmem %s7, 32
      %v1316 = vld [vmem:[%s1315] sm:$0xff]
      %v1317 = vld [vmem:[%s1315 + $0x8] sm:$0xff]
      %v1318 = vld [vmem:[%s1315 + $0x10] sm:$0xff]
      %v1319 = vld [vmem:[%s1315 + $0x18] sm:$0xff]
      %1321 = vset.pattern.permute.xlu0 0
      %1322 = vperm.xlu0 %1321, %v1316
      %v1323 = vpop.permute.xlu0 %1322
      %1326 = vset.pattern.permute.xlu0 0
      %1327 = vperm.xlu0 %1326, %v1317
      %v1328 = vpop.permute.xlu0 %1327
      %1331 = vset.pattern.permute.xlu0 0
      %1332 = vperm.xlu0 %1331, %v1318
      %v1333 = vpop.permute.xlu0 %1332
      %1336 = vset.pattern.permute.xlu0 0
      %1337 = vperm.xlu0 %1336, %v1319
      %v1338 = vpop.permute.xlu0 %1337
      %v1340 = vadd.f32 %v1307, %v1323
      %v1341 = vadd.f32 %v1308, %v1323
      %v1342 = vadd.f32 %v1309, %v1328
      %v1343 = vadd.f32 %v1310, %v1328
      %v1344 = vadd.f32 %v1311, %v1333
      %v1345 = vadd.f32 %v1312, %v1333
      %v1346 = vadd.f32 %v1313, %v1338
      %v1347 = vadd.f32 %v1314, %v1338
      %vm1348 = vcmp.ge.f32.partialorder %v1340, 0.0
      %vm1349 = vcmp.ge.f32.partialorder %v1341, 0.0
      %vm1350 = vcmp.ge.f32.partialorder %v1342, 0.0
      %vm1351 = vcmp.ge.f32.partialorder %v1343, 0.0
      %vm1352 = vcmp.ge.f32.partialorder %v1344, 0.0
      %vm1353 = vcmp.ge.f32.partialorder %v1345, 0.0
      %vm1354 = vcmp.ge.f32.partialorder %v1346, 0.0
      %vm1355 = vcmp.ge.f32.partialorder %v1347, 0.0
      %v1356 = vmul.f32 %v1340, 0.01
      %v1357 = vmul.f32 %v1341, 0.01
      %v1358 = vmul.f32 %v1342, 0.01
      %v1359 = vmul.f32 %v1343, 0.01
      %v1360 = vmul.f32 %v1344, 0.01
      %v1361 = vmul.f32 %v1345, 0.01
      %v1362 = vmul.f32 %v1346, 0.01
      %v1363 = vmul.f32 %v1347, 0.01
      %v1364 = vsel %vm1348, %v1340, %v1356
      %v1365 = vsel %vm1349, %v1341, %v1357
      %v1366 = vsel %vm1350, %v1342, %v1358
      %v1367 = vsel %vm1351, %v1343, %v1359
      %v1368 = vsel %vm1352, %v1344, %v1360
      %v1369 = vsel %vm1353, %v1345, %v1361
      %v1370 = vsel %vm1354, %v1346, %v1362
      %v1371 = vsel %vm1355, %v1347, %v1363
      %s1372 = scalar_lea.vmem %s3, 96
      %v1373 = vld [vmem:[%s1372] sm:$0xff]
      %v1374 = vld [vmem:[%s1372 + $0x8] sm:$0xff]
      %v1375 = vld [vmem:[%s1372 + $0x10] sm:$0xff]
      %v1376 = vld [vmem:[%s1372 + $0x18] sm:$0xff]
      %v1377 = vld [vmem:[%s1372 + $0x20] sm:$0xff]
      %v1378 = vld [vmem:[%s1372 + $0x28] sm:$0xff]
      %v1379 = vld [vmem:[%s1372 + $0x30] sm:$0xff]
      %v1380 = vld [vmem:[%s1372 + $0x38] sm:$0xff]
      %v1381 = vld [vmem:[%s1372 + $0x40] sm:$0xff]
      %v1382 = vld [vmem:[%s1372 + $0x48] sm:$0xff]
      %v1383 = vld [vmem:[%s1372 + $0x50] sm:$0xff]
      %v1384 = vld [vmem:[%s1372 + $0x58] sm:$0xff]
      %1385 = vrot.lane.b32.xlu0 %v1364, 17
      %v1386 = vpop.permute.xlu0 %1385
      %1387 = vrot.lane.b32.xlu0 %v1366, 17
      %v1388 = vpop.permute.xlu0 %1387
      %1389 = vrot.lane.b32.xlu0 %v1368, 17
      %v1390 = vpop.permute.xlu0 %1389
      %1391 = vrot.lane.b32.xlu0 %v1370, 17
      %v1392 = vpop.permute.xlu0 %1391
      %1393 = vrot.lane.b32.xlu0 %v1365, 17
      %v1394 = vpop.permute.xlu0 %1393
      %1395 = vrot.lane.b32.xlu0 %v1367, 17
      %v1396 = vpop.permute.xlu0 %1395
      %1397 = vrot.lane.b32.xlu0 %v1369, 17
      %v1398 = vpop.permute.xlu0 %1397
      %1399 = vrot.lane.b32.xlu0 %v1371, 17
      %v1400 = vpop.permute.xlu0 %1399
      %v1401 = vsel %vm333, %v1386, %v1394
      %v1402 = vsel %vm333, %v1388, %v1396
      %v1403 = vsel %vm333, %v1390, %v1398
      %v1404 = vsel %vm333, %v1392, %v1400
      %v1405 = vsel %vm333, %v1394, %v1386
      %v1406 = vsel %vm333, %v1396, %v1388
      %v1407 = vsel %vm333, %v1398, %v1390
      %v1408 = vsel %vm333, %v1400, %v1392
      %v1409 = vmul.f32 %v1405, %v340
      %v1410 = vmul.f32 %v1401, %v344
      %v1411 = vmul.f32 %v1406, %v340
      %v1412 = vmul.f32 %v1402, %v344
      %v1413 = vmul.f32 %v1407, %v340
      %v1414 = vmul.f32 %v1403, %v344
      %v1415 = vmul.f32 %v1408, %v340
      %v1416 = vmul.f32 %v1404, %v344
      %1417 = vrot.lane.b32.xlu0 %v1364, 16
      %v1418 = vpop.permute.xlu0 %1417
      %1419 = vrot.lane.b32.xlu0 %v1366, 16
      %v1420 = vpop.permute.xlu0 %1419
      %1421 = vrot.lane.b32.xlu0 %v1368, 16
      %v1422 = vpop.permute.xlu0 %1421
      %1423 = vrot.lane.b32.xlu0 %v1370, 16
      %v1424 = vpop.permute.xlu0 %1423
      %1425 = vrot.lane.b32.xlu0 %v1365, 16
      %v1426 = vpop.permute.xlu0 %1425
      %1427 = vrot.lane.b32.xlu0 %v1367, 16
      %v1428 = vpop.permute.xlu0 %1427
      %1429 = vrot.lane.b32.xlu0 %v1369, 16
      %v1430 = vpop.permute.xlu0 %1429
      %1431 = vrot.lane.b32.xlu0 %v1371, 16
      %v1432 = vpop.permute.xlu0 %1431
      %v1433 = vsel %vm353, %v1418, %v1426
      %v1434 = vsel %vm353, %v1420, %v1428
      %v1435 = vsel %vm353, %v1422, %v1430
      %v1436 = vsel %vm353, %v1424, %v1432
      %v1437 = vsel %vm353, %v1426, %v1418
      %v1438 = vsel %vm353, %v1428, %v1420
      %v1439 = vsel %vm353, %v1430, %v1422
      %v1440 = vsel %vm353, %v1432, %v1424
      %v1441 = vmul.f32 %v1437, %v360
      %v1442 = vmul.f32 %v1433, %v364
      %v1443 = vmul.f32 %v1438, %v360
      %v1444 = vmul.f32 %v1434, %v364
      %v1445 = vmul.f32 %v1439, %v360
      %v1446 = vmul.f32 %v1435, %v364
      %v1447 = vmul.f32 %v1440, %v360
      %v1448 = vmul.f32 %v1436, %v364
      %1449 = vrot.lane.b32.xlu0 %v1364, 15
      %v1450 = vpop.permute.xlu0 %1449
      %1451 = vrot.lane.b32.xlu0 %v1366, 15
      %v1452 = vpop.permute.xlu0 %1451
      %1453 = vrot.lane.b32.xlu0 %v1368, 15
      %v1454 = vpop.permute.xlu0 %1453
      %1455 = vrot.lane.b32.xlu0 %v1370, 15
      %v1456 = vpop.permute.xlu0 %1455
      %1457 = vrot.lane.b32.xlu0 %v1365, 15
      %v1458 = vpop.permute.xlu0 %1457
      %1459 = vrot.lane.b32.xlu0 %v1367, 15
      %v1460 = vpop.permute.xlu0 %1459
      %1461 = vrot.lane.b32.xlu0 %v1369, 15
      %v1462 = vpop.permute.xlu0 %1461
      %1463 = vrot.lane.b32.xlu0 %v1371, 15
      %v1464 = vpop.permute.xlu0 %1463
      %v1465 = vsel %vm373, %v1450, %v1458
      %v1466 = vsel %vm373, %v1452, %v1460
      %v1467 = vsel %vm373, %v1454, %v1462
      %v1468 = vsel %vm373, %v1456, %v1464
      %v1469 = vsel %vm373, %v1458, %v1450
      %v1470 = vsel %vm373, %v1460, %v1452
      %v1471 = vsel %vm373, %v1462, %v1454
      %v1472 = vsel %vm373, %v1464, %v1456
      %v1473 = vmul.f32 %v1469, %v380
      %v1474 = vmul.f32 %v1465, %v384
      %v1475 = vmul.f32 %v1470, %v380
      %v1476 = vmul.f32 %v1466, %v384
      %v1477 = vmul.f32 %v1471, %v380
      %v1478 = vmul.f32 %v1467, %v384
      %v1479 = vmul.f32 %v1472, %v380
      %v1480 = vmul.f32 %v1468, %v384
      %1481 = vrot.lane.b32.xlu0 %v1364, 1
      %v1482 = vpop.permute.xlu0 %1481
      %1483 = vrot.lane.b32.xlu0 %v1366, 1
      %v1484 = vpop.permute.xlu0 %1483
      %1485 = vrot.lane.b32.xlu0 %v1368, 1
      %v1486 = vpop.permute.xlu0 %1485
      %1487 = vrot.lane.b32.xlu0 %v1370, 1
      %v1488 = vpop.permute.xlu0 %1487
      %1489 = vrot.lane.b32.xlu0 %v1365, 1
      %v1490 = vpop.permute.xlu0 %1489
      %1491 = vrot.lane.b32.xlu0 %v1367, 1
      %v1492 = vpop.permute.xlu0 %1491
      %1493 = vrot.lane.b32.xlu0 %v1369, 1
      %v1494 = vpop.permute.xlu0 %1493
      %1495 = vrot.lane.b32.xlu0 %v1371, 1
      %v1496 = vpop.permute.xlu0 %1495
      %v1497 = vsel %vm393, %v1482, %v1490
      %v1498 = vsel %vm393, %v1484, %v1492
      %v1499 = vsel %vm393, %v1486, %v1494
      %v1500 = vsel %vm393, %v1488, %v1496
      %v1501 = vsel %vm393, %v1490, %v1482
      %v1502 = vsel %vm393, %v1492, %v1484
      %v1503 = vsel %vm393, %v1494, %v1486
      %v1504 = vsel %vm393, %v1496, %v1488
      %v1505 = vmul.f32 %v1501, %v400
      %v1506 = vmul.f32 %v1497, %v404
      %v1507 = vmul.f32 %v1502, %v400
      %v1508 = vmul.f32 %v1498, %v404
      %v1509 = vmul.f32 %v1503, %v400
      %v1510 = vmul.f32 %v1499, %v404
      %v1511 = vmul.f32 %v1504, %v400
      %v1512 = vmul.f32 %v1500, %v404
      %1513 = vrot.lane.b32.xlu0 %v1364, 127
      %v1514 = vpop.permute.xlu0 %1513
      %1515 = vrot.lane.b32.xlu0 %v1366, 127
      %v1516 = vpop.permute.xlu0 %1515
      %1517 = vrot.lane.b32.xlu0 %v1368, 127
      %v1518 = vpop.permute.xlu0 %1517
      %1519 = vrot.lane.b32.xlu0 %v1370, 127
      %v1520 = vpop.permute.xlu0 %1519
      %1521 = vrot.lane.b32.xlu0 %v1365, 127
      %v1522 = vpop.permute.xlu0 %1521
      %1523 = vrot.lane.b32.xlu0 %v1367, 127
      %v1524 = vpop.permute.xlu0 %1523
      %1525 = vrot.lane.b32.xlu0 %v1369, 127
      %v1526 = vpop.permute.xlu0 %1525
      %1527 = vrot.lane.b32.xlu0 %v1371, 127
      %v1528 = vpop.permute.xlu0 %1527
      %v1529 = vsel %vm413, %v1514, %v1522
      %v1530 = vsel %vm413, %v1516, %v1524
      %v1531 = vsel %vm413, %v1518, %v1526
      %v1532 = vsel %vm413, %v1520, %v1528
      %v1533 = vsel %vm413, %v1522, %v1514
      %v1534 = vsel %vm413, %v1524, %v1516
      %v1535 = vsel %vm413, %v1526, %v1518
      %v1536 = vsel %vm413, %v1528, %v1520
      %v1537 = vmul.f32 %v1529, %v420
      %v1538 = vmul.f32 %v1533, %v424
      %v1539 = vmul.f32 %v1530, %v420
      %v1540 = vmul.f32 %v1534, %v424
      %v1541 = vmul.f32 %v1531, %v420
      %v1542 = vmul.f32 %v1535, %v424
      %v1543 = vmul.f32 %v1532, %v420
      %v1544 = vmul.f32 %v1536, %v424
      %1545 = vrot.lane.b32.xlu0 %v1364, 113
      %v1546 = vpop.permute.xlu0 %1545
      %1547 = vrot.lane.b32.xlu0 %v1366, 113
      %v1548 = vpop.permute.xlu0 %1547
      %1549 = vrot.lane.b32.xlu0 %v1368, 113
      %v1550 = vpop.permute.xlu0 %1549
      %1551 = vrot.lane.b32.xlu0 %v1370, 113
      %v1552 = vpop.permute.xlu0 %1551
      %1553 = vrot.lane.b32.xlu0 %v1365, 113
      %v1554 = vpop.permute.xlu0 %1553
      %1555 = vrot.lane.b32.xlu0 %v1367, 113
      %v1556 = vpop.permute.xlu0 %1555
      %1557 = vrot.lane.b32.xlu0 %v1369, 113
      %v1558 = vpop.permute.xlu0 %1557
      %1559 = vrot.lane.b32.xlu0 %v1371, 113
      %v1560 = vpop.permute.xlu0 %1559
      %v1561 = vsel %vm433, %v1546, %v1554
      %v1562 = vsel %vm433, %v1548, %v1556
      %v1563 = vsel %vm433, %v1550, %v1558
      %v1564 = vsel %vm433, %v1552, %v1560
      %v1565 = vsel %vm433, %v1554, %v1546
      %v1566 = vsel %vm433, %v1556, %v1548
      %v1567 = vsel %vm433, %v1558, %v1550
      %v1568 = vsel %vm433, %v1560, %v1552
      %v1569 = vmul.f32 %v1561, %v440
      %v1570 = vmul.f32 %v1565, %v444
      %v1571 = vmul.f32 %v1562, %v440
      %v1572 = vmul.f32 %v1566, %v444
      %v1573 = vmul.f32 %v1563, %v440
      %v1574 = vmul.f32 %v1567, %v444
      %v1575 = vmul.f32 %v1564, %v440
      %v1576 = vmul.f32 %v1568, %v444
      %1577 = vrot.lane.b32.xlu0 %v1364, 112
      %v1578 = vpop.permute.xlu0 %1577
      %1579 = vrot.lane.b32.xlu0 %v1366, 112
      %v1580 = vpop.permute.xlu0 %1579
      %1581 = vrot.lane.b32.xlu0 %v1368, 112
      %v1582 = vpop.permute.xlu0 %1581
      %1583 = vrot.lane.b32.xlu0 %v1370, 112
      %v1584 = vpop.permute.xlu0 %1583
      %1585 = vrot.lane.b32.xlu0 %v1365, 112
      %v1586 = vpop.permute.xlu0 %1585
      %1587 = vrot.lane.b32.xlu0 %v1367, 112
      %v1588 = vpop.permute.xlu0 %1587
      %1589 = vrot.lane.b32.xlu0 %v1369, 112
      %v1590 = vpop.permute.xlu0 %1589
      %1591 = vrot.lane.b32.xlu0 %v1371, 112
      %v1592 = vpop.permute.xlu0 %1591
      %v1593 = vsel %vm453, %v1578, %v1586
      %v1594 = vsel %vm453, %v1580, %v1588
      %v1595 = vsel %vm453, %v1582, %v1590
      %v1596 = vsel %vm453, %v1584, %v1592
      %v1597 = vsel %vm453, %v1586, %v1578
      %v1598 = vsel %vm453, %v1588, %v1580
      %v1599 = vsel %vm453, %v1590, %v1582
      %v1600 = vsel %vm453, %v1592, %v1584
      %v1601 = vmul.f32 %v1593, %v460
      %v1602 = vmul.f32 %v1597, %v464
      %v1603 = vmul.f32 %v1594, %v460
      %v1604 = vmul.f32 %v1598, %v464
      %v1605 = vmul.f32 %v1595, %v460
      %v1606 = vmul.f32 %v1599, %v464
      %v1607 = vmul.f32 %v1596, %v460
      %v1608 = vmul.f32 %v1600, %v464
      %1609 = vrot.lane.b32.xlu0 %v1364, 111
      %v1610 = vpop.permute.xlu0 %1609
      %1611 = vrot.lane.b32.xlu0 %v1366, 111
      %v1612 = vpop.permute.xlu0 %1611
      %1613 = vrot.lane.b32.xlu0 %v1368, 111
      %v1614 = vpop.permute.xlu0 %1613
      %1615 = vrot.lane.b32.xlu0 %v1370, 111
      %v1616 = vpop.permute.xlu0 %1615
      %1617 = vrot.lane.b32.xlu0 %v1365, 111
      %v1618 = vpop.permute.xlu0 %1617
      %1619 = vrot.lane.b32.xlu0 %v1367, 111
      %v1620 = vpop.permute.xlu0 %1619
      %1621 = vrot.lane.b32.xlu0 %v1369, 111
      %v1622 = vpop.permute.xlu0 %1621
      %1623 = vrot.lane.b32.xlu0 %v1371, 111
      %v1624 = vpop.permute.xlu0 %1623
      %v1625 = vsel %vm473, %v1610, %v1618
      %v1626 = vsel %vm473, %v1612, %v1620
      %v1627 = vsel %vm473, %v1614, %v1622
      %v1628 = vsel %vm473, %v1616, %v1624
      %v1629 = vsel %vm473, %v1618, %v1610
      %v1630 = vsel %vm473, %v1620, %v1612
      %v1631 = vsel %vm473, %v1622, %v1614
      %v1632 = vsel %vm473, %v1624, %v1616
      %v1633 = vmul.f32 %v1625, %v480
      %v1634 = vmul.f32 %v1629, %v484
      %v1635 = vmul.f32 %v1626, %v480
      %v1636 = vmul.f32 %v1630, %v484
      %v1637 = vmul.f32 %v1627, %v480
      %v1638 = vmul.f32 %v1631, %v484
      %v1639 = vmul.f32 %v1628, %v480
      %v1640 = vmul.f32 %v1632, %v484
      %v1642 = vsel %vm1019, %v1375, 0
      %v1645 = vsel %vm1019, %v1378, 0
      %v1648 = vsel %vm1019, %v1381, 0
      %v1651 = vsel %vm1019, %v1384, 0
      %1653 = vmatprep.subr.mxu0 %v1512
      %1654 = vmatpush1.msra.mxu0 %v1511
      %1655 = vmatprep.subr.mxu0 %v1510
      %1656 = vmatpush1.msra.mxu0 %v1509
      %1657 = vmatprep.subr.mxu0 %v1508
      %1658 = vmatpush1.msra.mxu0 %v1507
      %1659 = vmatprep.subr.mxu0 %v1506
      %1660 = vmatpush1.msra.mxu0 %v1505
      %1661 = vmatprep.subr.mxu0 %v1480
      %1662 = vmatpush1.msra.mxu0 %v1479
      %1663 = vmatprep.subr.mxu0 %v1478
      %1664 = vmatpush1.msra.mxu0 %v1477
      %1665 = vmatprep.subr.mxu0 %v1476
      %1666 = vmatpush1.msra.mxu0 %v1475
      %1667 = vmatprep.subr.mxu0 %v1474
      %1668 = vmatpush1.msra.mxu0 %v1473
      %1669 = vmatprep.subr.mxu0 %v1448
      %1670 = vmatpush1.msra.mxu0 %v1447
      %1671 = vmatprep.subr.mxu0 %v1446
      %1672 = vmatpush1.msra.mxu0 %v1445
      %1673 = vmatprep.subr.mxu0 %v1444
      %1674 = vmatpush1.msra.mxu0 %v1443
      %1675 = vmatprep.subr.mxu0 %v1442
      %1676 = vmatpush1.msra.mxu0 %v1441
      %1677 = vmatprep.subr.mxu0 %v1416
      %1678 = vmatpush1.msra.mxu0 %v1415
      %1679 = vmatprep.subr.mxu0 %v1414
      %1680 = vmatpush1.msra.mxu0 %v1413
      %1681 = vmatprep.subr.mxu0 %v1412
      %1682 = vmatpush1.msra.mxu0 %v1411
      %1683 = vmatprep.subr.mxu0 %v1410
      %1684 = vmatpush1.msra.mxu0 %v1409
      %1685 = vmatprep.subr.mxu0 %v1608
      %1686 = vmatpush2.msra.mxu0 %v1607
      %1687 = vmatprep.subr.mxu0 %v1606
      %1688 = vmatpush2.msra.mxu0 %v1605
      %1689 = vmatprep.subr.mxu0 %v1604
      %1690 = vmatpush2.msra.mxu0 %v1603
      %1691 = vmatprep.subr.mxu0 %v1602
      %1692 = vmatpush2.msra.mxu0 %v1601
      %1693 = vmatprep.subr.mxu0 %v1576
      %1694 = vmatpush2.msra.mxu0 %v1575
      %1695 = vmatprep.subr.mxu0 %v1574
      %1696 = vmatpush2.msra.mxu0 %v1573
      %1697 = vmatprep.subr.mxu0 %v1572
      %1698 = vmatpush2.msra.mxu0 %v1571
      %1699 = vmatprep.subr.mxu0 %v1570
      %1700 = vmatpush2.msra.mxu0 %v1569
      %1701 = vmatprep.subr.mxu0 %v1544
      %1702 = vmatpush2.msra.mxu0 %v1543
      %1703 = vmatprep.subr.mxu0 %v1542
      %1704 = vmatpush2.msra.mxu0 %v1541
      %1705 = vmatprep.subr.mxu0 %v1540
      %1706 = vmatpush2.msra.mxu0 %v1539
      %1707 = vmatprep.subr.mxu0 %v1538
      %1708 = vmatpush2.msra.mxu0 %v1537
      %1709 = vmatprep.subr.mxu0 %v1371
      %1710 = vmatpush2.msra.mxu0 %v1370
      %1711 = vmatprep.subr.mxu0 %v1369
      %1712 = vmatpush2.msra.mxu0 %v1368
      %1713 = vmatprep.subr.mxu0 %v1367
      %1714 = vmatpush2.msra.mxu0 %v1366
      %1715 = vmatprep.subr.mxu0 %v1365
      %1716 = vmatpush2.msra.mxu0 %v1364
      %1717 = vmatprep.mubr.f32.mxu0 %v1374
      %1718 = vmatmul.mubr.f32.gmra.mxu0 %v1373
      %v1719 = vpop.f32.mrf.mxu0
      %v1720 = vadd.f32 0.0, %v1719
      %v1721 = vpop.f32.mrf.mxu0
      %v1722 = vadd.f32 0.0, %v1721
      %1723 = vmatprep.mubr.f32.mxu0 %v1377
      %1724 = vmatmul.mubr.f32.gmra.mxu0 %v1376
      %v1725 = vpop.f32.mrf.mxu0
      %v1726 = vadd.f32 0.0, %v1725
      %v1727 = vpop.f32.mrf.mxu0
      %v1728 = vadd.f32 0.0, %v1727
      %1729 = vmatprep.mubr.f32.mxu0 %v1380
      %1730 = vmatmul.mubr.f32.gmra.mxu0 %v1379
      %v1731 = vpop.f32.mrf.mxu0
      %v1732 = vadd.f32 0.0, %v1731
      %v1733 = vpop.f32.mrf.mxu0
      %v1734 = vadd.f32 0.0, %v1733
      %1735 = vmatprep.mubr.f32.mxu0 %v1383
      %1736 = vmatmul.mubr.f32.gmra.mxu0 %v1382
      %v1737 = vpop.f32.mrf.mxu0
      %v1738 = vadd.f32 0.0, %v1737
      %v1739 = vpop.f32.mrf.mxu0
      %v1740 = vadd.f32 0.0, %v1739
      %1741 = vdwg.mxu0
      %1742 = vmatprep.subr.mxu0 0.0
      %1743 = vmatpush1.msra.mxu0 0.0
      %1744 = vmatprep.subr.mxu0 0.0
      %1745 = vmatpush1.msra.mxu0 0.0
      %1746 = vmatprep.subr.mxu0 0.0
      %1747 = vmatpush1.msra.mxu0 0.0
      %1748 = vmatprep.subr.mxu0 0.0
      %1749 = vmatpush1.msra.mxu0 0.0
      %1750 = vmatprep.subr.mxu0 0.0
      %1751 = vmatpush1.msra.mxu0 0.0
      %1752 = vmatprep.subr.mxu0 0.0
      %1753 = vmatpush1.msra.mxu0 0.0
      %1754 = vmatprep.subr.mxu0 0.0
      %1755 = vmatpush1.msra.mxu0 0.0
      %1756 = vmatprep.subr.mxu0 0.0
      %1757 = vmatpush1.msra.mxu0 0.0
      %1758 = vmatprep.subr.mxu0 0.0
      %1759 = vmatpush1.msra.mxu0 0.0
      %1760 = vmatprep.subr.mxu0 0.0
      %1761 = vmatpush1.msra.mxu0 0.0
      %1762 = vmatprep.subr.mxu0 0.0
      %1763 = vmatpush1.msra.mxu0 0.0
      %1764 = vmatprep.subr.mxu0 0.0
      %1765 = vmatpush1.msra.mxu0 0.0
      %1766 = vmatprep.subr.mxu0 %v1640
      %1767 = vmatpush1.msra.mxu0 %v1639
      %1768 = vmatprep.subr.mxu0 %v1638
      %1769 = vmatpush1.msra.mxu0 %v1637
      %1770 = vmatprep.subr.mxu0 %v1636
      %1771 = vmatpush1.msra.mxu0 %v1635
      %1772 = vmatprep.subr.mxu0 %v1634
      %1773 = vmatpush1.msra.mxu0 %v1633
      %1774 = vmatprep.subr.mxu0 0.0
      %1775 = vmatpush2.msra.mxu0 0.0
      %1776 = vmatprep.subr.mxu0 0.0
      %1777 = vmatpush2.msra.mxu0 0.0
      %1778 = vmatprep.subr.mxu0 0.0
      %1779 = vmatpush2.msra.mxu0 0.0
      %1780 = vmatprep.subr.mxu0 0.0
      %1781 = vmatpush2.msra.mxu0 0.0
      %1782 = vmatprep.subr.mxu0 0.0
      %1783 = vmatpush2.msra.mxu0 0.0
      %1784 = vmatprep.subr.mxu0 0.0
      %1785 = vmatpush2.msra.mxu0 0.0
      %1786 = vmatprep.subr.mxu0 0.0
      %1787 = vmatpush2.msra.mxu0 0.0
      %1788 = vmatprep.subr.mxu0 0.0
      %1789 = vmatpush2.msra.mxu0 0.0
      %1790 = vmatprep.subr.mxu0 0.0
      %1791 = vmatpush2.msra.mxu0 0.0
      %1792 = vmatprep.subr.mxu0 0.0
      %1793 = vmatpush2.msra.mxu0 0.0
      %1794 = vmatprep.subr.mxu0 0.0
      %1795 = vmatpush2.msra.mxu0 0.0
      %1796 = vmatprep.subr.mxu0 0.0
      %1797 = vmatpush2.msra.mxu0 0.0
      %1798 = vmatprep.subr.mxu0 0.0
      %1799 = vmatpush2.msra.mxu0 0.0
      %1800 = vmatprep.subr.mxu0 0.0
      %1801 = vmatpush2.msra.mxu0 0.0
      %1802 = vmatprep.subr.mxu0 0.0
      %1803 = vmatpush2.msra.mxu0 0.0
      %1804 = vmatprep.subr.mxu0 0.0
      %1805 = vmatpush2.msra.mxu0 0.0
      %1806 = vmatprep.mubr.f32.mxu0 0.0
      %1807 = vmatmul.mubr.f32.gmra.mxu0 %v1642
      %v1808 = vpop.f32.mrf.mxu0
      %v1809 = vadd.f32 %v1720, %v1808
      %v1810 = vpop.f32.mrf.mxu0
      %v1811 = vadd.f32 %v1722, %v1810
      %1812 = vmatprep.mubr.f32.mxu0 0.0
      %1813 = vmatmul.mubr.f32.gmra.mxu0 %v1645
      %v1814 = vpop.f32.mrf.mxu0
      %v1815 = vadd.f32 %v1726, %v1814
      %v1816 = vpop.f32.mrf.mxu0
      %v1817 = vadd.f32 %v1728, %v1816
      %1818 = vmatprep.mubr.f32.mxu0 0.0
      %1819 = vmatmul.mubr.f32.gmra.mxu0 %v1648
      %v1820 = vpop.f32.mrf.mxu0
      %v1821 = vadd.f32 %v1732, %v1820
      %v1822 = vpop.f32.mrf.mxu0
      %v1823 = vadd.f32 %v1734, %v1822
      %1824 = vmatprep.mubr.f32.mxu0 0.0
      %1825 = vmatmul.mubr.f32.gmra.mxu0 %v1651
      %v1826 = vpop.f32.mrf.mxu0
      %v1827 = vadd.f32 %v1738, %v1826
      %v1828 = vpop.f32.mrf.mxu0
      %v1829 = vadd.f32 %v1740, %v1828
      %1830 = vdwg.mxu0
      %v1831 = vadd.f32 %v1809, %v1811
      %1832 = vadd.xlane.f32.xlu0 %v1831
      %v1833 = vpop.xlane.xlu0 %1832
      %v1834 = vadd.f32 %v1815, %v1817
      %1835 = vadd.xlane.f32.xlu0 %v1834
      %v1836 = vpop.xlane.xlu0 %1835
      %v1837 = vadd.f32 %v1821, %v1823
      %1838 = vadd.xlane.f32.xlu0 %v1837
      %v1839 = vpop.xlane.xlu0 %1838
      %v1840 = vadd.f32 %v1827, %v1829
      %1841 = vadd.xlane.f32.xlu0 %v1840
      %v1842 = vpop.xlane.xlu0 %1841
      %v1843 = vmul.f32 %v1833, 0.00390625
      %v1844 = vmul.f32 %v1836, 0.00390625
      %v1845 = vmul.f32 %v1839, 0.00390625
      %v1846 = vmul.f32 %v1842, 0.00390625
      %v1847 = vmul.f32 %v1809, %v1809
      %v1848 = vmul.f32 %v1811, %v1811
      %v1849 = vmul.f32 %v1815, %v1815
      %v1850 = vmul.f32 %v1817, %v1817
      %v1851 = vmul.f32 %v1821, %v1821
      %v1852 = vmul.f32 %v1823, %v1823
      %v1853 = vmul.f32 %v1827, %v1827
      %v1854 = vmul.f32 %v1829, %v1829
      %v1855 = vadd.f32 %v1847, %v1848
      %1856 = vadd.xlane.f32.xlu0 %v1855
      %v1857 = vpop.xlane.xlu0 %1856
      %v1858 = vadd.f32 %v1849, %v1850
      %1859 = vadd.xlane.f32.xlu0 %v1858
      %v1860 = vpop.xlane.xlu0 %1859
      %v1861 = vadd.f32 %v1851, %v1852
      %1862 = vadd.xlane.f32.xlu0 %v1861
      %v1863 = vpop.xlane.xlu0 %1862
      %v1864 = vadd.f32 %v1853, %v1854
      %1865 = vadd.xlane.f32.xlu0 %v1864
      %v1866 = vpop.xlane.xlu0 %1865
      %v1867 = vmul.f32 %v1857, 0.00390625
      %v1868 = vmul.f32 %v1860, 0.00390625
      %v1869 = vmul.f32 %v1863, 0.00390625
      %v1870 = vmul.f32 %v1866, 0.00390625
      %v1871 = vmul.f32 %v1843, %v1843
      %v1872 = vmul.f32 %v1844, %v1844
      %v1873 = vmul.f32 %v1845, %v1845
      %v1874 = vmul.f32 %v1846, %v1846
      %v1875 = vsub.f32 %v1867, %v1871
      %v1876 = vsub.f32 %v1868, %v1872
      %v1877 = vsub.f32 %v1869, %v1873
      %v1878 = vsub.f32 %v1870, %v1874
      %v1879 = vsub.f32 %v1809, %v1843
      %v1880 = vsub.f32 %v1811, %v1843
      %v1881 = vsub.f32 %v1815, %v1844
      %v1882 = vsub.f32 %v1817, %v1844
      %v1883 = vsub.f32 %v1821, %v1845
      %v1884 = vsub.f32 %v1823, %v1845
      %v1885 = vsub.f32 %v1827, %v1846
      %v1886 = vsub.f32 %v1829, %v1846
      %v1887 = vadd.f32 %v1875, 1e-05
      %v1888 = vadd.f32 %v1876, 1e-05
      %v1889 = vadd.f32 %v1877, 1e-05
      %v1890 = vadd.f32 %v1878, 1e-05
      %v1891 = vrsqrt.pop %v1887
      %v1892 = vrsqrt.pop %v1888
      %v1893 = vrsqrt.pop %v1889
      %v1894 = vrsqrt.pop %v1890
      %v1895 = vmul.f32 %v1879, %v1891
      %v1896 = vmul.f32 %v1880, %v1891
      %v1897 = vmul.f32 %v1881, %v1892
      %v1898 = vmul.f32 %v1882, %v1892
      %v1899 = vmul.f32 %v1883, %v1893
      %v1900 = vmul.f32 %v1884, %v1893
      %v1901 = vmul.f32 %v1885, %v1894
      %v1902 = vmul.f32 %v1886, %v1894
      %s1903 = scalar_lea.vmem %s6, 64
      %v1904 = vld [vmem:[%s1903] sm:$0xff]
      %v1905 = vld [vmem:[%s1903 + $0x8] sm:$0xff]
      %v1906 = vld [vmem:[%s1903 + $0x10] sm:$0xff]
      %v1907 = vld [vmem:[%s1903 + $0x18] sm:$0xff]
      %1909 = vset.pattern.permute.xlu0 0
      %1910 = vperm.xlu0 %1909, %v1904
      %v1911 = vpop.permute.xlu0 %1910
      %1914 = vset.pattern.permute.xlu0 0
      %1915 = vperm.xlu0 %1914, %v1905
      %v1916 = vpop.permute.xlu0 %1915
      %1919 = vset.pattern.permute.xlu0 0
      %1920 = vperm.xlu0 %1919, %v1906
      %v1921 = vpop.permute.xlu0 %1920
      %1924 = vset.pattern.permute.xlu0 0
      %1925 = vperm.xlu0 %1924, %v1907
      %v1926 = vpop.permute.xlu0 %1925
      %v1928 = vmul.f32 %v1895, %v1911
      %v1929 = vmul.f32 %v1896, %v1911
      %v1930 = vmul.f32 %v1897, %v1916
      %v1931 = vmul.f32 %v1898, %v1916
      %v1932 = vmul.f32 %v1899, %v1921
      %v1933 = vmul.f32 %v1900, %v1921
      %v1934 = vmul.f32 %v1901, %v1926
      %v1935 = vmul.f32 %v1902, %v1926
      %s1936 = scalar_lea.vmem %s7, 64
      %v1937 = vld [vmem:[%s1936] sm:$0xff]
      %v1938 = vld [vmem:[%s1936 + $0x8] sm:$0xff]
      %v1939 = vld [vmem:[%s1936 + $0x10] sm:$0xff]
      %v1940 = vld [vmem:[%s1936 + $0x18] sm:$0xff]
      %1942 = vset.pattern.permute.xlu0 0
      %1943 = vperm.xlu0 %1942, %v1937
      %v1944 = vpop.permute.xlu0 %1943
      %1947 = vset.pattern.permute.xlu0 0
      %1948 = vperm.xlu0 %1947, %v1938
      %v1949 = vpop.permute.xlu0 %1948
      %1952 = vset.pattern.permute.xlu0 0
      %1953 = vperm.xlu0 %1952, %v1939
      %v1954 = vpop.permute.xlu0 %1953
      %1957 = vset.pattern.permute.xlu0 0
      %1958 = vperm.xlu0 %1957, %v1940
      %v1959 = vpop.permute.xlu0 %1958
      %v1961 = vadd.f32 %v1928, %v1944
      %v1962 = vadd.f32 %v1929, %v1944
      %v1963 = vadd.f32 %v1930, %v1949
      %v1964 = vadd.f32 %v1931, %v1949
      %v1965 = vadd.f32 %v1932, %v1954
      %v1966 = vadd.f32 %v1933, %v1954
      %v1967 = vadd.f32 %v1934, %v1959
      %v1968 = vadd.f32 %v1935, %v1959
      %vm1969 = vcmp.ge.f32.partialorder %v1961, 0.0
      %vm1970 = vcmp.ge.f32.partialorder %v1962, 0.0
      %vm1971 = vcmp.ge.f32.partialorder %v1963, 0.0
      %vm1972 = vcmp.ge.f32.partialorder %v1964, 0.0
      %vm1973 = vcmp.ge.f32.partialorder %v1965, 0.0
      %vm1974 = vcmp.ge.f32.partialorder %v1966, 0.0
      %vm1975 = vcmp.ge.f32.partialorder %v1967, 0.0
      %vm1976 = vcmp.ge.f32.partialorder %v1968, 0.0
      %v1977 = vmul.f32 %v1961, 0.01
      %v1978 = vmul.f32 %v1962, 0.01
      %v1979 = vmul.f32 %v1963, 0.01
      %v1980 = vmul.f32 %v1964, 0.01
      %v1981 = vmul.f32 %v1965, 0.01
      %v1982 = vmul.f32 %v1966, 0.01
      %v1983 = vmul.f32 %v1967, 0.01
      %v1984 = vmul.f32 %v1968, 0.01
      %v1985 = vsel %vm1969, %v1961, %v1977
      %v1986 = vsel %vm1970, %v1962, %v1978
      %v1987 = vsel %vm1971, %v1963, %v1979
      %v1988 = vsel %vm1972, %v1964, %v1980
      %v1989 = vsel %vm1973, %v1965, %v1981
      %v1990 = vsel %vm1974, %v1966, %v1982
      %v1991 = vsel %vm1975, %v1967, %v1983
      %v1992 = vsel %vm1976, %v1968, %v1984
      %s1993 = scalar_lea.vmem %s3, 192
      %v1994 = vld [vmem:[%s1993] sm:$0xff]
      %v1995 = vld [vmem:[%s1993 + $0x8] sm:$0xff]
      %v1996 = vld [vmem:[%s1993 + $0x10] sm:$0xff]
      %v1997 = vld [vmem:[%s1993 + $0x18] sm:$0xff]
      %v1998 = vld [vmem:[%s1993 + $0x20] sm:$0xff]
      %v1999 = vld [vmem:[%s1993 + $0x28] sm:$0xff]
      %v2000 = vld [vmem:[%s1993 + $0x30] sm:$0xff]
      %v2001 = vld [vmem:[%s1993 + $0x38] sm:$0xff]
      %v2002 = vld [vmem:[%s1993 + $0x40] sm:$0xff]
      %v2003 = vld [vmem:[%s1993 + $0x48] sm:$0xff]
      %v2004 = vld [vmem:[%s1993 + $0x50] sm:$0xff]
      %v2005 = vld [vmem:[%s1993 + $0x58] sm:$0xff]
      %2006 = vrot.lane.b32.xlu0 %v1985, 17
      %v2007 = vpop.permute.xlu0 %2006
      %2008 = vrot.lane.b32.xlu0 %v1987, 17
      %v2009 = vpop.permute.xlu0 %2008
      %2010 = vrot.lane.b32.xlu0 %v1989, 17
      %v2011 = vpop.permute.xlu0 %2010
      %2012 = vrot.lane.b32.xlu0 %v1991, 17
      %v2013 = vpop.permute.xlu0 %2012
      %2014 = vrot.lane.b32.xlu0 %v1986, 17
      %v2015 = vpop.permute.xlu0 %2014
      %2016 = vrot.lane.b32.xlu0 %v1988, 17
      %v2017 = vpop.permute.xlu0 %2016
      %2018 = vrot.lane.b32.xlu0 %v1990, 17
      %v2019 = vpop.permute.xlu0 %2018
      %2020 = vrot.lane.b32.xlu0 %v1992, 17
      %v2021 = vpop.permute.xlu0 %2020
      %v2022 = vsel %vm333, %v2007, %v2015
      %v2023 = vsel %vm333, %v2009, %v2017
      %v2024 = vsel %vm333, %v2011, %v2019
      %v2025 = vsel %vm333, %v2013, %v2021
      %v2026 = vsel %vm333, %v2015, %v2007
      %v2027 = vsel %vm333, %v2017, %v2009
      %v2028 = vsel %vm333, %v2019, %v2011
      %v2029 = vsel %vm333, %v2021, %v2013
      %v2030 = vmul.f32 %v2026, %v340
      %v2031 = vmul.f32 %v2022, %v344
      %v2032 = vmul.f32 %v2027, %v340
      %v2033 = vmul.f32 %v2023, %v344
      %v2034 = vmul.f32 %v2028, %v340
      %v2035 = vmul.f32 %v2024, %v344
      %v2036 = vmul.f32 %v2029, %v340
      %v2037 = vmul.f32 %v2025, %v344
      %2038 = vrot.lane.b32.xlu0 %v1985, 16
      %v2039 = vpop.permute.xlu0 %2038
      %2040 = vrot.lane.b32.xlu0 %v1987, 16
      %v2041 = vpop.permute.xlu0 %2040
      %2042 = vrot.lane.b32.xlu0 %v1989, 16
      %v2043 = vpop.permute.xlu0 %2042
      %2044 = vrot.lane.b32.xlu0 %v1991, 16
      %v2045 = vpop.permute.xlu0 %2044
      %2046 = vrot.lane.b32.xlu0 %v1986, 16
      %v2047 = vpop.permute.xlu0 %2046
      %2048 = vrot.lane.b32.xlu0 %v1988, 16
      %v2049 = vpop.permute.xlu0 %2048
      %2050 = vrot.lane.b32.xlu0 %v1990, 16
      %v2051 = vpop.permute.xlu0 %2050
      %2052 = vrot.lane.b32.xlu0 %v1992, 16
      %v2053 = vpop.permute.xlu0 %2052
      %v2054 = vsel %vm353, %v2039, %v2047
      %v2055 = vsel %vm353, %v2041, %v2049
      %v2056 = vsel %vm353, %v2043, %v2051
      %v2057 = vsel %vm353, %v2045, %v2053
      %v2058 = vsel %vm353, %v2047, %v2039
      %v2059 = vsel %vm353, %v2049, %v2041
      %v2060 = vsel %vm353, %v2051, %v2043
      %v2061 = vsel %vm353, %v2053, %v2045
      %v2062 = vmul.f32 %v2058, %v360
      %v2063 = vmul.f32 %v2054, %v364
      %v2064 = vmul.f32 %v2059, %v360
      %v2065 = vmul.f32 %v2055, %v364
      %v2066 = vmul.f32 %v2060, %v360
      %v2067 = vmul.f32 %v2056, %v364
      %v2068 = vmul.f32 %v2061, %v360
      %v2069 = vmul.f32 %v2057, %v364
      %2070 = vrot.lane.b32.xlu0 %v1985, 15
      %v2071 = vpop.permute.xlu0 %2070
      %2072 = vrot.lane.b32.xlu0 %v1987, 15
      %v2073 = vpop.permute.xlu0 %2072
      %2074 = vrot.lane.b32.xlu0 %v1989, 15
      %v2075 = vpop.permute.xlu0 %2074
      %2076 = vrot.lane.b32.xlu0 %v1991, 15
      %v2077 = vpop.permute.xlu0 %2076
      %2078 = vrot.lane.b32.xlu0 %v1986, 15
      %v2079 = vpop.permute.xlu0 %2078
      %2080 = vrot.lane.b32.xlu0 %v1988, 15
      %v2081 = vpop.permute.xlu0 %2080
      %2082 = vrot.lane.b32.xlu0 %v1990, 15
      %v2083 = vpop.permute.xlu0 %2082
      %2084 = vrot.lane.b32.xlu0 %v1992, 15
      %v2085 = vpop.permute.xlu0 %2084
      %v2086 = vsel %vm373, %v2071, %v2079
      %v2087 = vsel %vm373, %v2073, %v2081
      %v2088 = vsel %vm373, %v2075, %v2083
      %v2089 = vsel %vm373, %v2077, %v2085
      %v2090 = vsel %vm373, %v2079, %v2071
      %v2091 = vsel %vm373, %v2081, %v2073
      %v2092 = vsel %vm373, %v2083, %v2075
      %v2093 = vsel %vm373, %v2085, %v2077
      %v2094 = vmul.f32 %v2090, %v380
      %v2095 = vmul.f32 %v2086, %v384
      %v2096 = vmul.f32 %v2091, %v380
      %v2097 = vmul.f32 %v2087, %v384
      %v2098 = vmul.f32 %v2092, %v380
      %v2099 = vmul.f32 %v2088, %v384
      %v2100 = vmul.f32 %v2093, %v380
      %v2101 = vmul.f32 %v2089, %v384
      %2102 = vrot.lane.b32.xlu0 %v1985, 1
      %v2103 = vpop.permute.xlu0 %2102
      %2104 = vrot.lane.b32.xlu0 %v1987, 1
      %v2105 = vpop.permute.xlu0 %2104
      %2106 = vrot.lane.b32.xlu0 %v1989, 1
      %v2107 = vpop.permute.xlu0 %2106
      %2108 = vrot.lane.b32.xlu0 %v1991, 1
      %v2109 = vpop.permute.xlu0 %2108
      %2110 = vrot.lane.b32.xlu0 %v1986, 1
      %v2111 = vpop.permute.xlu0 %2110
      %2112 = vrot.lane.b32.xlu0 %v1988, 1
      %v2113 = vpop.permute.xlu0 %2112
      %2114 = vrot.lane.b32.xlu0 %v1990, 1
      %v2115 = vpop.permute.xlu0 %2114
      %2116 = vrot.lane.b32.xlu0 %v1992, 1
      %v2117 = vpop.permute.xlu0 %2116
      %v2118 = vsel %vm393, %v2103, %v2111
      %v2119 = vsel %vm393, %v2105, %v2113
      %v2120 = vsel %vm393, %v2107, %v2115
      %v2121 = vsel %vm393, %v2109, %v2117
      %v2122 = vsel %vm393, %v2111, %v2103
      %v2123 = vsel %vm393, %v2113, %v2105
      %v2124 = vsel %vm393, %v2115, %v2107
      %v2125 = vsel %vm393, %v2117, %v2109
      %v2126 = vmul.f32 %v2122, %v400
      %v2127 = vmul.f32 %v2118, %v404
      %v2128 = vmul.f32 %v2123, %v400
      %v2129 = vmul.f32 %v2119, %v404
      %v2130 = vmul.f32 %v2124, %v400
      %v2131 = vmul.f32 %v2120, %v404
      %v2132 = vmul.f32 %v2125, %v400
      %v2133 = vmul.f32 %v2121, %v404
      %2134 = vrot.lane.b32.xlu0 %v1985, 127
      %v2135 = vpop.permute.xlu0 %2134
      %2136 = vrot.lane.b32.xlu0 %v1987, 127
      %v2137 = vpop.permute.xlu0 %2136
      %2138 = vrot.lane.b32.xlu0 %v1989, 127
      %v2139 = vpop.permute.xlu0 %2138
      %2140 = vrot.lane.b32.xlu0 %v1991, 127
      %v2141 = vpop.permute.xlu0 %2140
      %2142 = vrot.lane.b32.xlu0 %v1986, 127
      %v2143 = vpop.permute.xlu0 %2142
      %2144 = vrot.lane.b32.xlu0 %v1988, 127
      %v2145 = vpop.permute.xlu0 %2144
      %2146 = vrot.lane.b32.xlu0 %v1990, 127
      %v2147 = vpop.permute.xlu0 %2146
      %2148 = vrot.lane.b32.xlu0 %v1992, 127
      %v2149 = vpop.permute.xlu0 %2148
      %v2150 = vsel %vm413, %v2135, %v2143
      %v2151 = vsel %vm413, %v2137, %v2145
      %v2152 = vsel %vm413, %v2139, %v2147
      %v2153 = vsel %vm413, %v2141, %v2149
      %v2154 = vsel %vm413, %v2143, %v2135
      %v2155 = vsel %vm413, %v2145, %v2137
      %v2156 = vsel %vm413, %v2147, %v2139
      %v2157 = vsel %vm413, %v2149, %v2141
      %v2158 = vmul.f32 %v2150, %v420
      %v2159 = vmul.f32 %v2154, %v424
      %v2160 = vmul.f32 %v2151, %v420
      %v2161 = vmul.f32 %v2155, %v424
      %v2162 = vmul.f32 %v2152, %v420
      %v2163 = vmul.f32 %v2156, %v424
      %v2164 = vmul.f32 %v2153, %v420
      %v2165 = vmul.f32 %v2157, %v424
      %2166 = vrot.lane.b32.xlu0 %v1985, 113
      %v2167 = vpop.permute.xlu0 %2166
      %2168 = vrot.lane.b32.xlu0 %v1987, 113
      %v2169 = vpop.permute.xlu0 %2168
      %2170 = vrot.lane.b32.xlu0 %v1989, 113
      %v2171 = vpop.permute.xlu0 %2170
      %2172 = vrot.lane.b32.xlu0 %v1991, 113
      %v2173 = vpop.permute.xlu0 %2172
      %2174 = vrot.lane.b32.xlu0 %v1986, 113
      %v2175 = vpop.permute.xlu0 %2174
      %2176 = vrot.lane.b32.xlu0 %v1988, 113
      %v2177 = vpop.permute.xlu0 %2176
      %2178 = vrot.lane.b32.xlu0 %v1990, 113
      %v2179 = vpop.permute.xlu0 %2178
      %2180 = vrot.lane.b32.xlu0 %v1992, 113
      %v2181 = vpop.permute.xlu0 %2180
      %v2182 = vsel %vm433, %v2167, %v2175
      %v2183 = vsel %vm433, %v2169, %v2177
      %v2184 = vsel %vm433, %v2171, %v2179
      %v2185 = vsel %vm433, %v2173, %v2181
      %v2186 = vsel %vm433, %v2175, %v2167
      %v2187 = vsel %vm433, %v2177, %v2169
      %v2188 = vsel %vm433, %v2179, %v2171
      %v2189 = vsel %vm433, %v2181, %v2173
      %v2190 = vmul.f32 %v2182, %v440
      %v2191 = vmul.f32 %v2186, %v444
      %v2192 = vmul.f32 %v2183, %v440
      %v2193 = vmul.f32 %v2187, %v444
      %v2194 = vmul.f32 %v2184, %v440
      %v2195 = vmul.f32 %v2188, %v444
      %v2196 = vmul.f32 %v2185, %v440
      %v2197 = vmul.f32 %v2189, %v444
      %2198 = vrot.lane.b32.xlu0 %v1985, 112
      %v2199 = vpop.permute.xlu0 %2198
      %2200 = vrot.lane.b32.xlu0 %v1987, 112
      %v2201 = vpop.permute.xlu0 %2200
      %2202 = vrot.lane.b32.xlu0 %v1989, 112
      %v2203 = vpop.permute.xlu0 %2202
      %2204 = vrot.lane.b32.xlu0 %v1991, 112
      %v2205 = vpop.permute.xlu0 %2204
      %2206 = vrot.lane.b32.xlu0 %v1986, 112
      %v2207 = vpop.permute.xlu0 %2206
      %2208 = vrot.lane.b32.xlu0 %v1988, 112
      %v2209 = vpop.permute.xlu0 %2208
      %2210 = vrot.lane.b32.xlu0 %v1990, 112
      %v2211 = vpop.permute.xlu0 %2210
      %2212 = vrot.lane.b32.xlu0 %v1992, 112
      %v2213 = vpop.permute.xlu0 %2212
      %v2214 = vsel %vm453, %v2199, %v2207
      %v2215 = vsel %vm453, %v2201, %v2209
      %v2216 = vsel %vm453, %v2203, %v2211
      %v2217 = vsel %vm453, %v2205, %v2213
      %v2218 = vsel %vm453, %v2207, %v2199
      %v2219 = vsel %vm453, %v2209, %v2201
      %v2220 = vsel %vm453, %v2211, %v2203
      %v2221 = vsel %vm453, %v2213, %v2205
      %v2222 = vmul.f32 %v2214, %v460
      %v2223 = vmul.f32 %v2218, %v464
      %v2224 = vmul.f32 %v2215, %v460
      %v2225 = vmul.f32 %v2219, %v464
      %v2226 = vmul.f32 %v2216, %v460
      %v2227 = vmul.f32 %v2220, %v464
      %v2228 = vmul.f32 %v2217, %v460
      %v2229 = vmul.f32 %v2221, %v464
      %2230 = vrot.lane.b32.xlu0 %v1985, 111
      %v2231 = vpop.permute.xlu0 %2230
      %2232 = vrot.lane.b32.xlu0 %v1987, 111
      %v2233 = vpop.permute.xlu0 %2232
      %2234 = vrot.lane.b32.xlu0 %v1989, 111
      %v2235 = vpop.permute.xlu0 %2234
      %2236 = vrot.lane.b32.xlu0 %v1991, 111
      %v2237 = vpop.permute.xlu0 %2236
      %2238 = vrot.lane.b32.xlu0 %v1986, 111
      %v2239 = vpop.permute.xlu0 %2238
      %2240 = vrot.lane.b32.xlu0 %v1988, 111
      %v2241 = vpop.permute.xlu0 %2240
      %2242 = vrot.lane.b32.xlu0 %v1990, 111
      %v2243 = vpop.permute.xlu0 %2242
      %2244 = vrot.lane.b32.xlu0 %v1992, 111
      %v2245 = vpop.permute.xlu0 %2244
      %v2246 = vsel %vm473, %v2231, %v2239
      %v2247 = vsel %vm473, %v2233, %v2241
      %v2248 = vsel %vm473, %v2235, %v2243
      %v2249 = vsel %vm473, %v2237, %v2245
      %v2250 = vsel %vm473, %v2239, %v2231
      %v2251 = vsel %vm473, %v2241, %v2233
      %v2252 = vsel %vm473, %v2243, %v2235
      %v2253 = vsel %vm473, %v2245, %v2237
      %v2254 = vmul.f32 %v2246, %v480
      %v2255 = vmul.f32 %v2250, %v484
      %v2256 = vmul.f32 %v2247, %v480
      %v2257 = vmul.f32 %v2251, %v484
      %v2258 = vmul.f32 %v2248, %v480
      %v2259 = vmul.f32 %v2252, %v484
      %v2260 = vmul.f32 %v2249, %v480
      %v2261 = vmul.f32 %v2253, %v484
      %v2263 = vsel %vm1019, %v1996, 0
      %v2266 = vsel %vm1019, %v1999, 0
      %v2269 = vsel %vm1019, %v2002, 0
      %v2272 = vsel %vm1019, %v2005, 0
      %2274 = vmatprep.subr.mxu0 %v2133
      %2275 = vmatpush1.msra.mxu0 %v2132
      %2276 = vmatprep.subr.mxu0 %v2131
      %2277 = vmatpush1.msra.mxu0 %v2130
      %2278 = vmatprep.subr.mxu0 %v2129
      %2279 = vmatpush1.msra.mxu0 %v2128
      %2280 = vmatprep.subr.mxu0 %v2127
      %2281 = vmatpush1.msra.mxu0 %v2126
      %2282 = vmatprep.subr.mxu0 %v2101
      %2283 = vmatpush1.msra.mxu0 %v2100
      %2284 = vmatprep.subr.mxu0 %v2099
      %2285 = vmatpush1.msra.mxu0 %v2098
      %2286 = vmatprep.subr.mxu0 %v2097
      %2287 = vmatpush1.msra.mxu0 %v2096
      %2288 = vmatprep.subr.mxu0 %v2095
      %2289 = vmatpush1.msra.mxu0 %v2094
      %2290 = vmatprep.subr.mxu0 %v2069
      %2291 = vmatpush1.msra.mxu0 %v2068
      %2292 = vmatprep.subr.mxu0 %v2067
      %2293 = vmatpush1.msra.mxu0 %v2066
      %2294 = vmatprep.subr.mxu0 %v2065
      %2295 = vmatpush1.msra.mxu0 %v2064
      %2296 = vmatprep.subr.mxu0 %v2063
      %2297 = vmatpush1.msra.mxu0 %v2062
      %2298 = vmatprep.subr.mxu0 %v2037
      %2299 = vmatpush1.msra.mxu0 %v2036
      %2300 = vmatprep.subr.mxu0 %v2035
      %2301 = vmatpush1.msra.mxu0 %v2034
      %2302 = vmatprep.subr.mxu0 %v2033
      %2303 = vmatpush1.msra.mxu0 %v2032
      %2304 = vmatprep.subr.mxu0 %v2031
      %2305 = vmatpush1.msra.mxu0 %v2030
      %2306 = vmatprep.subr.mxu0 %v2229
      %2307 = vmatpush2.msra.mxu0 %v2228
      %2308 = vmatprep.subr.mxu0 %v2227
      %2309 = vmatpush2.msra.mxu0 %v2226
      %2310 = vmatprep.subr.mxu0 %v2225
      %2311 = vmatpush2.msra.mxu0 %v2224
      %2312 = vmatprep.subr.mxu0 %v2223
      %2313 = vmatpush2.msra.mxu0 %v2222
      %2314 = vmatprep.subr.mxu0 %v2197
      %2315 = vmatpush2.msra.mxu0 %v2196
      %2316 = vmatprep.subr.mxu0 %v2195
      %2317 = vmatpush2.msra.mxu0 %v2194
      %2318 = vmatprep.subr.mxu0 %v2193
      %2319 = vmatpush2.msra.mxu0 %v2192
      %2320 = vmatprep.subr.mxu0 %v2191
      %2321 = vmatpush2.msra.mxu0 %v2190
      %2322 = vmatprep.subr.mxu0 %v2165
      %2323 = vmatpush2.msra.mxu0 %v2164
      %2324 = vmatprep.subr.mxu0 %v2163
      %2325 = vmatpush2.msra.mxu0 %v2162
      %2326 = vmatprep.subr.mxu0 %v2161
      %2327 = vmatpush2.msra.mxu0 %v2160
      %2328 = vmatprep.subr.mxu0 %v2159
      %2329 = vmatpush2.msra.mxu0 %v2158
      %2330 = vmatprep.subr.mxu0 %v1992
      %2331 = vmatpush2.msra.mxu0 %v1991
      %2332 = vmatprep.subr.mxu0 %v1990
      %2333 = vmatpush2.msra.mxu0 %v1989
      %2334 = vmatprep.subr.mxu0 %v1988
      %2335 = vmatpush2.msra.mxu0 %v1987
      %2336 = vmatprep.subr.mxu0 %v1986
      %2337 = vmatpush2.msra.mxu0 %v1985
      %2338 = vmatprep.mubr.f32.mxu0 %v1995
      %2339 = vmatmul.mubr.f32.gmra.mxu0 %v1994
      %v2340 = vpop.f32.mrf.mxu0
      %v2341 = vadd.f32 0.0, %v2340
      %v2342 = vpop.f32.mrf.mxu0
      %v2343 = vadd.f32 0.0, %v2342
      %2344 = vmatprep.mubr.f32.mxu0 %v1998
      %2345 = vmatmul.mubr.f32.gmra.mxu0 %v1997
      %v2346 = vpop.f32.mrf.mxu0
      %v2347 = vadd.f32 0.0, %v2346
      %v2348 = vpop.f32.mrf.mxu0
      %v2349 = vadd.f32 0.0, %v2348
      %2350 = vmatprep.mubr.f32.mxu0 %v2001
      %2351 = vmatmul.mubr.f32.gmra.mxu0 %v2000
      %v2352 = vpop.f32.mrf.mxu0
      %v2353 = vadd.f32 0.0, %v2352
      %v2354 = vpop.f32.mrf.mxu0
      %v2355 = vadd.f32 0.0, %v2354
      %2356 = vmatprep.mubr.f32.mxu0 %v2004
      %2357 = vmatmul.mubr.f32.gmra.mxu0 %v2003
      %v2358 = vpop.f32.mrf.mxu0
      %v2359 = vadd.f32 0.0, %v2358
      %v2360 = vpop.f32.mrf.mxu0
      %v2361 = vadd.f32 0.0, %v2360
      %2362 = vdwg.mxu0
      %2363 = vmatprep.subr.mxu0 0.0
      %2364 = vmatpush1.msra.mxu0 0.0
      %2365 = vmatprep.subr.mxu0 0.0
      %2366 = vmatpush1.msra.mxu0 0.0
      %2367 = vmatprep.subr.mxu0 0.0
      %2368 = vmatpush1.msra.mxu0 0.0
      %2369 = vmatprep.subr.mxu0 0.0
      %2370 = vmatpush1.msra.mxu0 0.0
      %2371 = vmatprep.subr.mxu0 0.0
      %2372 = vmatpush1.msra.mxu0 0.0
      %2373 = vmatprep.subr.mxu0 0.0
      %2374 = vmatpush1.msra.mxu0 0.0
      %2375 = vmatprep.subr.mxu0 0.0
      %2376 = vmatpush1.msra.mxu0 0.0
      %2377 = vmatprep.subr.mxu0 0.0
      %2378 = vmatpush1.msra.mxu0 0.0
      %2379 = vmatprep.subr.mxu0 0.0
      %2380 = vmatpush1.msra.mxu0 0.0
      %2381 = vmatprep.subr.mxu0 0.0
      %2382 = vmatpush1.msra.mxu0 0.0
      %2383 = vmatprep.subr.mxu0 0.0
      %2384 = vmatpush1.msra.mxu0 0.0
      %2385 = vmatprep.subr.mxu0 0.0
      %2386 = vmatpush1.msra.mxu0 0.0
      %2387 = vmatprep.subr.mxu0 %v2261
      %2388 = vmatpush1.msra.mxu0 %v2260
      %2389 = vmatprep.subr.mxu0 %v2259
      %2390 = vmatpush1.msra.mxu0 %v2258
      %2391 = vmatprep.subr.mxu0 %v2257
      %2392 = vmatpush1.msra.mxu0 %v2256
      %2393 = vmatprep.subr.mxu0 %v2255
      %2394 = vmatpush1.msra.mxu0 %v2254
      %2395 = vmatprep.subr.mxu0 0.0
      %2396 = vmatpush2.msra.mxu0 0.0
      %2397 = vmatprep.subr.mxu0 0.0
      %2398 = vmatpush2.msra.mxu0 0.0
      %2399 = vmatprep.subr.mxu0 0.0
      %2400 = vmatpush2.msra.mxu0 0.0
      %2401 = vmatprep.subr.mxu0 0.0
      %2402 = vmatpush2.msra.mxu0 0.0
      %2403 = vmatprep.subr.mxu0 0.0
      %2404 = vmatpush2.msra.mxu0 0.0
      %2405 = vmatprep.subr.mxu0 0.0
      %2406 = vmatpush2.msra.mxu0 0.0
      %2407 = vmatprep.subr.mxu0 0.0
      %2408 = vmatpush2.msra.mxu0 0.0
      %2409 = vmatprep.subr.mxu0 0.0
      %2410 = vmatpush2.msra.mxu0 0.0
      %2411 = vmatprep.subr.mxu0 0.0
      %2412 = vmatpush2.msra.mxu0 0.0
      %2413 = vmatprep.subr.mxu0 0.0
      %2414 = vmatpush2.msra.mxu0 0.0
      %2415 = vmatprep.subr.mxu0 0.0
      %2416 = vmatpush2.msra.mxu0 0.0
      %2417 = vmatprep.subr.mxu0 0.0
      %2418 = vmatpush2.msra.mxu0 0.0
      %2419 = vmatprep.subr.mxu0 0.0
      %2420 = vmatpush2.msra.mxu0 0.0
      %2421 = vmatprep.subr.mxu0 0.0
      %2422 = vmatpush2.msra.mxu0 0.0
      %2423 = vmatprep.subr.mxu0 0.0
      %2424 = vmatpush2.msra.mxu0 0.0
      %2425 = vmatprep.subr.mxu0 0.0
      %2426 = vmatpush2.msra.mxu0 0.0
      %2427 = vmatprep.mubr.f32.mxu0 0.0
      %2428 = vmatmul.mubr.f32.gmra.mxu0 %v2263
      %v2429 = vpop.f32.mrf.mxu0
      %v2430 = vadd.f32 %v2341, %v2429
      %v2431 = vpop.f32.mrf.mxu0
      %v2432 = vadd.f32 %v2343, %v2431
      %2433 = vmatprep.mubr.f32.mxu0 0.0
      %2434 = vmatmul.mubr.f32.gmra.mxu0 %v2266
      %v2435 = vpop.f32.mrf.mxu0
      %v2436 = vadd.f32 %v2347, %v2435
      %v2437 = vpop.f32.mrf.mxu0
      %v2438 = vadd.f32 %v2349, %v2437
      %2439 = vmatprep.mubr.f32.mxu0 0.0
      %2440 = vmatmul.mubr.f32.gmra.mxu0 %v2269
      %v2441 = vpop.f32.mrf.mxu0
      %v2442 = vadd.f32 %v2353, %v2441
      %v2443 = vpop.f32.mrf.mxu0
      %v2444 = vadd.f32 %v2355, %v2443
      %2445 = vmatprep.mubr.f32.mxu0 0.0
      %2446 = vmatmul.mubr.f32.gmra.mxu0 %v2272
      %v2447 = vpop.f32.mrf.mxu0
      %v2448 = vadd.f32 %v2359, %v2447
      %v2449 = vpop.f32.mrf.mxu0
      %v2450 = vadd.f32 %v2361, %v2449
      %2451 = vdwg.mxu0
      %v2452 = vadd.f32 %v2430, %v2432
      %2453 = vadd.xlane.f32.xlu0 %v2452
      %v2454 = vpop.xlane.xlu0 %2453
      %v2455 = vadd.f32 %v2436, %v2438
      %2456 = vadd.xlane.f32.xlu0 %v2455
      %v2457 = vpop.xlane.xlu0 %2456
      %v2458 = vadd.f32 %v2442, %v2444
      %2459 = vadd.xlane.f32.xlu0 %v2458
      %v2460 = vpop.xlane.xlu0 %2459
      %v2461 = vadd.f32 %v2448, %v2450
      %2462 = vadd.xlane.f32.xlu0 %v2461
      %v2463 = vpop.xlane.xlu0 %2462
      %v2464 = vmul.f32 %v2454, 0.00390625
      %v2465 = vmul.f32 %v2457, 0.00390625
      %v2466 = vmul.f32 %v2460, 0.00390625
      %v2467 = vmul.f32 %v2463, 0.00390625
      %v2468 = vmul.f32 %v2430, %v2430
      %v2469 = vmul.f32 %v2432, %v2432
      %v2470 = vmul.f32 %v2436, %v2436
      %v2471 = vmul.f32 %v2438, %v2438
      %v2472 = vmul.f32 %v2442, %v2442
      %v2473 = vmul.f32 %v2444, %v2444
      %v2474 = vmul.f32 %v2448, %v2448
      %v2475 = vmul.f32 %v2450, %v2450
      %v2476 = vadd.f32 %v2468, %v2469
      %2477 = vadd.xlane.f32.xlu0 %v2476
      %v2478 = vpop.xlane.xlu0 %2477
      %v2479 = vadd.f32 %v2470, %v2471
      %2480 = vadd.xlane.f32.xlu0 %v2479
      %v2481 = vpop.xlane.xlu0 %2480
      %v2482 = vadd.f32 %v2472, %v2473
      %2483 = vadd.xlane.f32.xlu0 %v2482
      %v2484 = vpop.xlane.xlu0 %2483
      %v2485 = vadd.f32 %v2474, %v2475
      %2486 = vadd.xlane.f32.xlu0 %v2485
      %v2487 = vpop.xlane.xlu0 %2486
      %v2488 = vmul.f32 %v2478, 0.00390625
      %v2489 = vmul.f32 %v2481, 0.00390625
      %v2490 = vmul.f32 %v2484, 0.00390625
      %v2491 = vmul.f32 %v2487, 0.00390625
      %v2492 = vmul.f32 %v2464, %v2464
      %v2493 = vmul.f32 %v2465, %v2465
      %v2494 = vmul.f32 %v2466, %v2466
      %v2495 = vmul.f32 %v2467, %v2467
      %v2496 = vsub.f32 %v2488, %v2492
      %v2497 = vsub.f32 %v2489, %v2493
      %v2498 = vsub.f32 %v2490, %v2494
      %v2499 = vsub.f32 %v2491, %v2495
      %v2500 = vsub.f32 %v2430, %v2464
      %v2501 = vsub.f32 %v2432, %v2464
      %v2502 = vsub.f32 %v2436, %v2465
      %v2503 = vsub.f32 %v2438, %v2465
      %v2504 = vsub.f32 %v2442, %v2466
      %v2505 = vsub.f32 %v2444, %v2466
      %v2506 = vsub.f32 %v2448, %v2467
      %v2507 = vsub.f32 %v2450, %v2467
      %v2508 = vadd.f32 %v2496, 1e-05
      %v2509 = vadd.f32 %v2497, 1e-05
      %v2510 = vadd.f32 %v2498, 1e-05
      %v2511 = vadd.f32 %v2499, 1e-05
      %v2512 = vrsqrt.pop %v2508
      %v2513 = vrsqrt.pop %v2509
      %v2514 = vrsqrt.pop %v2510
      %v2515 = vrsqrt.pop %v2511
      %v2516 = vmul.f32 %v2500, %v2512
      %v2517 = vmul.f32 %v2501, %v2512
      %v2518 = vmul.f32 %v2502, %v2513
      %v2519 = vmul.f32 %v2503, %v2513
      %v2520 = vmul.f32 %v2504, %v2514
      %v2521 = vmul.f32 %v2505, %v2514
      %v2522 = vmul.f32 %v2506, %v2515
      %v2523 = vmul.f32 %v2507, %v2515
      %s2524 = scalar_lea.vmem %s6, 96
      %v2525 = vld [vmem:[%s2524] sm:$0xff]
      %v2526 = vld [vmem:[%s2524 + $0x8] sm:$0xff]
      %v2527 = vld [vmem:[%s2524 + $0x10] sm:$0xff]
      %v2528 = vld [vmem:[%s2524 + $0x18] sm:$0xff]
      %2530 = vset.pattern.permute.xlu0 0
      %2531 = vperm.xlu0 %2530, %v2525
      %v2532 = vpop.permute.xlu0 %2531
      %2535 = vset.pattern.permute.xlu0 0
      %2536 = vperm.xlu0 %2535, %v2526
      %v2537 = vpop.permute.xlu0 %2536
      %2540 = vset.pattern.permute.xlu0 0
      %2541 = vperm.xlu0 %2540, %v2527
      %v2542 = vpop.permute.xlu0 %2541
      %2545 = vset.pattern.permute.xlu0 0
      %2546 = vperm.xlu0 %2545, %v2528
      %v2547 = vpop.permute.xlu0 %2546
      %v2549 = vmul.f32 %v2516, %v2532
      %v2550 = vmul.f32 %v2517, %v2532
      %v2551 = vmul.f32 %v2518, %v2537
      %v2552 = vmul.f32 %v2519, %v2537
      %v2553 = vmul.f32 %v2520, %v2542
      %v2554 = vmul.f32 %v2521, %v2542
      %v2555 = vmul.f32 %v2522, %v2547
      %v2556 = vmul.f32 %v2523, %v2547
      %s2557 = scalar_lea.vmem %s7, 96
      %v2558 = vld [vmem:[%s2557] sm:$0xff]
      %v2559 = vld [vmem:[%s2557 + $0x8] sm:$0xff]
      %v2560 = vld [vmem:[%s2557 + $0x10] sm:$0xff]
      %v2561 = vld [vmem:[%s2557 + $0x18] sm:$0xff]
      %2563 = vset.pattern.permute.xlu0 0
      %2564 = vperm.xlu0 %2563, %v2558
      %v2565 = vpop.permute.xlu0 %2564
      %2568 = vset.pattern.permute.xlu0 0
      %2569 = vperm.xlu0 %2568, %v2559
      %v2570 = vpop.permute.xlu0 %2569
      %2573 = vset.pattern.permute.xlu0 0
      %2574 = vperm.xlu0 %2573, %v2560
      %v2575 = vpop.permute.xlu0 %2574
      %2578 = vset.pattern.permute.xlu0 0
      %2579 = vperm.xlu0 %2578, %v2561
      %v2580 = vpop.permute.xlu0 %2579
      %v2582 = vadd.f32 %v2549, %v2565
      %v2583 = vadd.f32 %v2550, %v2565
      %v2584 = vadd.f32 %v2551, %v2570
      %v2585 = vadd.f32 %v2552, %v2570
      %v2586 = vadd.f32 %v2553, %v2575
      %v2587 = vadd.f32 %v2554, %v2575
      %v2588 = vadd.f32 %v2555, %v2580
      %v2589 = vadd.f32 %v2556, %v2580
      %vm2590 = vcmp.ge.f32.partialorder %v2582, 0.0
      %vm2591 = vcmp.ge.f32.partialorder %v2583, 0.0
      %vm2592 = vcmp.ge.f32.partialorder %v2584, 0.0
      %vm2593 = vcmp.ge.f32.partialorder %v2585, 0.0
      %vm2594 = vcmp.ge.f32.partialorder %v2586, 0.0
      %vm2595 = vcmp.ge.f32.partialorder %v2587, 0.0
      %vm2596 = vcmp.ge.f32.partialorder %v2588, 0.0
      %vm2597 = vcmp.ge.f32.partialorder %v2589, 0.0
      %v2598 = vmul.f32 %v2582, 0.01
      %v2599 = vmul.f32 %v2583, 0.01
      %v2600 = vmul.f32 %v2584, 0.01
      %v2601 = vmul.f32 %v2585, 0.01
      %v2602 = vmul.f32 %v2586, 0.01
      %v2603 = vmul.f32 %v2587, 0.01
      %v2604 = vmul.f32 %v2588, 0.01
      %v2605 = vmul.f32 %v2589, 0.01
      %v2606 = vsel %vm2590, %v2582, %v2598
      %v2607 = vsel %vm2591, %v2583, %v2599
      %v2608 = vsel %vm2592, %v2584, %v2600
      %v2609 = vsel %vm2593, %v2585, %v2601
      %v2610 = vsel %vm2594, %v2586, %v2602
      %v2611 = vsel %vm2595, %v2587, %v2603
      %v2612 = vsel %vm2596, %v2588, %v2604
      %v2613 = vsel %vm2597, %v2589, %v2605
      %v2614 = vld [vmem:[%s4] sm:$0x3f]
      %2615 = vrot.lane.b32.xlu0 %v2606, 17
      %v2616 = vpop.permute.xlu0 %2615
      %2617 = vrot.lane.b32.xlu0 %v2608, 17
      %v2618 = vpop.permute.xlu0 %2617
      %2619 = vrot.lane.b32.xlu0 %v2610, 17
      %v2620 = vpop.permute.xlu0 %2619
      %2621 = vrot.lane.b32.xlu0 %v2612, 17
      %v2622 = vpop.permute.xlu0 %2621
      %2623 = vrot.lane.b32.xlu0 %v2607, 17
      %v2624 = vpop.permute.xlu0 %2623
      %2625 = vrot.lane.b32.xlu0 %v2609, 17
      %v2626 = vpop.permute.xlu0 %2625
      %2627 = vrot.lane.b32.xlu0 %v2611, 17
      %v2628 = vpop.permute.xlu0 %2627
      %2629 = vrot.lane.b32.xlu0 %v2613, 17
      %v2630 = vpop.permute.xlu0 %2629
      %v2631 = vsel %vm333, %v2616, %v2624
      %v2632 = vsel %vm333, %v2618, %v2626
      %v2633 = vsel %vm333, %v2620, %v2628
      %v2634 = vsel %vm333, %v2622, %v2630
      %v2635 = vsel %vm333, %v2624, %v2616
      %v2636 = vsel %vm333, %v2626, %v2618
      %v2637 = vsel %vm333, %v2628, %v2620
      %v2638 = vsel %vm333, %v2630, %v2622
      %v2639 = vmul.f32 %v2635, %v340
      %v2640 = vmul.f32 %v2631, %v344
      %v2641 = vmul.f32 %v2636, %v340
      %v2642 = vmul.f32 %v2632, %v344
      %v2643 = vmul.f32 %v2637, %v340
      %v2644 = vmul.f32 %v2633, %v344
      %v2645 = vmul.f32 %v2638, %v340
      %v2646 = vmul.f32 %v2634, %v344
      %2647 = vrot.lane.b32.xlu0 %v2606, 16
      %v2648 = vpop.permute.xlu0 %2647
      %2649 = vrot.lane.b32.xlu0 %v2608, 16
      %v2650 = vpop.permute.xlu0 %2649
      %2651 = vrot.lane.b32.xlu0 %v2610, 16
      %v2652 = vpop.permute.xlu0 %2651
      %2653 = vrot.lane.b32.xlu0 %v2612, 16
      %v2654 = vpop.permute.xlu0 %2653
      %2655 = vrot.lane.b32.xlu0 %v2607, 16
      %v2656 = vpop.permute.xlu0 %2655
      %2657 = vrot.lane.b32.xlu0 %v2609, 16
      %v2658 = vpop.permute.xlu0 %2657
      %2659 = vrot.lane.b32.xlu0 %v2611, 16
      %v2660 = vpop.permute.xlu0 %2659
      %2661 = vrot.lane.b32.xlu0 %v2613, 16
      %v2662 = vpop.permute.xlu0 %2661
      %v2663 = vsel %vm353, %v2648, %v2656
      %v2664 = vsel %vm353, %v2650, %v2658
      %v2665 = vsel %vm353, %v2652, %v2660
      %v2666 = vsel %vm353, %v2654, %v2662
      %v2667 = vsel %vm353, %v2656, %v2648
      %v2668 = vsel %vm353, %v2658, %v2650
      %v2669 = vsel %vm353, %v2660, %v2652
      %v2670 = vsel %vm353, %v2662, %v2654
      %v2671 = vmul.f32 %v2667, %v360
      %v2672 = vmul.f32 %v2663, %v364
      %v2673 = vmul.f32 %v2668, %v360
      %v2674 = vmul.f32 %v2664, %v364
      %v2675 = vmul.f32 %v2669, %v360
      %v2676 = vmul.f32 %v2665, %v364
      %v2677 = vmul.f32 %v2670, %v360
      %v2678 = vmul.f32 %v2666, %v364
      %2679 = vrot.lane.b32.xlu0 %v2606, 15
      %v2680 = vpop.permute.xlu0 %2679
      %2681 = vrot.lane.b32.xlu0 %v2608, 15
      %v2682 = vpop.permute.xlu0 %2681
      %2683 = vrot.lane.b32.xlu0 %v2610, 15
      %v2684 = vpop.permute.xlu0 %2683
      %2685 = vrot.lane.b32.xlu0 %v2612, 15
      %v2686 = vpop.permute.xlu0 %2685
      %2687 = vrot.lane.b32.xlu0 %v2607, 15
      %v2688 = vpop.permute.xlu0 %2687
      %2689 = vrot.lane.b32.xlu0 %v2609, 15
      %v2690 = vpop.permute.xlu0 %2689
      %2691 = vrot.lane.b32.xlu0 %v2611, 15
      %v2692 = vpop.permute.xlu0 %2691
      %2693 = vrot.lane.b32.xlu0 %v2613, 15
      %v2694 = vpop.permute.xlu0 %2693
      %v2695 = vsel %vm373, %v2680, %v2688
      %v2696 = vsel %vm373, %v2682, %v2690
      %v2697 = vsel %vm373, %v2684, %v2692
      %v2698 = vsel %vm373, %v2686, %v2694
      %v2699 = vsel %vm373, %v2688, %v2680
      %v2700 = vsel %vm373, %v2690, %v2682
      %v2701 = vsel %vm373, %v2692, %v2684
      %v2702 = vsel %vm373, %v2694, %v2686
      %v2703 = vmul.f32 %v2699, %v380
      %v2704 = vmul.f32 %v2695, %v384
      %v2705 = vmul.f32 %v2700, %v380
      %v2706 = vmul.f32 %v2696, %v384
      %v2707 = vmul.f32 %v2701, %v380
      %v2708 = vmul.f32 %v2697, %v384
      %v2709 = vmul.f32 %v2702, %v380
      %v2710 = vmul.f32 %v2698, %v384
      %2711 = vrot.lane.b32.xlu0 %v2606, 1
      %v2712 = vpop.permute.xlu0 %2711
      %2713 = vrot.lane.b32.xlu0 %v2608, 1
      %v2714 = vpop.permute.xlu0 %2713
      %2715 = vrot.lane.b32.xlu0 %v2610, 1
      %v2716 = vpop.permute.xlu0 %2715
      %2717 = vrot.lane.b32.xlu0 %v2612, 1
      %v2718 = vpop.permute.xlu0 %2717
      %2719 = vrot.lane.b32.xlu0 %v2607, 1
      %v2720 = vpop.permute.xlu0 %2719
      %2721 = vrot.lane.b32.xlu0 %v2609, 1
      %v2722 = vpop.permute.xlu0 %2721
      %2723 = vrot.lane.b32.xlu0 %v2611, 1
      %v2724 = vpop.permute.xlu0 %2723
      %2725 = vrot.lane.b32.xlu0 %v2613, 1
      %v2726 = vpop.permute.xlu0 %2725
      %v2727 = vsel %vm393, %v2712, %v2720
      %v2728 = vsel %vm393, %v2714, %v2722
      %v2729 = vsel %vm393, %v2716, %v2724
      %v2730 = vsel %vm393, %v2718, %v2726
      %v2731 = vsel %vm393, %v2720, %v2712
      %v2732 = vsel %vm393, %v2722, %v2714
      %v2733 = vsel %vm393, %v2724, %v2716
      %v2734 = vsel %vm393, %v2726, %v2718
      %v2735 = vmul.f32 %v2731, %v400
      %v2736 = vmul.f32 %v2727, %v404
      %v2737 = vmul.f32 %v2732, %v400
      %v2738 = vmul.f32 %v2728, %v404
      %v2739 = vmul.f32 %v2733, %v400
      %v2740 = vmul.f32 %v2729, %v404
      %v2741 = vmul.f32 %v2734, %v400
      %v2742 = vmul.f32 %v2730, %v404
      %2743 = vrot.lane.b32.xlu0 %v2606, 127
      %v2744 = vpop.permute.xlu0 %2743
      %2745 = vrot.lane.b32.xlu0 %v2608, 127
      %v2746 = vpop.permute.xlu0 %2745
      %2747 = vrot.lane.b32.xlu0 %v2610, 127
      %v2748 = vpop.permute.xlu0 %2747
      %2749 = vrot.lane.b32.xlu0 %v2612, 127
      %v2750 = vpop.permute.xlu0 %2749
      %2751 = vrot.lane.b32.xlu0 %v2607, 127
      %v2752 = vpop.permute.xlu0 %2751
      %2753 = vrot.lane.b32.xlu0 %v2609, 127
      %v2754 = vpop.permute.xlu0 %2753
      %2755 = vrot.lane.b32.xlu0 %v2611, 127
      %v2756 = vpop.permute.xlu0 %2755
      %2757 = vrot.lane.b32.xlu0 %v2613, 127
      %v2758 = vpop.permute.xlu0 %2757
      %v2759 = vsel %vm413, %v2744, %v2752
      %v2760 = vsel %vm413, %v2746, %v2754
      %v2761 = vsel %vm413, %v2748, %v2756
      %v2762 = vsel %vm413, %v2750, %v2758
      %v2763 = vsel %vm413, %v2752, %v2744
      %v2764 = vsel %vm413, %v2754, %v2746
      %v2765 = vsel %vm413, %v2756, %v2748
      %v2766 = vsel %vm413, %v2758, %v2750
      %v2767 = vmul.f32 %v2759, %v420
      %v2768 = vmul.f32 %v2763, %v424
      %v2769 = vmul.f32 %v2760, %v420
      %v2770 = vmul.f32 %v2764, %v424
      %v2771 = vmul.f32 %v2761, %v420
      %v2772 = vmul.f32 %v2765, %v424
      %v2773 = vmul.f32 %v2762, %v420
      %v2774 = vmul.f32 %v2766, %v424
      %2775 = vrot.lane.b32.xlu0 %v2606, 113
      %v2776 = vpop.permute.xlu0 %2775
      %2777 = vrot.lane.b32.xlu0 %v2608, 113
      %v2778 = vpop.permute.xlu0 %2777
      %2779 = vrot.lane.b32.xlu0 %v2610, 113
      %v2780 = vpop.permute.xlu0 %2779
      %2781 = vrot.lane.b32.xlu0 %v2612, 113
      %v2782 = vpop.permute.xlu0 %2781
      %2783 = vrot.lane.b32.xlu0 %v2607, 113
      %v2784 = vpop.permute.xlu0 %2783
      %2785 = vrot.lane.b32.xlu0 %v2609, 113
      %v2786 = vpop.permute.xlu0 %2785
      %2787 = vrot.lane.b32.xlu0 %v2611, 113
      %v2788 = vpop.permute.xlu0 %2787
      %2789 = vrot.lane.b32.xlu0 %v2613, 113
      %v2790 = vpop.permute.xlu0 %2789
      %v2791 = vsel %vm433, %v2776, %v2784
      %v2792 = vsel %vm433, %v2778, %v2786
      %v2793 = vsel %vm433, %v2780, %v2788
      %v2794 = vsel %vm433, %v2782, %v2790
      %v2795 = vsel %vm433, %v2784, %v2776
      %v2796 = vsel %vm433, %v2786, %v2778
      %v2797 = vsel %vm433, %v2788, %v2780
      %v2798 = vsel %vm433, %v2790, %v2782
      %v2799 = vmul.f32 %v2791, %v440
      %v2800 = vmul.f32 %v2795, %v444
      %v2801 = vmul.f32 %v2792, %v440
      %v2802 = vmul.f32 %v2796, %v444
      %v2803 = vmul.f32 %v2793, %v440
      %v2804 = vmul.f32 %v2797, %v444
      %v2805 = vmul.f32 %v2794, %v440
      %v2806 = vmul.f32 %v2798, %v444
      %2807 = vrot.lane.b32.xlu0 %v2606, 112
      %v2808 = vpop.permute.xlu0 %2807
      %2809 = vrot.lane.b32.xlu0 %v2608, 112
      %v2810 = vpop.permute.xlu0 %2809
      %2811 = vrot.lane.b32.xlu0 %v2610, 112
      %v2812 = vpop.permute.xlu0 %2811
      %2813 = vrot.lane.b32.xlu0 %v2612, 112
      %v2814 = vpop.permute.xlu0 %2813
      %2815 = vrot.lane.b32.xlu0 %v2607, 112
      %v2816 = vpop.permute.xlu0 %2815
      %2817 = vrot.lane.b32.xlu0 %v2609, 112
      %v2818 = vpop.permute.xlu0 %2817
      %2819 = vrot.lane.b32.xlu0 %v2611, 112
      %v2820 = vpop.permute.xlu0 %2819
      %2821 = vrot.lane.b32.xlu0 %v2613, 112
      %v2822 = vpop.permute.xlu0 %2821
      %v2823 = vsel %vm453, %v2808, %v2816
      %v2824 = vsel %vm453, %v2810, %v2818
      %v2825 = vsel %vm453, %v2812, %v2820
      %v2826 = vsel %vm453, %v2814, %v2822
      %v2827 = vsel %vm453, %v2816, %v2808
      %v2828 = vsel %vm453, %v2818, %v2810
      %v2829 = vsel %vm453, %v2820, %v2812
      %v2830 = vsel %vm453, %v2822, %v2814
      %v2831 = vmul.f32 %v2823, %v460
      %v2832 = vmul.f32 %v2827, %v464
      %v2833 = vmul.f32 %v2824, %v460
      %v2834 = vmul.f32 %v2828, %v464
      %v2835 = vmul.f32 %v2825, %v460
      %v2836 = vmul.f32 %v2829, %v464
      %v2837 = vmul.f32 %v2826, %v460
      %v2838 = vmul.f32 %v2830, %v464
      %2839 = vrot.lane.b32.xlu0 %v2606, 111
      %v2840 = vpop.permute.xlu0 %2839
      %2841 = vrot.lane.b32.xlu0 %v2608, 111
      %v2842 = vpop.permute.xlu0 %2841
      %2843 = vrot.lane.b32.xlu0 %v2610, 111
      %v2844 = vpop.permute.xlu0 %2843
      %2845 = vrot.lane.b32.xlu0 %v2612, 111
      %v2846 = vpop.permute.xlu0 %2845
      %2847 = vrot.lane.b32.xlu0 %v2607, 111
      %v2848 = vpop.permute.xlu0 %2847
      %2849 = vrot.lane.b32.xlu0 %v2609, 111
      %v2850 = vpop.permute.xlu0 %2849
      %2851 = vrot.lane.b32.xlu0 %v2611, 111
      %v2852 = vpop.permute.xlu0 %2851
      %2853 = vrot.lane.b32.xlu0 %v2613, 111
      %v2854 = vpop.permute.xlu0 %2853
      %v2855 = vsel %vm473, %v2840, %v2848
      %v2856 = vsel %vm473, %v2842, %v2850
      %v2857 = vsel %vm473, %v2844, %v2852
      %v2858 = vsel %vm473, %v2846, %v2854
      %v2859 = vsel %vm473, %v2848, %v2840
      %v2860 = vsel %vm473, %v2850, %v2842
      %v2861 = vsel %vm473, %v2852, %v2844
      %v2862 = vsel %vm473, %v2854, %v2846
      %v2863 = vmul.f32 %v2855, %v480
      %v2864 = vmul.f32 %v2859, %v484
      %v2865 = vmul.f32 %v2856, %v480
      %v2866 = vmul.f32 %v2860, %v484
      %v2867 = vmul.f32 %v2857, %v480
      %v2868 = vmul.f32 %v2861, %v484
      %v2869 = vmul.f32 %v2858, %v480
      %v2870 = vmul.f32 %v2862, %v484
      %v2871 = vld [vmem:[%s5] sm:$0x3]
      %2873 = vset.pattern.permute.xlu0 0
      %2874 = vperm.xlu0 %2873, %v2871
      %v2875 = vpop.permute.xlu0 %2874
      %v2878 = vcombine.high %v2614, %v2614
      %v2880 = vunpack.c.l.s4 1983009808
      %v2881 = vunpack.c.0.s8 %v2880
      %v2882 = vlaneseq
      %v2883 = vshrl.u32 %v2882, 7
      %v2884 = vsub.s32 %v2881, %v2883
      %v2885 = vrot.slane %v2614, %v2884
      %v2887 = vunpack.c.l.s4 1983009808
      %v2888 = vunpack.c.0.s8 %v2887
      %v2889 = vlaneseq
      %v2890 = vshrl.u32 %v2889, 7
      %v2891 = vsub.s32 %v2888, %v2890
      %v2892 = vrot.slane %v2878, %v2891
      %v2893 = vcombine.high %v2885, %v2885
      %v2896 = vsel %vm1019, %v2892, 0
      %2898 = vmatprep.subr.mxu0 %v2742
      %2899 = vmatpush1.msra.mxu0 %v2741
      %2900 = vmatprep.subr.mxu0 %v2740
      %2901 = vmatpush1.msra.mxu0 %v2739
      %2902 = vmatprep.subr.mxu0 %v2738
      %2903 = vmatpush1.msra.mxu0 %v2737
      %2904 = vmatprep.subr.mxu0 %v2736
      %2905 = vmatpush1.msra.mxu0 %v2735
      %2906 = vmatprep.subr.mxu0 %v2710
      %2907 = vmatpush1.msra.mxu0 %v2709
      %2908 = vmatprep.subr.mxu0 %v2708
      %2909 = vmatpush1.msra.mxu0 %v2707
      %2910 = vmatprep.subr.mxu0 %v2706
      %2911 = vmatpush1.msra.mxu0 %v2705
      %2912 = vmatprep.subr.mxu0 %v2704
      %2913 = vmatpush1.msra.mxu0 %v2703
      %2914 = vmatprep.subr.mxu0 %v2678
      %2915 = vmatpush1.msra.mxu0 %v2677
      %2916 = vmatprep.subr.mxu0 %v2676
      %2917 = vmatpush1.msra.mxu0 %v2675
      %2918 = vmatprep.subr.mxu0 %v2674
      %2919 = vmatpush1.msra.mxu0 %v2673
      %2920 = vmatprep.subr.mxu0 %v2672
      %2921 = vmatpush1.msra.mxu0 %v2671
      %2922 = vmatprep.subr.mxu0 %v2646
      %2923 = vmatpush1.msra.mxu0 %v2645
      %2924 = vmatprep.subr.mxu0 %v2644
      %2925 = vmatpush1.msra.mxu0 %v2643
      %2926 = vmatprep.subr.mxu0 %v2642
      %2927 = vmatpush1.msra.mxu0 %v2641
      %2928 = vmatprep.subr.mxu0 %v2640
      %2929 = vmatpush1.msra.mxu0 %v2639
      %2930 = vmatprep.subr.mxu0 %v2838
      %2931 = vmatpush2.msra.mxu0 %v2837
      %2932 = vmatprep.subr.mxu0 %v2836
      %2933 = vmatpush2.msra.mxu0 %v2835
      %2934 = vmatprep.subr.mxu0 %v2834
      %2935 = vmatpush2.msra.mxu0 %v2833
      %2936 = vmatprep.subr.mxu0 %v2832
      %2937 = vmatpush2.msra.mxu0 %v2831
      %2938 = vmatprep.subr.mxu0 %v2806
      %2939 = vmatpush2.msra.mxu0 %v2805
      %2940 = vmatprep.subr.mxu0 %v2804
      %2941 = vmatpush2.msra.mxu0 %v2803
      %2942 = vmatprep.subr.mxu0 %v2802
      %2943 = vmatpush2.msra.mxu0 %v2801
      %2944 = vmatprep.subr.mxu0 %v2800
      %2945 = vmatpush2.msra.mxu0 %v2799
      %2946 = vmatprep.subr.mxu0 %v2774
      %2947 = vmatpush2.msra.mxu0 %v2773
      %2948 = vmatprep.subr.mxu0 %v2772
      %2949 = vmatpush2.msra.mxu0 %v2771
      %2950 = vmatprep.subr.mxu0 %v2770
      %2951 = vmatpush2.msra.mxu0 %v2769
      %2952 = vmatprep.subr.mxu0 %v2768
      %2953 = vmatpush2.msra.mxu0 %v2767
      %2954 = vmatprep.subr.mxu0 %v2613
      %2955 = vmatpush2.msra.mxu0 %v2612
      %2956 = vmatprep.subr.mxu0 %v2611
      %2957 = vmatpush2.msra.mxu0 %v2610
      %2958 = vmatprep.subr.mxu0 %v2609
      %2959 = vmatpush2.msra.mxu0 %v2608
      %2960 = vmatprep.subr.mxu0 %v2607
      %2961 = vmatpush2.msra.mxu0 %v2606
      %2962 = vmatprep.mubr.f32.mxu0 %v2893
      %2963 = vmatmul.mubr.f32.gmra.mxu0 %v2885
      %v2964 = vpop.f32.mrf.mxu0
      %v2965 = vadd.f32 %v2875, %v2964
      %v2966 = vpop.f32.mrf.mxu0
      %v2967 = vadd.f32 %v2875, %v2966
      %2968 = vdwg.mxu0
      %2969 = vmatprep.subr.mxu0 0.0
      %2970 = vmatpush1.msra.mxu0 0.0
      %2971 = vmatprep.subr.mxu0 0.0
      %2972 = vmatpush1.msra.mxu0 0.0
      %2973 = vmatprep.subr.mxu0 0.0
      %2974 = vmatpush1.msra.mxu0 0.0
      %2975 = vmatprep.subr.mxu0 0.0
      %2976 = vmatpush1.msra.mxu0 0.0
      %2977 = vmatprep.subr.mxu0 0.0
      %2978 = vmatpush1.msra.mxu0 0.0
      %2979 = vmatprep.subr.mxu0 0.0
      %2980 = vmatpush1.msra.mxu0 0.0
      %2981 = vmatprep.subr.mxu0 0.0
      %2982 = vmatpush1.msra.mxu0 0.0
      %2983 = vmatprep.subr.mxu0 0.0
      %2984 = vmatpush1.msra.mxu0 0.0
      %2985 = vmatprep.subr.mxu0 0.0
      %2986 = vmatpush1.msra.mxu0 0.0
      %2987 = vmatprep.subr.mxu0 0.0
      %2988 = vmatpush1.msra.mxu0 0.0
      %2989 = vmatprep.subr.mxu0 0.0
      %2990 = vmatpush1.msra.mxu0 0.0
      %2991 = vmatprep.subr.mxu0 0.0
      %2992 = vmatpush1.msra.mxu0 0.0
      %2993 = vmatprep.subr.mxu0 %v2870
      %2994 = vmatpush1.msra.mxu0 %v2869
      %2995 = vmatprep.subr.mxu0 %v2868
      %2996 = vmatpush1.msra.mxu0 %v2867
      %2997 = vmatprep.subr.mxu0 %v2866
      %2998 = vmatpush1.msra.mxu0 %v2865
      %2999 = vmatprep.subr.mxu0 %v2864
      %3000 = vmatpush1.msra.mxu0 %v2863
      %3001 = vmatprep.subr.mxu0 0.0
      %3002 = vmatpush2.msra.mxu0 0.0
      %3003 = vmatprep.subr.mxu0 0.0
      %3004 = vmatpush2.msra.mxu0 0.0
      %3005 = vmatprep.subr.mxu0 0.0
      %3006 = vmatpush2.msra.mxu0 0.0
      %3007 = vmatprep.subr.mxu0 0.0
      %3008 = vmatpush2.msra.mxu0 0.0
      %3009 = vmatprep.subr.mxu0 0.0
      %3010 = vmatpush2.msra.mxu0 0.0
      %3011 = vmatprep.subr.mxu0 0.0
      %3012 = vmatpush2.msra.mxu0 0.0
      %3013 = vmatprep.subr.mxu0 0.0
      %3014 = vmatpush2.msra.mxu0 0.0
      %3015 = vmatprep.subr.mxu0 0.0
      %3016 = vmatpush2.msra.mxu0 0.0
      %3017 = vmatprep.subr.mxu0 0.0
      %3018 = vmatpush2.msra.mxu0 0.0
      %3019 = vmatprep.subr.mxu0 0.0
      %3020 = vmatpush2.msra.mxu0 0.0
      %3021 = vmatprep.subr.mxu0 0.0
      %3022 = vmatpush2.msra.mxu0 0.0
      %3023 = vmatprep.subr.mxu0 0.0
      %3024 = vmatpush2.msra.mxu0 0.0
      %3025 = vmatprep.subr.mxu0 0.0
      %3026 = vmatpush2.msra.mxu0 0.0
      %3027 = vmatprep.subr.mxu0 0.0
      %3028 = vmatpush2.msra.mxu0 0.0
      %3029 = vmatprep.subr.mxu0 0.0
      %3030 = vmatpush2.msra.mxu0 0.0
      %3031 = vmatprep.subr.mxu0 0.0
      %3032 = vmatpush2.msra.mxu0 0.0
      %3033 = vmatprep.mubr.f32.mxu0 0.0
      %3034 = vmatmul.mubr.f32.gmra.mxu0 %v2896
      %v3035 = vpop.f32.mrf.mxu0
      %v3036 = vadd.f32 %v2965, %v3035
      %v3037 = vpop.f32.mrf.mxu0
      %v3038 = vadd.f32 %v2967, %v3037
      %3039 = vdwg.mxu0
      %v3040 = vld [vmem:[%s300] sm:$0x3]
      %v3041 = vld [vmem:[%s300 + $0x8] sm:$0x3]
      %v3042 = vadd.f32 %v3040, %v3036
      %v3043 = vadd.f32 %v3041, %v3038
      %v3046 = vcombine.low %v3042, %v3043
      %v3048 = vunpack.c.l.s4 1983009808
      %v3049 = vunpack.c.0.s8 %v3048
      %v3050 = vlaneseq
      %v3051 = vshrl.u32 %v3050, 7
      %v3052 = vsub.s32 %v3049, %v3051
      %v3053 = vrot.slane %v3046, %v3052
      %3055 = vst [vmem:[%s305] sm:$0xf] %v3053
      %p3056 = scmp.lt.s32.totalorder %s19, 1
      %s3057 = scalar_select %p3056, %s19, 1
      %s3058 = smul.addr %s3057, 2
      %s3059 = smul.addr %s3058, 2
      %s3060 = scalar_lea.vmem %s8, %s3059
      // Predicated region
      $region53: #{udncn_forward.5} parent=51 // pred_check
        %p3061 = pneg %p210
      $region54: #{udncn_forward.5} parent=51 // pred_check_branch
        %3063 = sbr.rel (%p3061) target = $region56
      $region55: #{udncn_forward.5} parent=51 // pred_region
        _
      $region56: #{udncn_forward.5} parent=51 // pred_fallthru
        _
    $region52: #{udncn_forward.5} parent=5 // pred_fallthru
      _
    %p3064 = scmp.le.s32.totalorder 2, %s14
    // Predicated region
    $region57: #{udncn_forward.5} parent=5 // pred_check
      %p3065 = pneg %p3064
    $region58: #{udncn_forward.5} parent=5 // pred_check_branch
      %3067 = sbr.rel (%p3065) target = $region60
    $region59: #{udncn_forward.5} parent=5 // pred_region
      %s3068 = ssub.s32 %s14, 2
      // Predicated region
      $region61: #{udncn_forward.5} parent=59 // pred_check
        %p3069 = pneg %p216
      $region62: #{udncn_forward.5} parent=59 // pred_check_branch
        %3071 = sbr.rel (%p3069) target = $region64
      $region63: #{udncn_forward.5} parent=59 // pred_region
        %p3072 = scmp.lt.s32.totalorder %s20, 1
        %s3073 = scalar_select %p3072, %s20, 1
        %s3074 = smul.addr %s3073, 2
        %s3075 = smul.addr %s3074, 2
        %s3076 = scalar_lea.vmem %s8, %s3075
      $region64: #{udncn_forward.5} parent=59 // pred_fallthru
        _
    $region60: #{udncn_forward.5} parent=5 // pred_fallthru
      _
  $region6: #{udncn_forward.5} parent=0 // loop_footer
    %s18 = sadd.s32 1, %s14
  $region7: #{udncn_forward.5} parent=0 // loop_footer_branch
    %13 = sbr.rel target = $region3
  $region8: #{udncn_forward.5} parent=0 // loop_exit
    _

</llo_original>
